<compile_context>
chip_gen: v5e
topology: v5e:2x2
jax: 0.10.0
libtpu: 0.0.40
codegen_flags: <defaults>
</compile_context>

<pallas_src>
import functools
import math

import jax
import jax.numpy as jnp
from jax.experimental import pallas as pl
from jax.experimental.pallas import tpu as pltpu

# ----------------------------- model config (small, synthetic) ---------------
VOCAB = 128
EMBED = 32
NUM_LAYERS = 2
HEAD_DIM = 8
NUM_HEADS = (4, 8)        # OpenELM varies heads per layer
NUM_GROUPS = (2, 4)       # num_query_groups per layer (GQA)
INTERMEDIATE = (32, 48)   # FF hidden size per layer
KV_MAX = 16               # kv_cache_max
MAX_SEQ = 16
ROPE_BASE = 10000.0
EPS = 1e-6

# Per-layer operand order shared by the wrapper and the kernel unpack.
_LAYER_OPERANDS = ("kc", "vc", "attn_norm", "qkn_w", "ffn_norm", "cos_qk",
                   "sin_qk", "mask_t", "wqkv", "avg_qk", "rot_qk", "cmat",
                   "rmat", "mbd", "wo", "w1", "w2")


# ----------------------------- small dot helpers ------------------------------
def _bdot(a, b, dims=None):
    """bf16 MXU matmul with f32 accumulation."""
    a16 = a.astype(jnp.bfloat16)
    b16 = b.astype(jnp.bfloat16)
    if dims is None:
        return jnp.dot(a16, b16, preferred_element_type=jnp.float32)
    return jax.lax.dot_general(a16, b16, dims, preferred_element_type=jnp.float32)


def _fdot(a, b):
    """f32 matmul (norm statistics / RoPE rotate / softmax denominator)."""
    return jnp.dot(a, b, preferred_element_type=jnp.float32)


# ----------------------------- fully fused forward kernel --------------------
def _openelm_kernel(pos_ref, tok_ref, emb_ref, fnw_ref, *refs, layer_dims, eps):
    n_layers = len(layer_dims)
    n_per = len(_LAYER_OPERANDS)
    lrefs = [refs[l * n_per:(l + 1) * n_per] for l in range(n_layers)]
    out_refs = refs[n_layers * n_per:]
    logits_ref = out_refs[0]

    T = tok_ref.shape[0]
    V, E = emb_ref.shape
    pos0 = pos_ref[0]                                       # first decode position

    # ---- token embedding as a one-hot matmul (row 0 of emb = padding row) ----
    eq = jax.lax.broadcasted_iota(jnp.int32, (T, V), 1) == tok_ref[...]   # [T, V]
    onehot = jnp.where(eq, 1.0, 0.0)
    x = _bdot(onehot, emb_ref[...])                                       # [T, E] f32

    for l, (H, G, D) in enumerate(layer_dims):
        (kc_ref, vc_ref, anw_ref, qknw_ref, ffw_ref, cos_ref, sin_ref,
         maskt_ref, wqkv_ref, avg_ref, rot_ref, cmat_ref, rmat_ref, mbd_ref,
         wo_ref, w1_ref, w2_ref) = lrefs[l]
        kco_ref, vco_ref = out_refs[1 + 2 * l], out_refs[2 + 2 * l]
        HD, GD, QKD = H * D, G * D, (H + G) * D
        inter = w2_ref.shape[0]

        # ---- pre-attention RMSNorm + fused QKV projection ----
        xn = x * jax.lax.rsqrt(jnp.mean(x * x, axis=-1, keepdims=True) + eps)
        xn = xn * anw_ref[...]
        qkv = _bdot(xn, wqkv_ref[...])                                    # [T, (H+2G)D]

        # ---- per-head q/k RMSNorm + RoPE on the joint [T, (H+G)D] slab ----
        qk = qkv[:, :QKD]
        ms = _fdot(qk * qk, avg_ref[...])          # per-head mean of squares (bcast)
        qk = qk * jax.lax.rsqrt(ms + eps) * qknw_ref[...]
        cos = cos_ref[pl.ds(pos0, T), :]           # q half pre-scaled by 1/sqrt(D)
        sin = sin_ref[pl.ds(pos0, T), :]
        qk = qk * cos + _fdot(qk, rot_ref[...]) * sin
        q, k, v = qk[:, :HD], qk[:, HD:], qkv[:, QKD:]

        # ---- KV-cache update (index_copy at input_pos); in place via aliasing.
        # TODO(synk): assumes contiguous input_pos (standard prefill/decode);
        # arbitrary scatter positions would need a per-row DMA / one-hot path.
        kco_ref[...] = kc_ref[...]
        vco_ref[...] = vc_ref[...]
        kco_ref[pl.ds(pos0, T), :] = k
        vco_ref[pl.ds(pos0, T), :] = v
        k_all = kco_ref[...]                                              # [S, GD]
        v_all = vco_ref[...]

        # ---- batched GQA attention: block-diagonal head expansion, no loops ----
        # kbd/vbd[h*S+s, h'*D+d] = delta(h,h') * {k,v}_all[s, group(h')*D+d]
        kbd = _bdot(_bdot(cmat_ref[...], k_all), rmat_ref[...]) * mbd_ref[...]
        vbd = _bdot(_bdot(cmat_ref[...], v_all), rmat_ref[...]) * mbd_ref[...]
        s = _bdot(q, kbd, (((1,), (1,)), ((), ())))                       # [T, H*S]
        s = s + maskt_ref[pl.ds(pos0, T), :]                              # causal -inf
        p = jnp.exp(s - jnp.max(s, axis=-1, keepdims=True))               # row-global max
        denom = _fdot(p, mbd_ref[...])             # per-head sums, broadcast to [T, HD]
        o = _bdot(p, vbd) * pl.reciprocal(denom, approx=True)             # [T, HD]
        x = x + _bdot(o, wo_ref[...])                                     # residual

        # ---- pre-FF RMSNorm + SiLU-GLU feed-forward (fused gate|up weight) ----
        xn2 = x * jax.lax.rsqrt(jnp.mean(x * x, axis=-1, keepdims=True) + eps)
        xn2 = xn2 * ffw_ref[...]
        h12 = _bdot(xn2, w1_ref[...])                                     # [T, 2I]
        gate, up = h12[:, :inter], h12[:, inter:]
        x = x + _bdot(gate * jax.nn.sigmoid(gate) * up, w2_ref[...])

    # ---- final RMSNorm + tied lm_head (contract on emb's embedding axis) ----
    xn3 = x * jax.lax.rsqrt(jnp.mean(x * x, axis=-1, keepdims=True) + eps)
    xn3 = xn3 * fnw_ref[...]
    logits_ref[...] = _bdot(xn3, emb_ref[...], (((1,), (1,)), ((), ())))  # [T, V]


# ----------------------------- wrapper: one pallas_call -----------------------
def openelm_forward(params, tokens, input_pos, kv_cache):
    B, T = tokens.shape
    assert MAX_SEQ >= T
    V, E = params["embedding"].shape
    n_layers = len(params["blocks"])

    operands = [
        input_pos.astype(jnp.int32),                      # SMEM scalars
        tokens.reshape(B, T, 1).astype(jnp.int32),        # embedding indices
        params["embedding"],                              # tied embed / lm_head (bf16)
        params["final_norm"],
    ]
    in_specs = [
        pl.BlockSpec(memory_space=pltpu.MemorySpace.SMEM),
        pl.BlockSpec((None, T, 1), lambda b: (b, 0, 0)),
        pl.BlockSpec((V, E), lambda b: (0, 0)),
        pl.BlockSpec((1, E), lambda b: (0, 0)),
    ]
    out_shape = [jax.ShapeDtypeStruct((B, T, V), jnp.float32)]
    out_specs = [pl.BlockSpec((None, T, V), lambda b: (b, 0, 0))]
    aliases = {}
    layer_dims = []

    for l in range(n_layers):
        blk = dict(params["blocks"][l])
        blk["kc"], blk["vc"] = kv_cache[l]
        aliases[len(operands) + 0] = len(out_shape)       # k cache updated in place
        aliases[len(operands) + 1] = len(out_shape) + 1   # v cache updated in place
        for name in _LAYER_OPERANDS:
            arr = blk[name]
            operands.append(arr)
            if name in ("kc", "vc"):
                in_specs.append(
                    pl.BlockSpec((None,) + arr.shape[1:], lambda b: (b, 0, 0)))
            else:
                in_specs.append(pl.BlockSpec(arr.shape, lambda b: (0, 0)))
        kc = kv_cache[l][0]
        out_shape += [jax.ShapeDtypeStruct(kc.shape, kc.dtype),
                      jax.ShapeDtypeStruct(kc.shape, kc.dtype)]
        out_specs += [pl.BlockSpec((None,) + kc.shape[1:], lambda b: (b, 0, 0))] * 2
        layer_dims.append((NUM_HEADS[l], NUM_GROUPS[l], HEAD_DIM))

    kernel = functools.partial(_openelm_kernel,
                               layer_dims=tuple(layer_dims), eps=EPS)
    results = pl.pallas_call(
        kernel,
        out_shape=tuple(out_shape),
        grid=(B,),
        in_specs=in_specs,
        out_specs=tuple(out_specs),
        input_output_aliases=aliases,
        compiler_params=pltpu.CompilerParams(
            dimension_semantics=("parallel",)),
    )(*operands)

    logits = results[0]
    new_kv = tuple((results[1 + 2 * l], results[2 + 2 * l])
                   for l in range(n_layers))
    return {"logits": logits, "kv_cache": new_kv}


# ----------------------------- caches & params -------------------------------
def build_rope_cache(size, dim, base):
    theta = 1.0 / (base ** (jnp.arange(0, dim, 2, dtype=jnp.float32) / dim))
    idx_theta = jnp.outer(jnp.arange(size, dtype=jnp.float32), theta)  # [size, dim/2]
    cos = jnp.concatenate([jnp.cos(idx_theta)] * 2, axis=-1)           # .repeat(1, 2)
    sin = jnp.concatenate([jnp.sin(idx_theta)] * 2, axis=-1)
    return cos, sin


def build_causal_mask_cache(size):
    return jnp.triu(jnp.full((size, size), float("-inf"), jnp.float32), k=1)


def _rot_half_matrix(d):
    """x @ R == rotate_half(x) == concat([-x[d/2:], x[:d/2]])."""
    half = d // 2
    r = jnp.zeros((d, d), jnp.float32)
    r = r.at[half:, :half].set(-jnp.eye(half, dtype=jnp.float32))
    r = r.at[:half, half:].set(jnp.eye(half, dtype=jnp.float32))
    return r


def init_params(key):
    counter = iter(range(1_000_000))

    def w(shape):
        return jax.random.normal(jax.random.fold_in(key, next(counter)),
                                 shape, jnp.float32) * 0.02

    D = HEAD_DIM
    S = KV_MAX
    scale = 1.0 / math.sqrt(D)
    rope_cos, rope_sin = build_rope_cache(KV_MAX, D, ROPE_BASE)        # [S, D]
    mask = build_causal_mask_cache(KV_MAX)                              # [S, S]

    emb = w((VOCAB, EMBED)).at[0].set(0.0)   # nn.Embedding(padding_idx=0)
    blocks = []
    for layer in range(NUM_LAYERS):
        H, G, inter = NUM_HEADS[layer], NUM_GROUPS[layer], INTERMEDIATE[layer]
        qpk = H // G
        q_norm = jnp.ones((D,), jnp.float32)
        k_norm = jnp.ones((D,), jnp.float32)
        blocks.append(dict(
            # ---- learned weights (matmul weights stored in bf16) ----
            attn_norm=jnp.ones((1, EMBED), jnp.float32),
            ffn_norm=jnp.ones((1, EMBED), jnp.float32),
            wqkv=w((EMBED, (H + 2 * G) * D)).astype(jnp.bfloat16),
            wo=w((H * D, EMBED)).astype(jnp.bfloat16),
            w1=w((EMBED, 2 * inter)).astype(jnp.bfloat16),              # gate | up
            w2=w((inter, EMBED)).astype(jnp.bfloat16),
            # ---- per-forward prep hoisted to init ----
            qkn_w=jnp.concatenate([jnp.tile(q_norm, H),
                                   jnp.tile(k_norm, G)]).reshape(1, (H + G) * D),
            cos_qk=jnp.concatenate([jnp.tile(rope_cos, (1, H)) * scale,
                                    jnp.tile(rope_cos, (1, G))], axis=1),
            sin_qk=jnp.concatenate([jnp.tile(rope_sin, (1, H)) * scale,
                                    jnp.tile(rope_sin, (1, G))], axis=1),
            mask_t=jnp.tile(mask, (1, H)),                              # [S, H*S]
            # ---- constant block-diagonal helpers (lane-dense matmuls) ----
            avg_qk=jnp.kron(jnp.eye(H + G, dtype=jnp.float32),
                            jnp.full((D, D), 1.0 / D, jnp.float32)),
            rot_qk=jnp.kron(jnp.eye(H + G, dtype=jnp.float32), _rot_half_matrix(D)),
            cmat=jnp.tile(jnp.eye(S, dtype=jnp.float32), (H, 1)).astype(jnp.bfloat16),
            rmat=jnp.kron(jnp.repeat(jnp.eye(G, dtype=jnp.float32), qpk, axis=1),
                          jnp.eye(D, dtype=jnp.float32)).astype(jnp.bfloat16),
            mbd=jnp.kron(jnp.eye(H, dtype=jnp.float32),
                         jnp.ones((S, D), jnp.float32)),
        ))
    return dict(embedding=emb.astype(jnp.bfloat16),   # tied embed / lm_head weight
                blocks=blocks,
                final_norm=jnp.ones((1, EMBED), jnp.float32))


# ----------------------------- main -------------------------------------------
if __name__ == "__main__":
    key = jax.random.PRNGKey(0)
    pkey, tkey = jax.random.split(key)
    params = init_params(pkey)

    B, T = 2, 8
    tokens = jax.random.randint(tkey, (B, T), 0, VOCAB, dtype=jnp.int32)
    input_pos = jnp.arange(T, dtype=jnp.int32)
    # KV cache stored lane-dense as [B, kv_cache_max, num_groups * head_dim].
    kv_cache = tuple(
        (jnp.zeros((B, KV_MAX, NUM_GROUPS[i] * HEAD_DIM), jnp.float32),
         jnp.zeros((B, KV_MAX, NUM_GROUPS[i] * HEAD_DIM), jnp.float32))
        for i in range(NUM_LAYERS))

    fwd = jax.jit(openelm_forward)
    out = fwd(params, tokens, input_pos, kv_cache)
    jax.block_until_ready(out)

    assert out["logits"].shape == (B, T, VOCAB)
    assert len(out["kv_cache"]) == NUM_LAYERS
    for i in range(NUM_LAYERS):
        assert out["kv_cache"][i][0].shape == (B, KV_MAX, NUM_GROUPS[i] * HEAD_DIM)
        assert out["kv_cache"][i][1].shape == (B, KV_MAX, NUM_GROUPS[i] * HEAD_DIM)
    assert bool(jnp.all(jnp.isfinite(out["logits"])))
    print("KERNEL_OK")
</pallas_src>

<mosaic_0001>
module attributes {stable_mosaic.version = 11 : i64} {
  func.func @_openelm_kernel(%arg0: i32, %arg1: memref<8xi32, #tpu.memory_space<smem>>, %arg2: memref<1x8x1xi32, #tpu.memory_space<vmem>>, %arg3: memref<128x32xbf16, #tpu.memory_space<vmem>>, %arg4: memref<1x32xf32, #tpu.memory_space<vmem>>, %arg5: memref<1x16x16xf32, #tpu.memory_space<vmem>>, %arg6: memref<1x16x16xf32, #tpu.memory_space<vmem>>, %arg7: memref<1x32xf32, #tpu.memory_space<vmem>>, %arg8: memref<1x48xf32, #tpu.memory_space<vmem>>, %arg9: memref<1x32xf32, #tpu.memory_space<vmem>>, %arg10: memref<16x48xf32, #tpu.memory_space<vmem>>, %arg11: memref<16x48xf32, #tpu.memory_space<vmem>>, %arg12: memref<16x64xf32, #tpu.memory_space<vmem>>, %arg13: memref<32x64xbf16, #tpu.memory_space<vmem>>, %arg14: memref<48x48xf32, #tpu.memory_space<vmem>>, %arg15: memref<48x48xf32, #tpu.memory_space<vmem>>, %arg16: memref<64x16xbf16, #tpu.memory_space<vmem>>, %arg17: memref<16x32xbf16, #tpu.memory_space<vmem>>, %arg18: memref<64x32xf32, #tpu.memory_space<vmem>>, %arg19: memref<32x32xbf16, #tpu.memory_space<vmem>>, %arg20: memref<32x64xbf16, #tpu.memory_space<vmem>>, %arg21: memref<32x32xbf16, #tpu.memory_space<vmem>>, %arg22: memref<1x16x32xf32, #tpu.memory_space<vmem>>, %arg23: memref<1x16x32xf32, #tpu.memory_space<vmem>>, %arg24: memref<1x32xf32, #tpu.memory_space<vmem>>, %arg25: memref<1x96xf32, #tpu.memory_space<vmem>>, %arg26: memref<1x32xf32, #tpu.memory_space<vmem>>, %arg27: memref<16x96xf32, #tpu.memory_space<vmem>>, %arg28: memref<16x96xf32, #tpu.memory_space<vmem>>, %arg29: memref<16x128xf32, #tpu.memory_space<vmem>>, %arg30: memref<32x128xbf16, #tpu.memory_space<vmem>>, %arg31: memref<96x96xf32, #tpu.memory_space<vmem>>, %arg32: memref<96x96xf32, #tpu.memory_space<vmem>>, %arg33: memref<128x16xbf16, #tpu.memory_space<vmem>>, %arg34: memref<32x64xbf16, #tpu.memory_space<vmem>>, %arg35: memref<128x64xf32, #tpu.memory_space<vmem>>, %arg36: memref<64x32xbf16, #tpu.memory_space<vmem>>, %arg37: memref<32x96xbf16, #tpu.memory_space<vmem>>, %arg38: memref<48x32xbf16, #tpu.memory_space<vmem>>, %arg39: memref<1x8x128xf32, #tpu.memory_space<vmem>>, %arg40: memref<1x16x16xf32, #tpu.memory_space<vmem>>, %arg41: memref<1x16x16xf32, #tpu.memory_space<vmem>>, %arg42: memref<1x16x32xf32, #tpu.memory_space<vmem>>, %arg43: memref<1x16x32xf32, #tpu.memory_space<vmem>>) attributes {dimension_semantics = [#tpu.dimension_semantics<parallel>], iteration_bounds = array<i64: 2>, scalar_prefetch = 0 : i64, scratch_operands = 0 : i64, tpu.core_type = #tpu.core_type<tc>, window_params = [{transform_indices = @transform_0, window_bounds = array<i64: 8>}, {transform_indices = @transform_1, window_bounds = array<i64: 1, 8, 1>}, {pipeline_mode = #tpu.pipeline_mode<synchronous>, transform_indices = @transform_2, window_bounds = array<i64: 128, 32>}, {pipeline_mode = #tpu.pipeline_mode<synchronous>, transform_indices = @transform_3, window_bounds = array<i64: 1, 32>}, {transform_indices = @transform_4, window_bounds = array<i64: 1, 16, 16>}, {transform_indices = @transform_5, window_bounds = array<i64: 1, 16, 16>}, {pipeline_mode = #tpu.pipeline_mode<synchronous>, transform_indices = @transform_6, window_bounds = array<i64: 1, 32>}, {pipeline_mode = #tpu.pipeline_mode<synchronous>, transform_indices = @transform_7, window_bounds = array<i64: 1, 48>}, {pipeline_mode = #tpu.pipeline_mode<synchronous>, transform_indices = @transform_8, window_bounds = array<i64: 1, 32>}, {pipeline_mode = #tpu.pipeline_mode<synchronous>, transform_indices = @transform_9, window_bounds = array<i64: 16, 48>}, {pipeline_mode = #tpu.pipeline_mode<synchronous>, transform_indices = @transform_10, window_bounds = array<i64: 16, 48>}, {pipeline_mode = #tpu.pipeline_mode<synchronous>, transform_indices = @transform_11, window_bounds = array<i64: 16, 64>}, {pipeline_mode = #tpu.pipeline_mode<synchronous>, transform_indices = @transform_12, window_bounds = array<i64: 32, 64>}, {pipeline_mode = #tpu.pipeline_mode<synchronous>, transform_indices = @transform_13, window_bounds = array<i64: 48, 48>}, {pipeline_mode = #tpu.pipeline_mode<synchronous>, transform_indices = @transform_14, window_bounds = array<i64: 48, 48>}, {pipeline_mode = #tpu.pipeline_mode<synchronous>, transform_indices = @transform_15, window_bounds = array<i64: 64, 16>}, {pipeline_mode = #tpu.pipeline_mode<synchronous>, transform_indices = @transform_16, window_bounds = array<i64: 16, 32>}, {pipeline_mode = #tpu.pipeline_mode<synchronous>, transform_indices = @transform_17, window_bounds = array<i64: 64, 32>}, {pipeline_mode = #tpu.pipeline_mode<synchronous>, transform_indices = @transform_18, window_bounds = array<i64: 32, 32>}, {pipeline_mode = #tpu.pipeline_mode<synchronous>, transform_indices = @transform_19, window_bounds = array<i64: 32, 64>}, {pipeline_mode = #tpu.pipeline_mode<synchronous>, transform_indices = @transform_20, window_bounds = array<i64: 32, 32>}, {transform_indices = @transform_21, window_bounds = array<i64: 1, 16, 32>}, {transform_indices = @transform_22, window_bounds = array<i64: 1, 16, 32>}, {pipeline_mode = #tpu.pipeline_mode<synchronous>, transform_indices = @transform_23, window_bounds = array<i64: 1, 32>}, {pipeline_mode = #tpu.pipeline_mode<synchronous>, transform_indices = @transform_24, window_bounds = array<i64: 1, 96>}, {pipeline_mode = #tpu.pipeline_mode<synchronous>, transform_indices = @transform_25, window_bounds = array<i64: 1, 32>}, {pipeline_mode = #tpu.pipeline_mode<synchronous>, transform_indices = @transform_26, window_bounds = array<i64: 16, 96>}, {pipeline_mode = #tpu.pipeline_mode<synchronous>, transform_indices = @transform_27, window_bounds = array<i64: 16, 96>}, {pipeline_mode = #tpu.pipeline_mode<synchronous>, transform_indices = @transform_28, window_bounds = array<i64: 16, 128>}, {pipeline_mode = #tpu.pipeline_mode<synchronous>, transform_indices = @transform_29, window_bounds = array<i64: 32, 128>}, {pipeline_mode = #tpu.pipeline_mode<synchronous>, transform_indices = @transform_30, window_bounds = array<i64: 96, 96>}, {pipeline_mode = #tpu.pipeline_mode<synchronous>, transform_indices = @transform_31, window_bounds = array<i64: 96, 96>}, {pipeline_mode = #tpu.pipeline_mode<synchronous>, transform_indices = @transform_32, window_bounds = array<i64: 128, 16>}, {pipeline_mode = #tpu.pipeline_mode<synchronous>, transform_indices = @transform_33, window_bounds = array<i64: 32, 64>}, {pipeline_mode = #tpu.pipeline_mode<synchronous>, transform_indices = @transform_34, window_bounds = array<i64: 128, 64>}, {pipeline_mode = #tpu.pipeline_mode<synchronous>, transform_indices = @transform_35, window_bounds = array<i64: 64, 32>}, {pipeline_mode = #tpu.pipeline_mode<synchronous>, transform_indices = @transform_36, window_bounds = array<i64: 32, 96>}, {pipeline_mode = #tpu.pipeline_mode<synchronous>, transform_indices = @transform_37, window_bounds = array<i64: 48, 32>}, {transform_indices = @transform_38, window_bounds = array<i64: 1, 8, 128>}, {transform_indices = @transform_39, window_bounds = array<i64: 1, 16, 16>}, {transform_indices = @transform_40, window_bounds = array<i64: 1, 16, 16>}, {transform_indices = @transform_41, window_bounds = array<i64: 1, 16, 32>}, {transform_indices = @transform_42, window_bounds = array<i64: 1, 16, 32>}]} {
    %c0 = arith.constant 0 : index
    %0 = memref.load %arg1[%c0] : memref<8xi32, #tpu.memory_space<smem>>
    %1 = tpu.iota {dimensions = array<i32: 1>} : vector<8x128xi32>
    %c0_0 = arith.constant 0 : index
    %c0_1 = arith.constant 0 : index
    %c0_2 = arith.constant 0 : index
    %2 = vector.load %arg2[%c0_0, %c0_1, %c0_2] : memref<1x8x1xi32, #tpu.memory_space<vmem>>, vector<1x8x1xi32>
    %3 = vector.shape_cast %2 : vector<1x8x1xi32> to vector<8x1xi32>
    %4 = vector.broadcast %3 : vector<8x1xi32> to vector<8x128xi32>
    %5 = arith.cmpi eq, %1, %4 : vector<8x128xi32>
    %cst = arith.constant 1.000000e+00 : f32
    %cst_3 = arith.constant 0.000000e+00 : f32
    %6 = vector.broadcast %cst : f32 to vector<8x128xf32>
    %7 = vector.broadcast %cst_3 : f32 to vector<8x128xf32>
    %8 = arith.select %5, %6, %7 : vector<8x128xi1>, vector<8x128xf32>
    %c0_4 = arith.constant 0 : index
    %c0_5 = arith.constant 0 : index
    %9 = vector.load %arg3[%c0_4, %c0_5] : memref<128x32xbf16, #tpu.memory_space<vmem>>, vector<128x32xbf16>
    %10 = arith.truncf %8 : vector<8x128xf32> to vector<8x128xbf16>
    %cst_6 = arith.constant dense<0.000000e+00> : vector<8x32xf32>
    %11 = tpu.matmul %10, %9, %cst_6 {dimension_numbers = #tpu.dot_dimension_numbers<[1], [0], [0], [1], [0, 0, 1, 1], [], []>} : vector<8x128xbf16>, vector<128x32xbf16>, vector<8x32xf32> -> vector<8x32xf32>
    %12 = arith.mulf %11, %11 : vector<8x32xf32>
    %cst_7 = arith.constant dense<0.000000e+00> : vector<8xf32>
    %13 = vector.multi_reduction <add>, %12, %cst_7 [1] : vector<8x32xf32> to vector<8xf32>
    %14 = vector.shape_cast %13 : vector<8xf32> to vector<8x1xf32>
    %cst_8 = arith.constant 3.200000e+01 : f32
    %15 = vector.broadcast %cst_8 : f32 to vector<8x1xf32>
    %16 = arith.divf %14, %15 : vector<8x1xf32>
    %cst_9 = arith.constant 9.99999997E-7 : f32
    %17 = vector.broadcast %cst_9 : f32 to vector<8x1xf32>
    %18 = arith.addf %16, %17 : vector<8x1xf32>
    %19 = math.rsqrt %18 : vector<8x1xf32>
    %20 = vector.broadcast %19 : vector<8x1xf32> to vector<8x32xf32>
    %21 = arith.mulf %11, %20 : vector<8x32xf32>
    %c0_10 = arith.constant 0 : index
    %c0_11 = arith.constant 0 : index
    %22 = vector.load %arg7[%c0_10, %c0_11] : memref<1x32xf32, #tpu.memory_space<vmem>>, vector<1x32xf32>
    %23 = vector.broadcast %22 : vector<1x32xf32> to vector<8x32xf32>
    %24 = arith.mulf %21, %23 : vector<8x32xf32>
    %c0_12 = arith.constant 0 : index
    %c0_13 = arith.constant 0 : index
    %25 = vector.load %arg13[%c0_12, %c0_13] : memref<32x64xbf16, #tpu.memory_space<vmem>>, vector<32x64xbf16>
    %26 = arith.truncf %24 : vector<8x32xf32> to vector<8x32xbf16>
    %cst_14 = arith.constant dense<0.000000e+00> : vector<8x64xf32>
    %27 = tpu.matmul %26, %25, %cst_14 {dimension_numbers = #tpu.dot_dimension_numbers<[1], [0], [0], [1], [0, 0, 1, 1], [], []>} : vector<8x32xbf16>, vector<32x64xbf16>, vector<8x64xf32> -> vector<8x64xf32>
    %28 = vector.extract_strided_slice %27 {offsets = [0, 0], sizes = [8, 48], strides = [1, 1]} : vector<8x64xf32> to vector<8x48xf32>
    %29 = arith.mulf %28, %28 : vector<8x48xf32>
    %c0_15 = arith.constant 0 : index
    %c0_16 = arith.constant 0 : index
    %30 = vector.load %arg14[%c0_15, %c0_16] : memref<48x48xf32, #tpu.memory_space<vmem>>, vector<48x48xf32>
    %cst_17 = arith.constant dense<0.000000e+00> : vector<8x48xf32>
    %31 = tpu.matmul %29, %30, %cst_17 {dimension_numbers = #tpu.dot_dimension_numbers<[1], [0], [0], [1], [0, 0, 1, 1], [], []>} : vector<8x48xf32>, vector<48x48xf32>, vector<8x48xf32> -> vector<8x48xf32>
    %cst_18 = arith.constant 9.99999997E-7 : f32
    %32 = vector.broadcast %cst_18 : f32 to vector<8x48xf32>
    %33 = arith.addf %31, %32 : vector<8x48xf32>
    %34 = math.rsqrt %33 : vector<8x48xf32>
    %35 = arith.mulf %28, %34 : vector<8x48xf32>
    %c0_19 = arith.constant 0 : index
    %c0_20 = arith.constant 0 : index
    %36 = vector.load %arg8[%c0_19, %c0_20] : memref<1x48xf32, #tpu.memory_space<vmem>>, vector<1x48xf32>
    %37 = vector.broadcast %36 : vector<1x48xf32> to vector<8x48xf32>
    %38 = arith.mulf %35, %37 : vector<8x48xf32>
    %39 = arith.index_cast %0 : i32 to index
    %c0_21 = arith.constant 0 : index
    %40 = vector.load %arg10[%39, %c0_21] : memref<16x48xf32, #tpu.memory_space<vmem>>, vector<8x48xf32>
    %41 = arith.index_cast %0 : i32 to index
    %c0_22 = arith.constant 0 : index
    %42 = vector.load %arg11[%41, %c0_22] : memref<16x48xf32, #tpu.memory_space<vmem>>, vector<8x48xf32>
    %43 = arith.mulf %38, %40 : vector<8x48xf32>
    %c0_23 = arith.constant 0 : index
    %c0_24 = arith.constant 0 : index
    %44 = vector.load %arg15[%c0_23, %c0_24] : memref<48x48xf32, #tpu.memory_space<vmem>>, vector<48x48xf32>
    %cst_25 = arith.constant dense<0.000000e+00> : vector<8x48xf32>
    %45 = tpu.matmul %38, %44, %cst_25 {dimension_numbers = #tpu.dot_dimension_numbers<[1], [0], [0], [1], [0, 0, 1, 1], [], []>} : vector<8x48xf32>, vector<48x48xf32>, vector<8x48xf32> -> vector<8x48xf32>
    %46 = arith.mulf %45, %42 : vector<8x48xf32>
    %47 = arith.addf %43, %46 : vector<8x48xf32>
    %48 = vector.extract_strided_slice %47 {offsets = [0, 0], sizes = [8, 32], strides = [1, 1]} : vector<8x48xf32> to vector<8x32xf32>
    %49 = vector.extract_strided_slice %47 {offsets = [0, 32], sizes = [8, 16], strides = [1, 1]} : vector<8x48xf32> to vector<8x16xf32>
    %50 = vector.extract_strided_slice %27 {offsets = [0, 48], sizes = [8, 16], strides = [1, 1]} : vector<8x64xf32> to vector<8x16xf32>
    %c0_26 = arith.constant 0 : index
    %c0_27 = arith.constant 0 : index
    %c0_28 = arith.constant 0 : index
    %51 = vector.load %arg5[%c0_26, %c0_27, %c0_28] : memref<1x16x16xf32, #tpu.memory_space<vmem>>, vector<1x16x16xf32>
    %52 = vector.shape_cast %51 : vector<1x16x16xf32> to vector<16x16xf32>
    %c0_29 = arith.constant 0 : index
    %c0_30 = arith.constant 0 : index
    %c0_31 = arith.constant 0 : index
    %53 = vector.load %arg40[%c0_29, %c0_30, %c0_31] : memref<1x16x16xf32, #tpu.memory_space<vmem>>, vector<1x16x16xf32>
    %54 = vector.shape_cast %53 : vector<1x16x16xf32> to vector<16x16xf32>
    %55 = vector.shape_cast %52 : vector<16x16xf32> to vector<1x16x16xf32>
    tpu.vector_store %arg40[%c0_29, %c0_30, %c0_31], %55 {strides = array<i32>} : memref<1x16x16xf32, #tpu.memory_space<vmem>>, vector<1x16x16xf32>,
    %c0_32 = arith.constant 0 : index
    %c0_33 = arith.constant 0 : index
    %c0_34 = arith.constant 0 : index
    %56 = vector.load %arg6[%c0_32, %c0_33, %c0_34] : memref<1x16x16xf32, #tpu.memory_space<vmem>>, vector<1x16x16xf32>
    %57 = vector.shape_cast %56 : vector<1x16x16xf32> to vector<16x16xf32>
    %c0_35 = arith.constant 0 : index
    %c0_36 = arith.constant 0 : index
    %c0_37 = arith.constant 0 : index
    %58 = vector.load %arg41[%c0_35, %c0_36, %c0_37] : memref<1x16x16xf32, #tpu.memory_space<vmem>>, vector<1x16x16xf32>
    %59 = vector.shape_cast %58 : vector<1x16x16xf32> to vector<16x16xf32>
    %60 = vector.shape_cast %57 : vector<16x16xf32> to vector<1x16x16xf32>
    tpu.vector_store %arg41[%c0_35, %c0_36, %c0_37], %60 {strides = array<i32>} : memref<1x16x16xf32, #tpu.memory_space<vmem>>, vector<1x16x16xf32>,
    %c0_38 = arith.constant 0 : index
    %61 = arith.index_cast %0 : i32 to index
    %c0_39 = arith.constant 0 : index
    %62 = vector.load %arg40[%c0_38, %61, %c0_39] : memref<1x16x16xf32, #tpu.memory_space<vmem>>, vector<1x8x16xf32>
    %63 = vector.shape_cast %62 : vector<1x8x16xf32> to vector<8x16xf32>
    %64 = vector.shape_cast %49 : vector<8x16xf32> to vector<1x8x16xf32>
    tpu.vector_store %arg40[%c0_38, %61, %c0_39], %64 {strides = array<i32>} : memref<1x16x16xf32, #tpu.memory_space<vmem>>, vector<1x8x16xf32>,
    %c0_40 = arith.constant 0 : index
    %65 = arith.index_cast %0 : i32 to index
    %c0_41 = arith.constant 0 : index
    %66 = vector.load %arg41[%c0_40, %65, %c0_41] : memref<1x16x16xf32, #tpu.memory_space<vmem>>, vector<1x8x16xf32>
    %67 = vector.shape_cast %66 : vector<1x8x16xf32> to vector<8x16xf32>
    %68 = vector.shape_cast %50 : vector<8x16xf32> to vector<1x8x16xf32>
    tpu.vector_store %arg41[%c0_40, %65, %c0_41], %68 {strides = array<i32>} : memref<1x16x16xf32, #tpu.memory_space<vmem>>, vector<1x8x16xf32>,
    %c0_42 = arith.constant 0 : index
    %c0_43 = arith.constant 0 : index
    %c0_44 = arith.constant 0 : index
    %69 = vector.load %arg40[%c0_42, %c0_43, %c0_44] : memref<1x16x16xf32, #tpu.memory_space<vmem>>, vector<1x16x16xf32>
    %70 = vector.shape_cast %69 : vector<1x16x16xf32> to vector<16x16xf32>
    %c0_45 = arith.constant 0 : index
    %c0_46 = arith.constant 0 : index
    %c0_47 = arith.constant 0 : index
    %71 = vector.load %arg41[%c0_45, %c0_46, %c0_47] : memref<1x16x16xf32, #tpu.memory_space<vmem>>, vector<1x16x16xf32>
    %72 = vector.shape_cast %71 : vector<1x16x16xf32> to vector<16x16xf32>
    %c0_48 = arith.constant 0 : index
    %c0_49 = arith.constant 0 : index
    %73 = vector.load %arg16[%c0_48, %c0_49] : memref<64x16xbf16, #tpu.memory_space<vmem>>, vector<64x16xbf16>
    %74 = arith.truncf %70 : vector<16x16xf32> to vector<16x16xbf16>
    %cst_50 = arith.constant dense<0.000000e+00> : vector<64x16xf32>
    %75 = tpu.matmul %73, %74, %cst_50 {dimension_numbers = #tpu.dot_dimension_numbers<[1], [0], [0], [1], [0, 0, 1, 1], [], []>} : vector<64x16xbf16>, vector<16x16xbf16>, vector<64x16xf32> -> vector<64x16xf32>
    %c0_51 = arith.constant 0 : index
    %c0_52 = arith.constant 0 : index
    %76 = vector.load %arg17[%c0_51, %c0_52] : memref<16x32xbf16, #tpu.memory_space<vmem>>, vector<16x32xbf16>
    %77 = arith.truncf %75 : vector<64x16xf32> to vector<64x16xbf16>
    %cst_53 = arith.constant dense<0.000000e+00> : vector<64x32xf32>
    %78 = tpu.matmul %77, %76, %cst_53 {dimension_numbers = #tpu.dot_dimension_numbers<[1], [0], [0], [1], [0, 0, 1, 1], [], []>} : vector<64x16xbf16>, vector<16x32xbf16>, vector<64x32xf32> -> vector<64x32xf32>
    %c0_54 = arith.constant 0 : index
    %c0_55 = arith.constant 0 : index
    %79 = vector.load %arg18[%c0_54, %c0_55] : memref<64x32xf32, #tpu.memory_space<vmem>>, vector<64x32xf32>
    %80 = arith.mulf %78, %79 : vector<64x32xf32>
    %c0_56 = arith.constant 0 : index
    %c0_57 = arith.constant 0 : index
    %81 = vector.load %arg16[%c0_56, %c0_57] : memref<64x16xbf16, #tpu.memory_space<vmem>>, vector<64x16xbf16>
    %82 = arith.truncf %72 : vector<16x16xf32> to vector<16x16xbf16>
    %cst_58 = arith.constant dense<0.000000e+00> : vector<64x16xf32>
    %83 = tpu.matmul %81, %82, %cst_58 {dimension_numbers = #tpu.dot_dimension_numbers<[1], [0], [0], [1], [0, 0, 1, 1], [], []>} : vector<64x16xbf16>, vector<16x16xbf16>, vector<64x16xf32> -> vector<64x16xf32>
    %c0_59 = arith.constant 0 : index
    %c0_60 = arith.constant 0 : index
    %84 = vector.load %arg17[%c0_59, %c0_60] : memref<16x32xbf16, #tpu.memory_space<vmem>>, vector<16x32xbf16>
    %85 = arith.truncf %83 : vector<64x16xf32> to vector<64x16xbf16>
    %cst_61 = arith.constant dense<0.000000e+00> : vector<64x32xf32>
    %86 = tpu.matmul %85, %84, %cst_61 {dimension_numbers = #tpu.dot_dimension_numbers<[1], [0], [0], [1], [0, 0, 1, 1], [], []>} : vector<64x16xbf16>, vector<16x32xbf16>, vector<64x32xf32> -> vector<64x32xf32>
    %c0_62 = arith.constant 0 : index
    %c0_63 = arith.constant 0 : index
    %87 = vector.load %arg18[%c0_62, %c0_63] : memref<64x32xf32, #tpu.memory_space<vmem>>, vector<64x32xf32>
    %88 = arith.mulf %86, %87 : vector<64x32xf32>
    %89 = arith.truncf %48 : vector<8x32xf32> to vector<8x32xbf16>
    %90 = arith.truncf %80 : vector<64x32xf32> to vector<64x32xbf16>
    %cst_64 = arith.constant dense<0.000000e+00> : vector<8x64xf32>
    %91 = tpu.matmul %89, %90, %cst_64 {dimension_numbers = #tpu.dot_dimension_numbers<[1], [1], [0], [0], [0, 0, 1, 0], [], []>} : vector<8x32xbf16>, vector<64x32xbf16>, vector<8x64xf32> -> vector<8x64xf32>
    %92 = arith.index_cast %0 : i32 to index
    %c0_65 = arith.constant 0 : index
    %93 = vector.load %arg12[%92, %c0_65] : memref<16x64xf32, #tpu.memory_space<vmem>>, vector<8x64xf32>
    %94 = arith.addf %91, %93 : vector<8x64xf32>
    %cst_66 = arith.constant dense<0xFF800000> : vector<8xf32>
    %95 = vector.multi_reduction <maximumf>, %94, %cst_66 [1] : vector<8x64xf32> to vector<8xf32>
    %96 = vector.shape_cast %95 : vector<8xf32> to vector<8x1xf32>
    %97 = vector.broadcast %96 : vector<8x1xf32> to vector<8x64xf32>
    %98 = arith.subf %94, %97 : vector<8x64xf32>
    %99 = math.exp %98 : vector<8x64xf32>
    %c0_67 = arith.constant 0 : index
    %c0_68 = arith.constant 0 : index
    %100 = vector.load %arg18[%c0_67, %c0_68] : memref<64x32xf32, #tpu.memory_space<vmem>>, vector<64x32xf32>
    %cst_69 = arith.constant dense<0.000000e+00> : vector<8x32xf32>
    %101 = tpu.matmul %99, %100, %cst_69 {dimension_numbers = #tpu.dot_dimension_numbers<[1], [0], [0], [1], [0, 0, 1, 1], [], []>} : vector<8x64xf32>, vector<64x32xf32>, vector<8x32xf32> -> vector<8x32xf32>
    %102 = arith.truncf %99 : vector<8x64xf32> to vector<8x64xbf16>
    %103 = arith.truncf %88 : vector<64x32xf32> to vector<64x32xbf16>
    %cst_70 = arith.constant dense<0.000000e+00> : vector<8x32xf32>
    %104 = tpu.matmul %102, %103, %cst_70 {dimension_numbers = #tpu.dot_dimension_numbers<[1], [0], [0], [1], [0, 0, 1, 1], [], []>} : vector<8x64xbf16>, vector<64x32xbf16>, vector<8x32xf32> -> vector<8x32xf32>
    %105 = tpu.reciprocal %101 {approx = true} : vector<8x32xf32> -> vector<8x32xf32>
    %106 = arith.mulf %104, %105 : vector<8x32xf32>
    %c0_71 = arith.constant 0 : index
    %c0_72 = arith.constant 0 : index
    %107 = vector.load %arg19[%c0_71, %c0_72] : memref<32x32xbf16, #tpu.memory_space<vmem>>, vector<32x32xbf16>
    %108 = arith.truncf %106 : vector<8x32xf32> to vector<8x32xbf16>
    %cst_73 = arith.constant dense<0.000000e+00> : vector<8x32xf32>
    %109 = tpu.matmul %108, %107, %cst_73 {dimension_numbers = #tpu.dot_dimension_numbers<[1], [0], [0], [1], [0, 0, 1, 1], [], []>} : vector<8x32xbf16>, vector<32x32xbf16>, vector<8x32xf32> -> vector<8x32xf32>
    %110 = arith.addf %11, %109 : vector<8x32xf32>
    %111 = arith.mulf %110, %110 : vector<8x32xf32>
    %cst_74 = arith.constant dense<0.000000e+00> : vector<8xf32>
    %112 = vector.multi_reduction <add>, %111, %cst_74 [1] : vector<8x32xf32> to vector<8xf32>
    %113 = vector.shape_cast %112 : vector<8xf32> to vector<8x1xf32>
    %cst_75 = arith.constant 3.200000e+01 : f32
    %114 = vector.broadcast %cst_75 : f32 to vector<8x1xf32>
    %115 = arith.divf %113, %114 : vector<8x1xf32>
    %cst_76 = arith.constant 9.99999997E-7 : f32
    %116 = vector.broadcast %cst_76 : f32 to vector<8x1xf32>
    %117 = arith.addf %115, %116 : vector<8x1xf32>
    %118 = math.rsqrt %117 : vector<8x1xf32>
    %119 = vector.broadcast %118 : vector<8x1xf32> to vector<8x32xf32>
    %120 = arith.mulf %110, %119 : vector<8x32xf32>
    %c0_77 = arith.constant 0 : index
    %c0_78 = arith.constant 0 : index
    %121 = vector.load %arg9[%c0_77, %c0_78] : memref<1x32xf32, #tpu.memory_space<vmem>>, vector<1x32xf32>
    %122 = vector.broadcast %121 : vector<1x32xf32> to vector<8x32xf32>
    %123 = arith.mulf %120, %122 : vector<8x32xf32>
    %c0_79 = arith.constant 0 : index
    %c0_80 = arith.constant 0 : index
    %124 = vector.load %arg20[%c0_79, %c0_80] : memref<32x64xbf16, #tpu.memory_space<vmem>>, vector<32x64xbf16>
    %125 = arith.truncf %123 : vector<8x32xf32> to vector<8x32xbf16>
    %cst_81 = arith.constant dense<0.000000e+00> : vector<8x64xf32>
    %126 = tpu.matmul %125, %124, %cst_81 {dimension_numbers = #tpu.dot_dimension_numbers<[1], [0], [0], [1], [0, 0, 1, 1], [], []>} : vector<8x32xbf16>, vector<32x64xbf16>, vector<8x64xf32> -> vector<8x64xf32>
    %127 = vector.extract_strided_slice %126 {offsets = [0, 0], sizes = [8, 32], strides = [1, 1]} : vector<8x64xf32> to vector<8x32xf32>
    %128 = vector.extract_strided_slice %126 {offsets = [0, 32], sizes = [8, 32], strides = [1, 1]} : vector<8x64xf32> to vector<8x32xf32>
    %129 = arith.negf %127 : vector<8x32xf32>
    %130 = math.exp %129 : vector<8x32xf32>
    %cst_82 = arith.constant 1.000000e+00 : f32
    %131 = vector.broadcast %cst_82 : f32 to vector<8x32xf32>
    %132 = arith.addf %131, %130 : vector<8x32xf32>
    %133 = arith.divf %131, %132 : vector<8x32xf32>
    %134 = arith.mulf %127, %133 : vector<8x32xf32>
    %135 = arith.mulf %134, %128 : vector<8x32xf32>
    %c0_83 = arith.constant 0 : index
    %c0_84 = arith.constant 0 : index
    %136 = vector.load %arg21[%c0_83, %c0_84] : memref<32x32xbf16, #tpu.memory_space<vmem>>, vector<32x32xbf16>
    %137 = arith.truncf %135 : vector<8x32xf32> to vector<8x32xbf16>
    %cst_85 = arith.constant dense<0.000000e+00> : vector<8x32xf32>
    %138 = tpu.matmul %137, %136, %cst_85 {dimension_numbers = #tpu.dot_dimension_numbers<[1], [0], [0], [1], [0, 0, 1, 1], [], []>} : vector<8x32xbf16>, vector<32x32xbf16>, vector<8x32xf32> -> vector<8x32xf32>
    %139 = arith.addf %110, %138 : vector<8x32xf32>
    %140 = arith.mulf %139, %139 : vector<8x32xf32>
    %cst_86 = arith.constant dense<0.000000e+00> : vector<8xf32>
    %141 = vector.multi_reduction <add>, %140, %cst_86 [1] : vector<8x32xf32> to vector<8xf32>
    %142 = vector.shape_cast %141 : vector<8xf32> to vector<8x1xf32>
    %cst_87 = arith.constant 3.200000e+01 : f32
    %143 = vector.broadcast %cst_87 : f32 to vector<8x1xf32>
    %144 = arith.divf %142, %143 : vector<8x1xf32>
    %cst_88 = arith.constant 9.99999997E-7 : f32
    %145 = vector.broadcast %cst_88 : f32 to vector<8x1xf32>
    %146 = arith.addf %144, %145 : vector<8x1xf32>
    %147 = math.rsqrt %146 : vector<8x1xf32>
    %148 = vector.broadcast %147 : vector<8x1xf32> to vector<8x32xf32>
    %149 = arith.mulf %139, %148 : vector<8x32xf32>
    %c0_89 = arith.constant 0 : index
    %c0_90 = arith.constant 0 : index
    %150 = vector.load %arg24[%c0_89, %c0_90] : memref<1x32xf32, #tpu.memory_space<vmem>>, vector<1x32xf32>
    %151 = vector.broadcast %150 : vector<1x32xf32> to vector<8x32xf32>
    %152 = arith.mulf %149, %151 : vector<8x32xf32>
    %c0_91 = arith.constant 0 : index
    %c0_92 = arith.constant 0 : index
    %153 = vector.load %arg30[%c0_91, %c0_92] : memref<32x128xbf16, #tpu.memory_space<vmem>>, vector<32x128xbf16>
    %154 = arith.truncf %152 : vector<8x32xf32> to vector<8x32xbf16>
    %cst_93 = arith.constant dense<0.000000e+00> : vector<8x128xf32>
    %155 = tpu.matmul %154, %153, %cst_93 {dimension_numbers = #tpu.dot_dimension_numbers<[1], [0], [0], [1], [0, 0, 1, 1], [], []>} : vector<8x32xbf16>, vector<32x128xbf16>, vector<8x128xf32> -> vector<8x128xf32>
    %156 = vector.extract_strided_slice %155 {offsets = [0, 0], sizes = [8, 96], strides = [1, 1]} : vector<8x128xf32> to vector<8x96xf32>
    %157 = arith.mulf %156, %156 : vector<8x96xf32>
    %c0_94 = arith.constant 0 : index
    %c0_95 = arith.constant 0 : index
    %158 = vector.load %arg31[%c0_94, %c0_95] : memref<96x96xf32, #tpu.memory_space<vmem>>, vector<96x96xf32>
    %cst_96 = arith.constant dense<0.000000e+00> : vector<8x96xf32>
    %159 = tpu.matmul %157, %158, %cst_96 {dimension_numbers = #tpu.dot_dimension_numbers<[1], [0], [0], [1], [0, 0, 1, 1], [], []>} : vector<8x96xf32>, vector<96x96xf32>, vector<8x96xf32> -> vector<8x96xf32>
    %cst_97 = arith.constant 9.99999997E-7 : f32
    %160 = vector.broadcast %cst_97 : f32 to vector<8x96xf32>
    %161 = arith.addf %159, %160 : vector<8x96xf32>
    %162 = math.rsqrt %161 : vector<8x96xf32>
    %163 = arith.mulf %156, %162 : vector<8x96xf32>
    %c0_98 = arith.constant 0 : index
    %c0_99 = arith.constant 0 : index
    %164 = vector.load %arg25[%c0_98, %c0_99] : memref<1x96xf32, #tpu.memory_space<vmem>>, vector<1x96xf32>
    %165 = vector.broadcast %164 : vector<1x96xf32> to vector<8x96xf32>
    %166 = arith.mulf %163, %165 : vector<8x96xf32>
    %167 = arith.index_cast %0 : i32 to index
    %c0_100 = arith.constant 0 : index
    %168 = vector.load %arg27[%167, %c0_100] : memref<16x96xf32, #tpu.memory_space<vmem>>, vector<8x96xf32>
    %169 = arith.index_cast %0 : i32 to index
    %c0_101 = arith.constant 0 : index
    %170 = vector.load %arg28[%169, %c0_101] : memref<16x96xf32, #tpu.memory_space<vmem>>, vector<8x96xf32>
    %171 = arith.mulf %166, %168 : vector<8x96xf32>
    %c0_102 = arith.constant 0 : index
    %c0_103 = arith.constant 0 : index
    %172 = vector.load %arg32[%c0_102, %c0_103] : memref<96x96xf32, #tpu.memory_space<vmem>>, vector<96x96xf32>
    %cst_104 = arith.constant dense<0.000000e+00> : vector<8x96xf32>
    %173 = tpu.matmul %166, %172, %cst_104 {dimension_numbers = #tpu.dot_dimension_numbers<[1], [0], [0], [1], [0, 0, 1, 1], [], []>} : vector<8x96xf32>, vector<96x96xf32>, vector<8x96xf32> -> vector<8x96xf32>
    %174 = arith.mulf %173, %170 : vector<8x96xf32>
    %175 = arith.addf %171, %174 : vector<8x96xf32>
    %176 = vector.extract_strided_slice %175 {offsets = [0, 0], sizes = [8, 64], strides = [1, 1]} : vector<8x96xf32> to vector<8x64xf32>
    %177 = vector.extract_strided_slice %175 {offsets = [0, 64], sizes = [8, 32], strides = [1, 1]} : vector<8x96xf32> to vector<8x32xf32>
    %178 = vector.extract_strided_slice %155 {offsets = [0, 96], sizes = [8, 32], strides = [1, 1]} : vector<8x128xf32> to vector<8x32xf32>
    %c0_105 = arith.constant 0 : index
    %c0_106 = arith.constant 0 : index
    %c0_107 = arith.constant 0 : index
    %179 = vector.load %arg22[%c0_105, %c0_106, %c0_107] : memref<1x16x32xf32, #tpu.memory_space<vmem>>, vector<1x16x32xf32>
    %180 = vector.shape_cast %179 : vector<1x16x32xf32> to vector<16x32xf32>
    %c0_108 = arith.constant 0 : index
    %c0_109 = arith.constant 0 : index
    %c0_110 = arith.constant 0 : index
    %181 = vector.load %arg42[%c0_108, %c0_109, %c0_110] : memref<1x16x32xf32, #tpu.memory_space<vmem>>, vector<1x16x32xf32>
    %182 = vector.shape_cast %181 : vector<1x16x32xf32> to vector<16x32xf32>
    %183 = vector.shape_cast %180 : vector<16x32xf32> to vector<1x16x32xf32>
    tpu.vector_store %arg42[%c0_108, %c0_109, %c0_110], %183 {strides = array<i32>} : memref<1x16x32xf32, #tpu.memory_space<vmem>>, vector<1x16x32xf32>,
    %c0_111 = arith.constant 0 : index
    %c0_112 = arith.constant 0 : index
    %c0_113 = arith.constant 0 : index
    %184 = vector.load %arg23[%c0_111, %c0_112, %c0_113] : memref<1x16x32xf32, #tpu.memory_space<vmem>>, vector<1x16x32xf32>
    %185 = vector.shape_cast %184 : vector<1x16x32xf32> to vector<16x32xf32>
    %c0_114 = arith.constant 0 : index
    %c0_115 = arith.constant 0 : index
    %c0_116 = arith.constant 0 : index
    %186 = vector.load %arg43[%c0_114, %c0_115, %c0_116] : memref<1x16x32xf32, #tpu.memory_space<vmem>>, vector<1x16x32xf32>
    %187 = vector.shape_cast %186 : vector<1x16x32xf32> to vector<16x32xf32>
    %188 = vector.shape_cast %185 : vector<16x32xf32> to vector<1x16x32xf32>
    tpu.vector_store %arg43[%c0_114, %c0_115, %c0_116], %188 {strides = array<i32>} : memref<1x16x32xf32, #tpu.memory_space<vmem>>, vector<1x16x32xf32>,
    %c0_117 = arith.constant 0 : index
    %189 = arith.index_cast %0 : i32 to index
    %c0_118 = arith.constant 0 : index
    %190 = vector.load %arg42[%c0_117, %189, %c0_118] : memref<1x16x32xf32, #tpu.memory_space<vmem>>, vector<1x8x32xf32>
    %191 = vector.shape_cast %190 : vector<1x8x32xf32> to vector<8x32xf32>
    %192 = vector.shape_cast %177 : vector<8x32xf32> to vector<1x8x32xf32>
    tpu.vector_store %arg42[%c0_117, %189, %c0_118], %192 {strides = array<i32>} : memref<1x16x32xf32, #tpu.memory_space<vmem>>, vector<1x8x32xf32>,
    %c0_119 = arith.constant 0 : index
    %193 = arith.index_cast %0 : i32 to index
    %c0_120 = arith.constant 0 : index
    %194 = vector.load %arg43[%c0_119, %193, %c0_120] : memref<1x16x32xf32, #tpu.memory_space<vmem>>, vector<1x8x32xf32>
    %195 = vector.shape_cast %194 : vector<1x8x32xf32> to vector<8x32xf32>
    %196 = vector.shape_cast %178 : vector<8x32xf32> to vector<1x8x32xf32>
    tpu.vector_store %arg43[%c0_119, %193, %c0_120], %196 {strides = array<i32>} : memref<1x16x32xf32, #tpu.memory_space<vmem>>, vector<1x8x32xf32>,
    %c0_121 = arith.constant 0 : index
    %c0_122 = arith.constant 0 : index
    %c0_123 = arith.constant 0 : index
    %197 = vector.load %arg42[%c0_121, %c0_122, %c0_123] : memref<1x16x32xf32, #tpu.memory_space<vmem>>, vector<1x16x32xf32>
    %198 = vector.shape_cast %197 : vector<1x16x32xf32> to vector<16x32xf32>
    %c0_124 = arith.constant 0 : index
    %c0_125 = arith.constant 0 : index
    %c0_126 = arith.constant 0 : index
    %199 = vector.load %arg43[%c0_124, %c0_125, %c0_126] : memref<1x16x32xf32, #tpu.memory_space<vmem>>, vector<1x16x32xf32>
    %200 = vector.shape_cast %199 : vector<1x16x32xf32> to vector<16x32xf32>
    %c0_127 = arith.constant 0 : index
    %c0_128 = arith.constant 0 : index
    %201 = vector.load %arg33[%c0_127, %c0_128] : memref<128x16xbf16, #tpu.memory_space<vmem>>, vector<128x16xbf16>
    %202 = arith.truncf %198 : vector<16x32xf32> to vector<16x32xbf16>
    %cst_129 = arith.constant dense<0.000000e+00> : vector<128x32xf32>
    %203 = tpu.matmul %201, %202, %cst_129 {dimension_numbers = #tpu.dot_dimension_numbers<[1], [0], [0], [1], [0, 0, 1, 1], [], []>} : vector<128x16xbf16>, vector<16x32xbf16>, vector<128x32xf32> -> vector<128x32xf32>
    %c0_130 = arith.constant 0 : index
    %c0_131 = arith.constant 0 : index
    %204 = vector.load %arg34[%c0_130, %c0_131] : memref<32x64xbf16, #tpu.memory_space<vmem>>, vector<32x64xbf16>
    %205 = arith.truncf %203 : vector<128x32xf32> to vector<128x32xbf16>
    %cst_132 = arith.constant dense<0.000000e+00> : vector<128x64xf32>
    %206 = tpu.matmul %205, %204, %cst_132 {dimension_numbers = #tpu.dot_dimension_numbers<[1], [0], [0], [1], [0, 0, 1, 1], [], []>} : vector<128x32xbf16>, vector<32x64xbf16>, vector<128x64xf32> -> vector<128x64xf32>
    %c0_133 = arith.constant 0 : index
    %c0_134 = arith.constant 0 : index
    %207 = vector.load %arg35[%c0_133, %c0_134] : memref<128x64xf32, #tpu.memory_space<vmem>>, vector<128x64xf32>
    %208 = arith.mulf %206, %207 : vector<128x64xf32>
    %c0_135 = arith.constant 0 : index
    %c0_136 = arith.constant 0 : index
    %209 = vector.load %arg33[%c0_135, %c0_136] : memref<128x16xbf16, #tpu.memory_space<vmem>>, vector<128x16xbf16>
    %210 = arith.truncf %200 : vector<16x32xf32> to vector<16x32xbf16>
    %cst_137 = arith.constant dense<0.000000e+00> : vector<128x32xf32>
    %211 = tpu.matmul %209, %210, %cst_137 {dimension_numbers = #tpu.dot_dimension_numbers<[1], [0], [0], [1], [0, 0, 1, 1], [], []>} : vector<128x16xbf16>, vector<16x32xbf16>, vector<128x32xf32> -> vector<128x32xf32>
    %c0_138 = arith.constant 0 : index
    %c0_139 = arith.constant 0 : index
    %212 = vector.load %arg34[%c0_138, %c0_139] : memref<32x64xbf16, #tpu.memory_space<vmem>>, vector<32x64xbf16>
    %213 = arith.truncf %211 : vector<128x32xf32> to vector<128x32xbf16>
    %cst_140 = arith.constant dense<0.000000e+00> : vector<128x64xf32>
    %214 = tpu.matmul %213, %212, %cst_140 {dimension_numbers = #tpu.dot_dimension_numbers<[1], [0], [0], [1], [0, 0, 1, 1], [], []>} : vector<128x32xbf16>, vector<32x64xbf16>, vector<128x64xf32> -> vector<128x64xf32>
    %c0_141 = arith.constant 0 : index
    %c0_142 = arith.constant 0 : index
    %215 = vector.load %arg35[%c0_141, %c0_142] : memref<128x64xf32, #tpu.memory_space<vmem>>, vector<128x64xf32>
    %216 = arith.mulf %214, %215 : vector<128x64xf32>
    %217 = arith.truncf %176 : vector<8x64xf32> to vector<8x64xbf16>
    %218 = arith.truncf %208 : vector<128x64xf32> to vector<128x64xbf16>
    %cst_143 = arith.constant dense<0.000000e+00> : vector<8x128xf32>
    %219 = tpu.matmul %217, %218, %cst_143 {dimension_numbers = #tpu.dot_dimension_numbers<[1], [1], [0], [0], [0, 0, 1, 0], [], []>} : vector<8x64xbf16>, vector<128x64xbf16>, vector<8x128xf32> -> vector<8x128xf32>
    %220 = arith.index_cast %0 : i32 to index
    %c0_144 = arith.constant 0 : index
    %221 = vector.load %arg29[%220, %c0_144] : memref<16x128xf32, #tpu.memory_space<vmem>>, vector<8x128xf32>
    %222 = arith.addf %219, %221 : vector<8x128xf32>
    %cst_145 = arith.constant dense<0xFF800000> : vector<8xf32>
    %223 = vector.multi_reduction <maximumf>, %222, %cst_145 [1] : vector<8x128xf32> to vector<8xf32>
    %224 = vector.shape_cast %223 : vector<8xf32> to vector<8x1xf32>
    %225 = vector.broadcast %224 : vector<8x1xf32> to vector<8x128xf32>
    %226 = arith.subf %222, %225 : vector<8x128xf32>
    %227 = math.exp %226 : vector<8x128xf32>
    %c0_146 = arith.constant 0 : index
    %c0_147 = arith.constant 0 : index
    %228 = vector.load %arg35[%c0_146, %c0_147] : memref<128x64xf32, #tpu.memory_space<vmem>>, vector<128x64xf32>
    %cst_148 = arith.constant dense<0.000000e+00> : vector<8x64xf32>
    %229 = tpu.matmul %227, %228, %cst_148 {dimension_numbers = #tpu.dot_dimension_numbers<[1], [0], [0], [1], [0, 0, 1, 1], [], []>} : vector<8x128xf32>, vector<128x64xf32>, vector<8x64xf32> -> vector<8x64xf32>
    %230 = arith.truncf %227 : vector<8x128xf32> to vector<8x128xbf16>
    %231 = arith.truncf %216 : vector<128x64xf32> to vector<128x64xbf16>
    %cst_149 = arith.constant dense<0.000000e+00> : vector<8x64xf32>
    %232 = tpu.matmul %230, %231, %cst_149 {dimension_numbers = #tpu.dot_dimension_numbers<[1], [0], [0], [1], [0, 0, 1, 1], [], []>} : vector<8x128xbf16>, vector<128x64xbf16>, vector<8x64xf32> -> vector<8x64xf32>
    %233 = tpu.reciprocal %229 {approx = true} : vector<8x64xf32> -> vector<8x64xf32>
    %234 = arith.mulf %232, %233 : vector<8x64xf32>
    %c0_150 = arith.constant 0 : index
    %c0_151 = arith.constant 0 : index
    %235 = vector.load %arg36[%c0_150, %c0_151] : memref<64x32xbf16, #tpu.memory_space<vmem>>, vector<64x32xbf16>
    %236 = arith.truncf %234 : vector<8x64xf32> to vector<8x64xbf16>
    %cst_152 = arith.constant dense<0.000000e+00> : vector<8x32xf32>
    %237 = tpu.matmul %236, %235, %cst_152 {dimension_numbers = #tpu.dot_dimension_numbers<[1], [0], [0], [1], [0, 0, 1, 1], [], []>} : vector<8x64xbf16>, vector<64x32xbf16>, vector<8x32xf32> -> vector<8x32xf32>
    %238 = arith.addf %139, %237 : vector<8x32xf32>
    %239 = arith.mulf %238, %238 : vector<8x32xf32>
    %cst_153 = arith.constant dense<0.000000e+00> : vector<8xf32>
    %240 = vector.multi_reduction <add>, %239, %cst_153 [1] : vector<8x32xf32> to vector<8xf32>
    %241 = vector.shape_cast %240 : vector<8xf32> to vector<8x1xf32>
    %cst_154 = arith.constant 3.200000e+01 : f32
    %242 = vector.broadcast %cst_154 : f32 to vector<8x1xf32>
    %243 = arith.divf %241, %242 : vector<8x1xf32>
    %cst_155 = arith.constant 9.99999997E-7 : f32
    %244 = vector.broadcast %cst_155 : f32 to vector<8x1xf32>
    %245 = arith.addf %243, %244 : vector<8x1xf32>
    %246 = math.rsqrt %245 : vector<8x1xf32>
    %247 = vector.broadcast %246 : vector<8x1xf32> to vector<8x32xf32>
    %248 = arith.mulf %238, %247 : vector<8x32xf32>
    %c0_156 = arith.constant 0 : index
    %c0_157 = arith.constant 0 : index
    %249 = vector.load %arg26[%c0_156, %c0_157] : memref<1x32xf32, #tpu.memory_space<vmem>>, vector<1x32xf32>
    %250 = vector.broadcast %249 : vector<1x32xf32> to vector<8x32xf32>
    %251 = arith.mulf %248, %250 : vector<8x32xf32>
    %c0_158 = arith.constant 0 : index
    %c0_159 = arith.constant 0 : index
    %252 = vector.load %arg37[%c0_158, %c0_159] : memref<32x96xbf16, #tpu.memory_space<vmem>>, vector<32x96xbf16>
    %253 = arith.truncf %251 : vector<8x32xf32> to vector<8x32xbf16>
    %cst_160 = arith.constant dense<0.000000e+00> : vector<8x96xf32>
    %254 = tpu.matmul %253, %252, %cst_160 {dimension_numbers = #tpu.dot_dimension_numbers<[1], [0], [0], [1], [0, 0, 1, 1], [], []>} : vector<8x32xbf16>, vector<32x96xbf16>, vector<8x96xf32> -> vector<8x96xf32>
    %255 = vector.extract_strided_slice %254 {offsets = [0, 0], sizes = [8, 48], strides = [1, 1]} : vector<8x96xf32> to vector<8x48xf32>
    %256 = vector.extract_strided_slice %254 {offsets = [0, 48], sizes = [8, 48], strides = [1, 1]} : vector<8x96xf32> to vector<8x48xf32>
    %257 = arith.negf %255 : vector<8x48xf32>
    %258 = math.exp %257 : vector<8x48xf32>
    %cst_161 = arith.constant 1.000000e+00 : f32
    %259 = vector.broadcast %cst_161 : f32 to vector<8x48xf32>
    %260 = arith.addf %259, %258 : vector<8x48xf32>
    %261 = arith.divf %259, %260 : vector<8x48xf32>
    %262 = arith.mulf %255, %261 : vector<8x48xf32>
    %263 = arith.mulf %262, %256 : vector<8x48xf32>
    %c0_162 = arith.constant 0 : index
    %c0_163 = arith.constant 0 : index
    %264 = vector.load %arg38[%c0_162, %c0_163] : memref<48x32xbf16, #tpu.memory_space<vmem>>, vector<48x32xbf16>
    %265 = arith.truncf %263 : vector<8x48xf32> to vector<8x48xbf16>
    %cst_164 = arith.constant dense<0.000000e+00> : vector<8x32xf32>
    %266 = tpu.matmul %265, %264, %cst_164 {dimension_numbers = #tpu.dot_dimension_numbers<[1], [0], [0], [1], [0, 0, 1, 1], [], []>} : vector<8x48xbf16>, vector<48x32xbf16>, vector<8x32xf32> -> vector<8x32xf32>
    %267 = arith.addf %238, %266 : vector<8x32xf32>
    %268 = arith.mulf %267, %267 : vector<8x32xf32>
    %cst_165 = arith.constant dense<0.000000e+00> : vector<8xf32>
    %269 = vector.multi_reduction <add>, %268, %cst_165 [1] : vector<8x32xf32> to vector<8xf32>
    %270 = vector.shape_cast %269 : vector<8xf32> to vector<8x1xf32>
    %cst_166 = arith.constant 3.200000e+01 : f32
    %271 = vector.broadcast %cst_166 : f32 to vector<8x1xf32>
    %272 = arith.divf %270, %271 : vector<8x1xf32>
    %cst_167 = arith.constant 9.99999997E-7 : f32
    %273 = vector.broadcast %cst_167 : f32 to vector<8x1xf32>
    %274 = arith.addf %272, %273 : vector<8x1xf32>
    %275 = math.rsqrt %274 : vector<8x1xf32>
    %276 = vector.broadcast %275 : vector<8x1xf32> to vector<8x32xf32>
    %277 = arith.mulf %267, %276 : vector<8x32xf32>
    %c0_168 = arith.constant 0 : index
    %c0_169 = arith.constant 0 : index
    %278 = vector.load %arg4[%c0_168, %c0_169] : memref<1x32xf32, #tpu.memory_space<vmem>>, vector<1x32xf32>
    %279 = vector.broadcast %278 : vector<1x32xf32> to vector<8x32xf32>
    %280 = arith.mulf %277, %279 : vector<8x32xf32>
    %c0_170 = arith.constant 0 : index
    %c0_171 = arith.constant 0 : index
    %281 = vector.load %arg3[%c0_170, %c0_171] : memref<128x32xbf16, #tpu.memory_space<vmem>>, vector<128x32xbf16>
    %282 = arith.truncf %280 : vector<8x32xf32> to vector<8x32xbf16>
    %cst_172 = arith.constant dense<0.000000e+00> : vector<8x128xf32>
    %283 = tpu.matmul %282, %281, %cst_172 {dimension_numbers = #tpu.dot_dimension_numbers<[1], [1], [0], [0], [0, 0, 1, 0], [], []>} : vector<8x32xbf16>, vector<128x32xbf16>, vector<8x128xf32> -> vector<8x128xf32>
    %c0_173 = arith.constant 0 : index
    %c0_174 = arith.constant 0 : index
    %c0_175 = arith.constant 0 : index
    %284 = vector.load %arg39[%c0_173, %c0_174, %c0_175] : memref<1x8x128xf32, #tpu.memory_space<vmem>>, vector<1x8x128xf32>
    %285 = vector.shape_cast %284 : vector<1x8x128xf32> to vector<8x128xf32>
    %286 = vector.shape_cast %283 : vector<8x128xf32> to vector<1x8x128xf32>
    tpu.vector_store %arg39[%c0_173, %c0_174, %c0_175], %286 {strides = array<i32>} : memref<1x8x128xf32, #tpu.memory_space<vmem>>, vector<1x8x128xf32>,
    return
  }
  func.func @transform_0(%arg0: i32) -> i32 {
    %c0_i32 = arith.constant 0 : i32
    %c0_i32_0 = arith.constant 0 : i32
    return %c0_i32 : i32
  }
  func.func @transform_1(%arg0: i32) -> (i32, i32, i32) {
    %c0_i32 = arith.constant 0 : i32
    %c0_i32_0 = arith.constant 0 : i32
    %c0_i32_1 = arith.constant 0 : i32
    return %arg0, %c0_i32, %c0_i32_0 : i32, i32, i32
  }
  func.func @transform_2(%arg0: i32) -> (i32, i32) {
    %c0_i32 = arith.constant 0 : i32
    %c0_i32_0 = arith.constant 0 : i32
    %c0_i32_1 = arith.constant 0 : i32
    return %c0_i32, %c0_i32_0 : i32, i32
  }
  func.func @transform_3(%arg0: i32) -> (i32, i32) {
    %c0_i32 = arith.constant 0 : i32
    %c0_i32_0 = arith.constant 0 : i32
    %c0_i32_1 = arith.constant 0 : i32
    return %c0_i32, %c0_i32_0 : i32, i32
  }
  func.func @transform_4(%arg0: i32) -> (i32, i32, i32) {
    %c0_i32 = arith.constant 0 : i32
    %c0_i32_0 = arith.constant 0 : i32
    %c0_i32_1 = arith.constant 0 : i32
    return %arg0, %c0_i32, %c0_i32_0 : i32, i32, i32
  }
  func.func @transform_5(%arg0: i32) -> (i32, i32, i32) {
    %c0_i32 = arith.constant 0 : i32
    %c0_i32_0 = arith.constant 0 : i32
    %c0_i32_1 = arith.constant 0 : i32
    return %arg0, %c0_i32, %c0_i32_0 : i32, i32, i32
  }
  func.func @transform_6(%arg0: i32) -> (i32, i32) {
    %c0_i32 = arith.constant 0 : i32
    %c0_i32_0 = arith.constant 0 : i32
    %c0_i32_1 = arith.constant 0 : i32
    return %c0_i32, %c0_i32_0 : i32, i32
  }
  func.func @transform_7(%arg0: i32) -> (i32, i32) {
    %c0_i32 = arith.constant 0 : i32
    %c0_i32_0 = arith.constant 0 : i32
    %c0_i32_1 = arith.constant 0 : i32
    return %c0_i32, %c0_i32_0 : i32, i32
  }
  func.func @transform_8(%arg0: i32) -> (i32, i32) {
    %c0_i32 = arith.constant 0 : i32
    %c0_i32_0 = arith.constant 0 : i32
    %c0_i32_1 = arith.constant 0 : i32
    return %c0_i32, %c0_i32_0 : i32, i32
  }
  func.func @transform_9(%arg0: i32) -> (i32, i32) {
    %c0_i32 = arith.constant 0 : i32
    %c0_i32_0 = arith.constant 0 : i32
    %c0_i32_1 = arith.constant 0 : i32
    return %c0_i32, %c0_i32_0 : i32, i32
  }
  func.func @transform_10(%arg0: i32) -> (i32, i32) {
    %c0_i32 = arith.constant 0 : i32
    %c0_i32_0 = arith.constant 0 : i32
    %c0_i32_1 = arith.constant 0 : i32
    return %c0_i32, %c0_i32_0 : i32, i32
  }
  func.func @transform_11(%arg0: i32) -> (i32, i32) {
    %c0_i32 = arith.constant 0 : i32
    %c0_i32_0 = arith.constant 0 : i32
    %c0_i32_1 = arith.constant 0 : i32
    return %c0_i32, %c0_i32_0 : i32, i32
  }
  func.func @transform_12(%arg0: i32) -> (i32, i32) {
    %c0_i32 = arith.constant 0 : i32
    %c0_i32_0 = arith.constant 0 : i32
    %c0_i32_1 = arith.constant 0 : i32
    return %c0_i32, %c0_i32_0 : i32, i32
  }
  func.func @transform_13(%arg0: i32) -> (i32, i32) {
    %c0_i32 = arith.constant 0 : i32
    %c0_i32_0 = arith.constant 0 : i32
    %c0_i32_1 = arith.constant 0 : i32
    return %c0_i32, %c0_i32_0 : i32, i32
  }
  func.func @transform_14(%arg0: i32) -> (i32, i32) {
    %c0_i32 = arith.constant 0 : i32
    %c0_i32_0 = arith.constant 0 : i32
    %c0_i32_1 = arith.constant 0 : i32
    return %c0_i32, %c0_i32_0 : i32, i32
  }
  func.func @transform_15(%arg0: i32) -> (i32, i32) {
    %c0_i32 = arith.constant 0 : i32
    %c0_i32_0 = arith.constant 0 : i32
    %c0_i32_1 = arith.constant 0 : i32
    return %c0_i32, %c0_i32_0 : i32, i32
  }
  func.func @transform_16(%arg0: i32) -> (i32, i32) {
    %c0_i32 = arith.constant 0 : i32
    %c0_i32_0 = arith.constant 0 : i32
    %c0_i32_1 = arith.constant 0 : i32
    return %c0_i32, %c0_i32_0 : i32, i32
  }
  func.func @transform_17(%arg0: i32) -> (i32, i32) {
    %c0_i32 = arith.constant 0 : i32
    %c0_i32_0 = arith.constant 0 : i32
    %c0_i32_1 = arith.constant 0 : i32
    return %c0_i32, %c0_i32_0 : i32, i32
  }
  func.func @transform_18(%arg0: i32) -> (i32, i32) {
    %c0_i32 = arith.constant 0 : i32
    %c0_i32_0 = arith.constant 0 : i32
    %c0_i32_1 = arith.constant 0 : i32
    return %c0_i32, %c0_i32_0 : i32, i32
  }
  func.func @transform_19(%arg0: i32) -> (i32, i32) {
    %c0_i32 = arith.constant 0 : i32
    %c0_i32_0 = arith.constant 0 : i32
    %c0_i32_1 = arith.constant 0 : i32
    return %c0_i32, %c0_i32_0 : i32, i32
  }
  func.func @transform_20(%arg0: i32) -> (i32, i32) {
    %c0_i32 = arith.constant 0 : i32
    %c0_i32_0 = arith.constant 0 : i32
    %c0_i32_1 = arith.constant 0 : i32
    return %c0_i32, %c0_i32_0 : i32, i32
  }
  func.func @transform_21(%arg0: i32) -> (i32, i32, i32) {
    %c0_i32 = arith.constant 0 : i32
    %c0_i32_0 = arith.constant 0 : i32
    %c0_i32_1 = arith.constant 0 : i32
    return %arg0, %c0_i32, %c0_i32_0 : i32, i32, i32
  }
  func.func @transform_22(%arg0: i32) -> (i32, i32, i32) {
    %c0_i32 = arith.constant 0 : i32
    %c0_i32_0 = arith.constant 0 : i32
    %c0_i32_1 = arith.constant 0 : i32
    return %arg0, %c0_i32, %c0_i32_0 : i32, i32, i32
  }
  func.func @transform_23(%arg0: i32) -> (i32, i32) {
    %c0_i32 = arith.constant 0 : i32
    %c0_i32_0 = arith.constant 0 : i32
    %c0_i32_1 = arith.constant 0 : i32
    return %c0_i32, %c0_i32_0 : i32, i32
  }
  func.func @transform_24(%arg0: i32) -> (i32, i32) {
    %c0_i32 = arith.constant 0 : i32
    %c0_i32_0 = arith.constant 0 : i32
    %c0_i32_1 = arith.constant 0 : i32
    return %c0_i32, %c0_i32_0 : i32, i32
  }
  func.func @transform_25(%arg0: i32) -> (i32, i32) {
    %c0_i32 = arith.constant 0 : i32
    %c0_i32_0 = arith.constant 0 : i32
    %c0_i32_1 = arith.constant 0 : i32
    return %c0_i32, %c0_i32_0 : i32, i32
  }
  func.func @transform_26(%arg0: i32) -> (i32, i32) {
    %c0_i32 = arith.constant 0 : i32
    %c0_i32_0 = arith.constant 0 : i32
    %c0_i32_1 = arith.constant 0 : i32
    return %c0_i32, %c0_i32_0 : i32, i32
  }
  func.func @transform_27(%arg0: i32) -> (i32, i32) {
    %c0_i32 = arith.constant 0 : i32
    %c0_i32_0 = arith.constant 0 : i32
    %c0_i32_1 = arith.constant 0 : i32
    return %c0_i32, %c0_i32_0 : i32, i32
  }
  func.func @transform_28(%arg0: i32) -> (i32, i32) {
    %c0_i32 = arith.constant 0 : i32
    %c0_i32_0 = arith.constant 0 : i32
    %c0_i32_1 = arith.constant 0 : i32
    return %c0_i32, %c0_i32_0 : i32, i32
  }
  func.func @transform_29(%arg0: i32) -> (i32, i32) {
    %c0_i32 = arith.constant 0 : i32
    %c0_i32_0 = arith.constant 0 : i32
    %c0_i32_1 = arith.constant 0 : i32
    return %c0_i32, %c0_i32_0 : i32, i32
  }
  func.func @transform_30(%arg0: i32) -> (i32, i32) {
    %c0_i32 = arith.constant 0 : i32
    %c0_i32_0 = arith.constant 0 : i32
    %c0_i32_1 = arith.constant 0 : i32
    return %c0_i32, %c0_i32_0 : i32, i32
  }
  func.func @transform_31(%arg0: i32) -> (i32, i32) {
    %c0_i32 = arith.constant 0 : i32
    %c0_i32_0 = arith.constant 0 : i32
    %c0_i32_1 = arith.constant 0 : i32
    return %c0_i32, %c0_i32_0 : i32, i32
  }
  func.func @transform_32(%arg0: i32) -> (i32, i32) {
    %c0_i32 = arith.constant 0 : i32
    %c0_i32_0 = arith.constant 0 : i32
    %c0_i32_1 = arith.constant 0 : i32
    return %c0_i32, %c0_i32_0 : i32, i32
  }
  func.func @transform_33(%arg0: i32) -> (i32, i32) {
    %c0_i32 = arith.constant 0 : i32
    %c0_i32_0 = arith.constant 0 : i32
    %c0_i32_1 = arith.constant 0 : i32
    return %c0_i32, %c0_i32_0 : i32, i32
  }
  func.func @transform_34(%arg0: i32) -> (i32, i32) {
    %c0_i32 = arith.constant 0 : i32
    %c0_i32_0 = arith.constant 0 : i32
    %c0_i32_1 = arith.constant 0 : i32
    return %c0_i32, %c0_i32_0 : i32, i32
  }
  func.func @transform_35(%arg0: i32) -> (i32, i32) {
    %c0_i32 = arith.constant 0 : i32
    %c0_i32_0 = arith.constant 0 : i32
    %c0_i32_1 = arith.constant 0 : i32
    return %c0_i32, %c0_i32_0 : i32, i32
  }
  func.func @transform_36(%arg0: i32) -> (i32, i32) {
    %c0_i32 = arith.constant 0 : i32
    %c0_i32_0 = arith.constant 0 : i32
    %c0_i32_1 = arith.constant 0 : i32
    return %c0_i32, %c0_i32_0 : i32, i32
  }
  func.func @transform_37(%arg0: i32) -> (i32, i32) {
    %c0_i32 = arith.constant 0 : i32
    %c0_i32_0 = arith.constant 0 : i32
    %c0_i32_1 = arith.constant 0 : i32
    return %c0_i32, %c0_i32_0 : i32, i32
  }
  func.func @transform_38(%arg0: i32) -> (i32, i32, i32) {
    %c0_i32 = arith.constant 0 : i32
    %c0_i32_0 = arith.constant 0 : i32
    %c0_i32_1 = arith.constant 0 : i32
    return %arg0, %c0_i32, %c0_i32_0 : i32, i32, i32
  }
  func.func @transform_39(%arg0: i32) -> (i32, i32, i32) {
    %c0_i32 = arith.constant 0 : i32
    %c0_i32_0 = arith.constant 0 : i32
    %c0_i32_1 = arith.constant 0 : i32
    return %arg0, %c0_i32, %c0_i32_0 : i32, i32, i32
  }
  func.func @transform_40(%arg0: i32) -> (i32, i32, i32) {
    %c0_i32 = arith.constant 0 : i32
    %c0_i32_0 = arith.constant 0 : i32
    %c0_i32_1 = arith.constant 0 : i32
    return %arg0, %c0_i32, %c0_i32_0 : i32, i32, i32
  }
  func.func @transform_41(%arg0: i32) -> (i32, i32, i32) {
    %c0_i32 = arith.constant 0 : i32
    %c0_i32_0 = arith.constant 0 : i32
    %c0_i32_1 = arith.constant 0 : i32
    return %arg0, %c0_i32, %c0_i32_0 : i32, i32, i32
  }
  func.func @transform_42(%arg0: i32) -> (i32, i32, i32) {
    %c0_i32 = arith.constant 0 : i32
    %c0_i32_0 = arith.constant 0 : i32
    %c0_i32_1 = arith.constant 0 : i32
    return %arg0, %c0_i32, %c0_i32_0 : i32, i32, i32
  }
}

</mosaic_0001>

<llo_original>
// kernel: openelm_forward.1
$region0: #{openelm_forward.1}
  #allocation0 [shape = 'u32[]', space=smem, size = 0x4, offset = 0x4, fixed_abs, tag = 'smem constant byte address 0x4 - core index']
  #allocation1 [shape = 'u32[72,128]{1,0:T(1,128)}', space=vmem, size = 0x9000, scoped, tag = 'internal scratch']
  %s0 = inlined_call_operand.smem [shape: u32[43], index: -1, kind: input, shape index: {}]
  %s1 = sld [smem:[%s0]]
  %s2 = scalar_lea.smem %s0, 1
  %s3 = sld [smem:[%s2]]
  %s4 = scalar_lea.smem %s0, 2
  %s5 = sld [smem:[%s4]]
  %s6 = scalar_lea.smem %s0, 3
  %s7 = sld [smem:[%s6]]
  %s8 = scalar_lea.smem %s0, 4
  %s9 = sld [smem:[%s8]]
  %s10 = scalar_lea.smem %s0, 5
  %s11 = sld [smem:[%s10]]
  %s12 = scalar_lea.smem %s0, 6
  %s13 = sld [smem:[%s12]]
  %s14 = scalar_lea.smem %s0, 7
  %s15 = sld [smem:[%s14]]
  %s16 = scalar_lea.smem %s0, 8
  %s17 = sld [smem:[%s16]]
  %s18 = scalar_lea.smem %s0, 9
  %s19 = sld [smem:[%s18]]
  %s20 = scalar_lea.smem %s0, 10
  %s21 = sld [smem:[%s20]]
  %s22 = scalar_lea.smem %s0, 11
  %s23 = sld [smem:[%s22]]
  %s24 = scalar_lea.smem %s0, 12
  %s25 = sld [smem:[%s24]]
  %s26 = scalar_lea.smem %s0, 13
  %s27 = sld [smem:[%s26]]
  %s28 = scalar_lea.smem %s0, 14
  %s29 = sld [smem:[%s28]]
  %s30 = scalar_lea.smem %s0, 15
  %s31 = sld [smem:[%s30]]
  %s32 = scalar_lea.smem %s0, 16
  %s33 = sld [smem:[%s32]]
  %s34 = scalar_lea.smem %s0, 17
  %s35 = sld [smem:[%s34]]
  %s36 = scalar_lea.smem %s0, 18
  %s37 = sld [smem:[%s36]]
  %s38 = scalar_lea.smem %s0, 19
  %s39 = sld [smem:[%s38]]
  %s40 = scalar_lea.smem %s0, 20
  %s41 = sld [smem:[%s40]]
  %s42 = scalar_lea.smem %s0, 21
  %s43 = sld [smem:[%s42]]
  %s44 = scalar_lea.smem %s0, 22
  %s45 = sld [smem:[%s44]]
  %s46 = scalar_lea.smem %s0, 23
  %s47 = sld [smem:[%s46]]
  %s48 = scalar_lea.smem %s0, 24
  %s49 = sld [smem:[%s48]]
  %s50 = scalar_lea.smem %s0, 25
  %s51 = sld [smem:[%s50]]
  %s52 = scalar_lea.smem %s0, 26
  %s53 = sld [smem:[%s52]]
  %s54 = scalar_lea.smem %s0, 27
  %s55 = sld [smem:[%s54]]
  %s56 = scalar_lea.smem %s0, 28
  %s57 = sld [smem:[%s56]]
  %s58 = scalar_lea.smem %s0, 29
  %s59 = sld [smem:[%s58]]
  %s60 = scalar_lea.smem %s0, 30
  %s61 = sld [smem:[%s60]]
  %s62 = scalar_lea.smem %s0, 31
  %s63 = sld [smem:[%s62]]
  %s64 = scalar_lea.smem %s0, 32
  %s65 = sld [smem:[%s64]]
  %s66 = scalar_lea.smem %s0, 33
  %s67 = sld [smem:[%s66]]
  %s68 = scalar_lea.smem %s0, 34
  %s69 = sld [smem:[%s68]]
  %s70 = scalar_lea.smem %s0, 35
  %s71 = sld [smem:[%s70]]
  %s72 = scalar_lea.smem %s0, 36
  %s73 = sld [smem:[%s72]]
  %s74 = scalar_lea.smem %s0, 37
  %s75 = sld [smem:[%s74]]
  %s76 = scalar_lea.smem %s0, 38
  %s77 = sld [smem:[%s76]]
  %s78 = scalar_lea.smem %s0, 39
  %s79 = sld [smem:[%s78]]
  %s80 = scalar_lea.smem %s0, 40
  %s81 = sld [smem:[%s80]]
  %s82 = scalar_lea.smem %s0, 41
  %s83 = sld [smem:[%s82]]
  %s84 = scalar_lea.smem %s0, 42
  %s85 = sld [smem:[%s84]]
  %86 = xla_tuple %s77, %s79, %s81, %s83, %s85
  %s87 = sld [smem:[#allocation0]]
  $region221: #{openelm_forward.1} parent=0
    _
  %s89 = ssub.s32 1, %s87
  %s90 = scalar_select 0, %s89, %s87
  $region1: #{openelm_forward.1} parent=0
    #allocation2 [shape = 'u8[512]{0}', space=smem, size = 0x200, scoped, tag = 'input window, operand 0, single buffered']
    #allocation3 [shape = 's32[2]{0}', space=sflag, size = 0x8, scoped, tag = 'scoped memory for openelm_forward.1']
    #allocation4 [shape = 's32[2]{0}', space=sflag, size = 0x8, scoped, tag = 'scoped memory for openelm_forward.1']
    #allocation5 [shape = 'u8[8192]{0}', space=vmem, size = 0x2000, scoped, tag = 'output window, operand 0']
    %91 = vsyncpa [#allocation4], 0
    %92 = vsyncpa [#allocation3], 0
    %s93 = scalar_lea.sflag [#allocation3], 1
    %94 = vsyncpa %s93, 0
    loop: start=0, step=1, limit=4
    $region2: #{openelm_forward.1} parent=1 // loop_pre_header
      _
    $region3: #{openelm_forward.1} parent=1 // loop_header
      %s96 = sphi 0, %s100
      %p97 = scmp.ge.s32.totalorder %s96, 4
      %s104 = sphi 0, %s104
      %s106 = sphi 0, %s104
      %s107 = sphi 0, %s106
      %s121 = sphi 0, %s107
      %s127 = sphi 0, %s129
      %s130 = sphi 0, %s127
      %s131 = sphi 0, %s130
      %s147 = sphi 0, %s131
      %s151 = sphi 0, %s151
      %s153 = sphi 0, %s151
      %s154 = sphi 0, %s153
      %s168 = sphi 0, %s154
      %s172 = sphi 0, %s172
      %s174 = sphi 0, %s172
      %s175 = sphi 0, %s174
      %s189 = sphi 0, %s175
      %s195 = sphi 0, %s197
      %s198 = sphi 0, %s195
      %s199 = sphi 0, %s198
      %s215 = sphi 0, %s199
      %s221 = sphi 0, %s223
      %s224 = sphi 0, %s221
      %s225 = sphi 0, %s224
      %s241 = sphi 0, %s225
      %s245 = sphi 0, %s245
      %s247 = sphi 0, %s245
      %s248 = sphi 0, %s247
      %s262 = sphi 0, %s248
      %s266 = sphi 0, %s266
      %s268 = sphi 0, %s266
      %s269 = sphi 0, %s268
      %s283 = sphi 0, %s269
      %s287 = sphi 0, %s287
      %s289 = sphi 0, %s287
      %s290 = sphi 0, %s289
      %s304 = sphi 0, %s290
      %s308 = sphi 0, %s308
      %s310 = sphi 0, %s308
      %s311 = sphi 0, %s310
      %s325 = sphi 0, %s311
      %s329 = sphi 0, %s329
      %s331 = sphi 0, %s329
      %s332 = sphi 0, %s331
      %s346 = sphi 0, %s332
      %s350 = sphi 0, %s350
      %s352 = sphi 0, %s350
      %s353 = sphi 0, %s352
      %s367 = sphi 0, %s353
      %s371 = sphi 0, %s371
      %s373 = sphi 0, %s371
      %s374 = sphi 0, %s373
      %s388 = sphi 0, %s374
      %s392 = sphi 0, %s392
      %s394 = sphi 0, %s392
      %s395 = sphi 0, %s394
      %s409 = sphi 0, %s395
      %s413 = sphi 0, %s413
      %s415 = sphi 0, %s413
      %s416 = sphi 0, %s415
      %s430 = sphi 0, %s416
      %s434 = sphi 0, %s434
      %s436 = sphi 0, %s434
      %s437 = sphi 0, %s436
      %s451 = sphi 0, %s437
      %s455 = sphi 0, %s455
      %s457 = sphi 0, %s455
      %s458 = sphi 0, %s457
      %s472 = sphi 0, %s458
      %s476 = sphi 0, %s476
      %s478 = sphi 0, %s476
      %s479 = sphi 0, %s478
      %s493 = sphi 0, %s479
      %s497 = sphi 0, %s497
      %s499 = sphi 0, %s497
      %s500 = sphi 0, %s499
      %s514 = sphi 0, %s500
      %s518 = sphi 0, %s518
      %s520 = sphi 0, %s518
      %s521 = sphi 0, %s520
      %s535 = sphi 0, %s521
      %s539 = sphi 0, %s539
      %s541 = sphi 0, %s539
      %s542 = sphi 0, %s541
      %s556 = sphi 0, %s542
      %s562 = sphi 0, %s564
      %s565 = sphi 0, %s562
      %s566 = sphi 0, %s565
      %s582 = sphi 0, %s566
      %s588 = sphi 0, %s590
      %s591 = sphi 0, %s588
      %s592 = sphi 0, %s591
      %s608 = sphi 0, %s592
      %s612 = sphi 0, %s612
      %s614 = sphi 0, %s612
      %s615 = sphi 0, %s614
      %s629 = sphi 0, %s615
      %s633 = sphi 0, %s633
      %s635 = sphi 0, %s633
      %s636 = sphi 0, %s635
      %s650 = sphi 0, %s636
      %s654 = sphi 0, %s654
      %s656 = sphi 0, %s654
      %s657 = sphi 0, %s656
      %s671 = sphi 0, %s657
      %s675 = sphi 0, %s675
      %s677 = sphi 0, %s675
      %s678 = sphi 0, %s677
      %s692 = sphi 0, %s678
      %s696 = sphi 0, %s696
      %s698 = sphi 0, %s696
      %s699 = sphi 0, %s698
      %s713 = sphi 0, %s699
      %s717 = sphi 0, %s717
      %s719 = sphi 0, %s717
      %s720 = sphi 0, %s719
      %s734 = sphi 0, %s720
      %s738 = sphi 0, %s738
      %s740 = sphi 0, %s738
      %s741 = sphi 0, %s740
      %s755 = sphi 0, %s741
      %s759 = sphi 0, %s759
      %s761 = sphi 0, %s759
      %s762 = sphi 0, %s761
      %s776 = sphi 0, %s762
      %s780 = sphi 0, %s780
      %s782 = sphi 0, %s780
      %s783 = sphi 0, %s782
      %s797 = sphi 0, %s783
      %s801 = sphi 0, %s801
      %s803 = sphi 0, %s801
      %s804 = sphi 0, %s803
      %s818 = sphi 0, %s804
      %s822 = sphi 0, %s822
      %s824 = sphi 0, %s822
      %s825 = sphi 0, %s824
      %s839 = sphi 0, %s825
      %s843 = sphi 0, %s843
      %s845 = sphi 0, %s843
      %s846 = sphi 0, %s845
      %s860 = sphi 0, %s846
      %s864 = sphi 0, %s864
      %s866 = sphi 0, %s864
      %s867 = sphi 0, %s866
      %s881 = sphi 0, %s867
      %s885 = sphi 0, %s885
      %s887 = sphi 0, %s885
      %s888 = sphi 0, %s887
      %s902 = sphi 0, %s888
      %s906 = sphi 0, %s906
      %s908 = sphi 0, %s906
      %s909 = sphi 0, %s908
      %s923 = sphi 0, %s909
      %s929 = sphi 0, %s931
      %s932 = sphi 0, %s929
      %s933 = sphi 0, %s932
      %s949 = sphi 0, %s933
      %s955 = sphi 0, %s957
      %s958 = sphi 0, %s955
      %s959 = sphi 0, %s958
      %s975 = sphi 0, %s959
      %s981 = sphi 0, %s983
      %s984 = sphi 0, %s981
      %s985 = sphi 0, %s984
      %s1001 = sphi 0, %s985
      %s1007 = sphi 0, %s1009
      %s1010 = sphi 0, %s1007
      %s1011 = sphi 0, %s1010
      %s1027 = sphi 0, %s1011
      %s1033 = sphi 0, %s1035
      %s1036 = sphi 0, %s1033
      %s1037 = sphi 0, %s1036
      %s1053 = sphi 0, %s1037
    $region4: #{openelm_forward.1} parent=1 // loop_header_branch
      %99 = sbr.rel (%p97) target = $region8
    $region5: #{openelm_forward.1} parent=1 // loop_body
      %s101 = ssub.s32 %s96, 1
      %s102 = ssub.s32 %s96, 2
      %s103 = sadd.s32 %s96, 1
      %s105 = sadd.s32 %s104, 1
      %p108 = scmp.eq.s32.totalorder %s96, 1
      %p109 = scmp.ne.s32.totalorder %s104, %s106
      %p110 = scmp.eq.s32.totalorder %s96, 0
      %p111 = por %p109, %p110
      %p112 = scmp.ne.s32.totalorder %s104, %s106
      %p113 = scmp.eq.s32.totalorder %s101, 1
      %p114 = por %p112, %p113
      %p115 = scmp.ne.s32.totalorder %s106, %s107
      %p116 = scmp.eq.s32.totalorder %s101, 0
      %p117 = por %p115, %p116
      %p118 = scmp.ne.s32.totalorder %s106, %s107
      %p119 = scmp.eq.s32.totalorder %s102, 1
      %p120 = por %p118, %p119
      %p122 = scmp.ne.s32.totalorder %s107, %s121
      %p123 = scmp.eq.s32.totalorder %s102, 0
      %p124 = por %p122, %p123
      %s125 = ssub.s32 %s96, %s103
      %p126 = scmp.eq.s32.totalorder %s125, 0
      %s128 = sadd.s32 %s127, 1
      %s129 = scalar_select %p126, %s127, %s128
      %p132 = pneg %p126
      %p133 = scmp.eq.s32.totalorder %s96, 1
      %p134 = por %p132, %p133
      %p135 = scmp.ne.s32.totalorder %s127, %s130
      %p136 = scmp.eq.s32.totalorder %s96, 0
      %p137 = por %p135, %p136
      %p138 = scmp.ne.s32.totalorder %s127, %s130
      %p139 = scmp.eq.s32.totalorder %s101, 1
      %p140 = por %p138, %p139
      %p141 = scmp.ne.s32.totalorder %s130, %s131
      %p142 = scmp.eq.s32.totalorder %s101, 0
      %p143 = por %p141, %p142
      %p144 = scmp.ne.s32.totalorder %s130, %s131
      %p145 = scmp.eq.s32.totalorder %s102, 1
      %p146 = por %p144, %p145
      %p148 = scmp.ne.s32.totalorder %s131, %s147
      %p149 = scmp.eq.s32.totalorder %s102, 0
      %p150 = por %p148, %p149
      %s152 = sadd.s32 %s151, 1
      %p155 = scmp.eq.s32.totalorder %s96, 1
      %p156 = scmp.ne.s32.totalorder %s151, %s153
      %p157 = scmp.eq.s32.totalorder %s96, 0
      %p158 = por %p156, %p157
      %p159 = scmp.ne.s32.totalorder %s151, %s153
      %p160 = scmp.eq.s32.totalorder %s101, 1
      %p161 = por %p159, %p160
      %p162 = scmp.ne.s32.totalorder %s153, %s154
      %p163 = scmp.eq.s32.totalorder %s101, 0
      %p164 = por %p162, %p163
      %p165 = scmp.ne.s32.totalorder %s153, %s154
      %p166 = scmp.eq.s32.totalorder %s102, 1
      %p167 = por %p165, %p166
      %p169 = scmp.ne.s32.totalorder %s154, %s168
      %p170 = scmp.eq.s32.totalorder %s102, 0
      %p171 = por %p169, %p170
      %s173 = sadd.s32 %s172, 1
      %p176 = scmp.eq.s32.totalorder %s96, 1
      %p177 = scmp.ne.s32.totalorder %s172, %s174
      %p178 = scmp.eq.s32.totalorder %s96, 0
      %p179 = por %p177, %p178
      %p180 = scmp.ne.s32.totalorder %s172, %s174
      %p181 = scmp.eq.s32.totalorder %s101, 1
      %p182 = por %p180, %p181
      %p183 = scmp.ne.s32.totalorder %s174, %s175
      %p184 = scmp.eq.s32.totalorder %s101, 0
      %p185 = por %p183, %p184
      %p186 = scmp.ne.s32.totalorder %s174, %s175
      %p187 = scmp.eq.s32.totalorder %s102, 1
      %p188 = por %p186, %p187
      %p190 = scmp.ne.s32.totalorder %s175, %s189
      %p191 = scmp.eq.s32.totalorder %s102, 0
      %p192 = por %p190, %p191
      %s193 = ssub.s32 %s96, %s103
      %p194 = scmp.eq.s32.totalorder %s193, 0
      %s196 = sadd.s32 %s195, 1
      %s197 = scalar_select %p194, %s195, %s196
      %p200 = pneg %p194
      %p201 = scmp.eq.s32.totalorder %s96, 1
      %p202 = por %p200, %p201
      %p203 = scmp.ne.s32.totalorder %s195, %s198
      %p204 = scmp.eq.s32.totalorder %s96, 0
      %p205 = por %p203, %p204
      %p206 = scmp.ne.s32.totalorder %s195, %s198
      %p207 = scmp.eq.s32.totalorder %s101, 1
      %p208 = por %p206, %p207
      %p209 = scmp.ne.s32.totalorder %s198, %s199
      %p210 = scmp.eq.s32.totalorder %s101, 0
      %p211 = por %p209, %p210
      %p212 = scmp.ne.s32.totalorder %s198, %s199
      %p213 = scmp.eq.s32.totalorder %s102, 1
      %p214 = por %p212, %p213
      %p216 = scmp.ne.s32.totalorder %s199, %s215
      %p217 = scmp.eq.s32.totalorder %s102, 0
      %p218 = por %p216, %p217
      %s219 = ssub.s32 %s96, %s103
      %p220 = scmp.eq.s32.totalorder %s219, 0
      %s222 = sadd.s32 %s221, 1
      %s223 = scalar_select %p220, %s221, %s222
      %p226 = pneg %p220
      %p227 = scmp.eq.s32.totalorder %s96, 1
      %p228 = por %p226, %p227
      %p229 = scmp.ne.s32.totalorder %s221, %s224
      %p230 = scmp.eq.s32.totalorder %s96, 0
      %p231 = por %p229, %p230
      %p232 = scmp.ne.s32.totalorder %s221, %s224
      %p233 = scmp.eq.s32.totalorder %s101, 1
      %p234 = por %p232, %p233
      %p235 = scmp.ne.s32.totalorder %s224, %s225
      %p236 = scmp.eq.s32.totalorder %s101, 0
      %p237 = por %p235, %p236
      %p238 = scmp.ne.s32.totalorder %s224, %s225
      %p239 = scmp.eq.s32.totalorder %s102, 1
      %p240 = por %p238, %p239
      %p242 = scmp.ne.s32.totalorder %s225, %s241
      %p243 = scmp.eq.s32.totalorder %s102, 0
      %p244 = por %p242, %p243
      %s246 = sadd.s32 %s245, 1
      %p249 = scmp.eq.s32.totalorder %s96, 1
      %p250 = scmp.ne.s32.totalorder %s245, %s247
      %p251 = scmp.eq.s32.totalorder %s96, 0
      %p252 = por %p250, %p251
      %p253 = scmp.ne.s32.totalorder %s245, %s247
      %p254 = scmp.eq.s32.totalorder %s101, 1
      %p255 = por %p253, %p254
      %p256 = scmp.ne.s32.totalorder %s247, %s248
      %p257 = scmp.eq.s32.totalorder %s101, 0
      %p258 = por %p256, %p257
      %p259 = scmp.ne.s32.totalorder %s247, %s248
      %p260 = scmp.eq.s32.totalorder %s102, 1
      %p261 = por %p259, %p260
      %p263 = scmp.ne.s32.totalorder %s248, %s262
      %p264 = scmp.eq.s32.totalorder %s102, 0
      %p265 = por %p263, %p264
      %s267 = sadd.s32 %s266, 1
      %p270 = scmp.eq.s32.totalorder %s96, 1
      %p271 = scmp.ne.s32.totalorder %s266, %s268
      %p272 = scmp.eq.s32.totalorder %s96, 0
      %p273 = por %p271, %p272
      %p274 = scmp.ne.s32.totalorder %s266, %s268
      %p275 = scmp.eq.s32.totalorder %s101, 1
      %p276 = por %p274, %p275
      %p277 = scmp.ne.s32.totalorder %s268, %s269
      %p278 = scmp.eq.s32.totalorder %s101, 0
      %p279 = por %p277, %p278
      %p280 = scmp.ne.s32.totalorder %s268, %s269
      %p281 = scmp.eq.s32.totalorder %s102, 1
      %p282 = por %p280, %p281
      %p284 = scmp.ne.s32.totalorder %s269, %s283
      %p285 = scmp.eq.s32.totalorder %s102, 0
      %p286 = por %p284, %p285
      %s288 = sadd.s32 %s287, 1
      %p291 = scmp.eq.s32.totalorder %s96, 1
      %p292 = scmp.ne.s32.totalorder %s287, %s289
      %p293 = scmp.eq.s32.totalorder %s96, 0
      %p294 = por %p292, %p293
      %p295 = scmp.ne.s32.totalorder %s287, %s289
      %p296 = scmp.eq.s32.totalorder %s101, 1
      %p297 = por %p295, %p296
      %p298 = scmp.ne.s32.totalorder %s289, %s290
      %p299 = scmp.eq.s32.totalorder %s101, 0
      %p300 = por %p298, %p299
      %p301 = scmp.ne.s32.totalorder %s289, %s290
      %p302 = scmp.eq.s32.totalorder %s102, 1
      %p303 = por %p301, %p302
      %p305 = scmp.ne.s32.totalorder %s290, %s304
      %p306 = scmp.eq.s32.totalorder %s102, 0
      %p307 = por %p305, %p306
      %s309 = sadd.s32 %s308, 1
      %p312 = scmp.eq.s32.totalorder %s96, 1
      %p313 = scmp.ne.s32.totalorder %s308, %s310
      %p314 = scmp.eq.s32.totalorder %s96, 0
      %p315 = por %p313, %p314
      %p316 = scmp.ne.s32.totalorder %s308, %s310
      %p317 = scmp.eq.s32.totalorder %s101, 1
      %p318 = por %p316, %p317
      %p319 = scmp.ne.s32.totalorder %s310, %s311
      %p320 = scmp.eq.s32.totalorder %s101, 0
      %p321 = por %p319, %p320
      %p322 = scmp.ne.s32.totalorder %s310, %s311
      %p323 = scmp.eq.s32.totalorder %s102, 1
      %p324 = por %p322, %p323
      %p326 = scmp.ne.s32.totalorder %s311, %s325
      %p327 = scmp.eq.s32.totalorder %s102, 0
      %p328 = por %p326, %p327
      %s330 = sadd.s32 %s329, 1
      %p333 = scmp.eq.s32.totalorder %s96, 1
      %p334 = scmp.ne.s32.totalorder %s329, %s331
      %p335 = scmp.eq.s32.totalorder %s96, 0
      %p336 = por %p334, %p335
      %p337 = scmp.ne.s32.totalorder %s329, %s331
      %p338 = scmp.eq.s32.totalorder %s101, 1
      %p339 = por %p337, %p338
      %p340 = scmp.ne.s32.totalorder %s331, %s332
      %p341 = scmp.eq.s32.totalorder %s101, 0
      %p342 = por %p340, %p341
      %p343 = scmp.ne.s32.totalorder %s331, %s332
      %p344 = scmp.eq.s32.totalorder %s102, 1
      %p345 = por %p343, %p344
      %p347 = scmp.ne.s32.totalorder %s332, %s346
      %p348 = scmp.eq.s32.totalorder %s102, 0
      %p349 = por %p347, %p348
      %s351 = sadd.s32 %s350, 1
      %p354 = scmp.eq.s32.totalorder %s96, 1
      %p355 = scmp.ne.s32.totalorder %s350, %s352
      %p356 = scmp.eq.s32.totalorder %s96, 0
      %p357 = por %p355, %p356
      %p358 = scmp.ne.s32.totalorder %s350, %s352
      %p359 = scmp.eq.s32.totalorder %s101, 1
      %p360 = por %p358, %p359
      %p361 = scmp.ne.s32.totalorder %s352, %s353
      %p362 = scmp.eq.s32.totalorder %s101, 0
      %p363 = por %p361, %p362
      %p364 = scmp.ne.s32.totalorder %s352, %s353
      %p365 = scmp.eq.s32.totalorder %s102, 1
      %p366 = por %p364, %p365
      %p368 = scmp.ne.s32.totalorder %s353, %s367
      %p369 = scmp.eq.s32.totalorder %s102, 0
      %p370 = por %p368, %p369
      %s372 = sadd.s32 %s371, 1
      %p375 = scmp.eq.s32.totalorder %s96, 1
      %p376 = scmp.ne.s32.totalorder %s371, %s373
      %p377 = scmp.eq.s32.totalorder %s96, 0
      %p378 = por %p376, %p377
      %p379 = scmp.ne.s32.totalorder %s371, %s373
      %p380 = scmp.eq.s32.totalorder %s101, 1
      %p381 = por %p379, %p380
      %p382 = scmp.ne.s32.totalorder %s373, %s374
      %p383 = scmp.eq.s32.totalorder %s101, 0
      %p384 = por %p382, %p383
      %p385 = scmp.ne.s32.totalorder %s373, %s374
      %p386 = scmp.eq.s32.totalorder %s102, 1
      %p387 = por %p385, %p386
      %p389 = scmp.ne.s32.totalorder %s374, %s388
      %p390 = scmp.eq.s32.totalorder %s102, 0
      %p391 = por %p389, %p390
      %s393 = sadd.s32 %s392, 1
      %p396 = scmp.eq.s32.totalorder %s96, 1
      %p397 = scmp.ne.s32.totalorder %s392, %s394
      %p398 = scmp.eq.s32.totalorder %s96, 0
      %p399 = por %p397, %p398
      %p400 = scmp.ne.s32.totalorder %s392, %s394
      %p401 = scmp.eq.s32.totalorder %s101, 1
      %p402 = por %p400, %p401
      %p403 = scmp.ne.s32.totalorder %s394, %s395
      %p404 = scmp.eq.s32.totalorder %s101, 0
      %p405 = por %p403, %p404
      %p406 = scmp.ne.s32.totalorder %s394, %s395
      %p407 = scmp.eq.s32.totalorder %s102, 1
      %p408 = por %p406, %p407
      %p410 = scmp.ne.s32.totalorder %s395, %s409
      %p411 = scmp.eq.s32.totalorder %s102, 0
      %p412 = por %p410, %p411
      %s414 = sadd.s32 %s413, 1
      %p417 = scmp.eq.s32.totalorder %s96, 1
      %p418 = scmp.ne.s32.totalorder %s413, %s415
      %p419 = scmp.eq.s32.totalorder %s96, 0
      %p420 = por %p418, %p419
      %p421 = scmp.ne.s32.totalorder %s413, %s415
      %p422 = scmp.eq.s32.totalorder %s101, 1
      %p423 = por %p421, %p422
      %p424 = scmp.ne.s32.totalorder %s415, %s416
      %p425 = scmp.eq.s32.totalorder %s101, 0
      %p426 = por %p424, %p425
      %p427 = scmp.ne.s32.totalorder %s415, %s416
      %p428 = scmp.eq.s32.totalorder %s102, 1
      %p429 = por %p427, %p428
      %p431 = scmp.ne.s32.totalorder %s416, %s430
      %p432 = scmp.eq.s32.totalorder %s102, 0
      %p433 = por %p431, %p432
      %s435 = sadd.s32 %s434, 1
      %p438 = scmp.eq.s32.totalorder %s96, 1
      %p439 = scmp.ne.s32.totalorder %s434, %s436
      %p440 = scmp.eq.s32.totalorder %s96, 0
      %p441 = por %p439, %p440
      %p442 = scmp.ne.s32.totalorder %s434, %s436
      %p443 = scmp.eq.s32.totalorder %s101, 1
      %p444 = por %p442, %p443
      %p445 = scmp.ne.s32.totalorder %s436, %s437
      %p446 = scmp.eq.s32.totalorder %s101, 0
      %p447 = por %p445, %p446
      %p448 = scmp.ne.s32.totalorder %s436, %s437
      %p449 = scmp.eq.s32.totalorder %s102, 1
      %p450 = por %p448, %p449
      %p452 = scmp.ne.s32.totalorder %s437, %s451
      %p453 = scmp.eq.s32.totalorder %s102, 0
      %p454 = por %p452, %p453
      %s456 = sadd.s32 %s455, 1
      %p459 = scmp.eq.s32.totalorder %s96, 1
      %p460 = scmp.ne.s32.totalorder %s455, %s457
      %p461 = scmp.eq.s32.totalorder %s96, 0
      %p462 = por %p460, %p461
      %p463 = scmp.ne.s32.totalorder %s455, %s457
      %p464 = scmp.eq.s32.totalorder %s101, 1
      %p465 = por %p463, %p464
      %p466 = scmp.ne.s32.totalorder %s457, %s458
      %p467 = scmp.eq.s32.totalorder %s101, 0
      %p468 = por %p466, %p467
      %p469 = scmp.ne.s32.totalorder %s457, %s458
      %p470 = scmp.eq.s32.totalorder %s102, 1
      %p471 = por %p469, %p470
      %p473 = scmp.ne.s32.totalorder %s458, %s472
      %p474 = scmp.eq.s32.totalorder %s102, 0
      %p475 = por %p473, %p474
      %s477 = sadd.s32 %s476, 1
      %p480 = scmp.eq.s32.totalorder %s96, 1
      %p481 = scmp.ne.s32.totalorder %s476, %s478
      %p482 = scmp.eq.s32.totalorder %s96, 0
      %p483 = por %p481, %p482
      %p484 = scmp.ne.s32.totalorder %s476, %s478
      %p485 = scmp.eq.s32.totalorder %s101, 1
      %p486 = por %p484, %p485
      %p487 = scmp.ne.s32.totalorder %s478, %s479
      %p488 = scmp.eq.s32.totalorder %s101, 0
      %p489 = por %p487, %p488
      %p490 = scmp.ne.s32.totalorder %s478, %s479
      %p491 = scmp.eq.s32.totalorder %s102, 1
      %p492 = por %p490, %p491
      %p494 = scmp.ne.s32.totalorder %s479, %s493
      %p495 = scmp.eq.s32.totalorder %s102, 0
      %p496 = por %p494, %p495
      %s498 = sadd.s32 %s497, 1
      %p501 = scmp.eq.s32.totalorder %s96, 1
      %p502 = scmp.ne.s32.totalorder %s497, %s499
      %p503 = scmp.eq.s32.totalorder %s96, 0
      %p504 = por %p502, %p503
      %p505 = scmp.ne.s32.totalorder %s497, %s499
      %p506 = scmp.eq.s32.totalorder %s101, 1
      %p507 = por %p505, %p506
      %p508 = scmp.ne.s32.totalorder %s499, %s500
      %p509 = scmp.eq.s32.totalorder %s101, 0
      %p510 = por %p508, %p509
      %p511 = scmp.ne.s32.totalorder %s499, %s500
      %p512 = scmp.eq.s32.totalorder %s102, 1
      %p513 = por %p511, %p512
      %p515 = scmp.ne.s32.totalorder %s500, %s514
      %p516 = scmp.eq.s32.totalorder %s102, 0
      %p517 = por %p515, %p516
      %s519 = sadd.s32 %s518, 1
      %p522 = scmp.eq.s32.totalorder %s96, 1
      %p523 = scmp.ne.s32.totalorder %s518, %s520
      %p524 = scmp.eq.s32.totalorder %s96, 0
      %p525 = por %p523, %p524
      %p526 = scmp.ne.s32.totalorder %s518, %s520
      %p527 = scmp.eq.s32.totalorder %s101, 1
      %p528 = por %p526, %p527
      %p529 = scmp.ne.s32.totalorder %s520, %s521
      %p530 = scmp.eq.s32.totalorder %s101, 0
      %p531 = por %p529, %p530
      %p532 = scmp.ne.s32.totalorder %s520, %s521
      %p533 = scmp.eq.s32.totalorder %s102, 1
      %p534 = por %p532, %p533
      %p536 = scmp.ne.s32.totalorder %s521, %s535
      %p537 = scmp.eq.s32.totalorder %s102, 0
      %p538 = por %p536, %p537
      %s540 = sadd.s32 %s539, 1
      %p543 = scmp.eq.s32.totalorder %s96, 1
      %p544 = scmp.ne.s32.totalorder %s539, %s541
      %p545 = scmp.eq.s32.totalorder %s96, 0
      %p546 = por %p544, %p545
      %p547 = scmp.ne.s32.totalorder %s539, %s541
      %p548 = scmp.eq.s32.totalorder %s101, 1
      %p549 = por %p547, %p548
      %p550 = scmp.ne.s32.totalorder %s541, %s542
      %p551 = scmp.eq.s32.totalorder %s101, 0
      %p552 = por %p550, %p551
      %p553 = scmp.ne.s32.totalorder %s541, %s542
      %p554 = scmp.eq.s32.totalorder %s102, 1
      %p555 = por %p553, %p554
      %p557 = scmp.ne.s32.totalorder %s542, %s556
      %p558 = scmp.eq.s32.totalorder %s102, 0
      %p559 = por %p557, %p558
      %s560 = ssub.s32 %s96, %s103
      %p561 = scmp.eq.s32.totalorder %s560, 0
      %s563 = sadd.s32 %s562, 1
      %s564 = scalar_select %p561, %s562, %s563
      %p567 = pneg %p561
      %p568 = scmp.eq.s32.totalorder %s96, 1
      %p569 = por %p567, %p568
      %p570 = scmp.ne.s32.totalorder %s562, %s565
      %p571 = scmp.eq.s32.totalorder %s96, 0
      %p572 = por %p570, %p571
      %p573 = scmp.ne.s32.totalorder %s562, %s565
      %p574 = scmp.eq.s32.totalorder %s101, 1
      %p575 = por %p573, %p574
      %p576 = scmp.ne.s32.totalorder %s565, %s566
      %p577 = scmp.eq.s32.totalorder %s101, 0
      %p578 = por %p576, %p577
      %p579 = scmp.ne.s32.totalorder %s565, %s566
      %p580 = scmp.eq.s32.totalorder %s102, 1
      %p581 = por %p579, %p580
      %p583 = scmp.ne.s32.totalorder %s566, %s582
      %p584 = scmp.eq.s32.totalorder %s102, 0
      %p585 = por %p583, %p584
      %s586 = ssub.s32 %s96, %s103
      %p587 = scmp.eq.s32.totalorder %s586, 0
      %s589 = sadd.s32 %s588, 1
      %s590 = scalar_select %p587, %s588, %s589
      %p593 = pneg %p587
      %p594 = scmp.eq.s32.totalorder %s96, 1
      %p595 = por %p593, %p594
      %p596 = scmp.ne.s32.totalorder %s588, %s591
      %p597 = scmp.eq.s32.totalorder %s96, 0
      %p598 = por %p596, %p597
      %p599 = scmp.ne.s32.totalorder %s588, %s591
      %p600 = scmp.eq.s32.totalorder %s101, 1
      %p601 = por %p599, %p600
      %p602 = scmp.ne.s32.totalorder %s591, %s592
      %p603 = scmp.eq.s32.totalorder %s101, 0
      %p604 = por %p602, %p603
      %p605 = scmp.ne.s32.totalorder %s591, %s592
      %p606 = scmp.eq.s32.totalorder %s102, 1
      %p607 = por %p605, %p606
      %p609 = scmp.ne.s32.totalorder %s592, %s608
      %p610 = scmp.eq.s32.totalorder %s102, 0
      %p611 = por %p609, %p610
      %s613 = sadd.s32 %s612, 1
      %p616 = scmp.eq.s32.totalorder %s96, 1
      %p617 = scmp.ne.s32.totalorder %s612, %s614
      %p618 = scmp.eq.s32.totalorder %s96, 0
      %p619 = por %p617, %p618
      %p620 = scmp.ne.s32.totalorder %s612, %s614
      %p621 = scmp.eq.s32.totalorder %s101, 1
      %p622 = por %p620, %p621
      %p623 = scmp.ne.s32.totalorder %s614, %s615
      %p624 = scmp.eq.s32.totalorder %s101, 0
      %p625 = por %p623, %p624
      %p626 = scmp.ne.s32.totalorder %s614, %s615
      %p627 = scmp.eq.s32.totalorder %s102, 1
      %p628 = por %p626, %p627
      %p630 = scmp.ne.s32.totalorder %s615, %s629
      %p631 = scmp.eq.s32.totalorder %s102, 0
      %p632 = por %p630, %p631
      %s634 = sadd.s32 %s633, 1
      %p637 = scmp.eq.s32.totalorder %s96, 1
      %p638 = scmp.ne.s32.totalorder %s633, %s635
      %p639 = scmp.eq.s32.totalorder %s96, 0
      %p640 = por %p638, %p639
      %p641 = scmp.ne.s32.totalorder %s633, %s635
      %p642 = scmp.eq.s32.totalorder %s101, 1
      %p643 = por %p641, %p642
      %p644 = scmp.ne.s32.totalorder %s635, %s636
      %p645 = scmp.eq.s32.totalorder %s101, 0
      %p646 = por %p644, %p645
      %p647 = scmp.ne.s32.totalorder %s635, %s636
      %p648 = scmp.eq.s32.totalorder %s102, 1
      %p649 = por %p647, %p648
      %p651 = scmp.ne.s32.totalorder %s636, %s650
      %p652 = scmp.eq.s32.totalorder %s102, 0
      %p653 = por %p651, %p652
      %s655 = sadd.s32 %s654, 1
      %p658 = scmp.eq.s32.totalorder %s96, 1
      %p659 = scmp.ne.s32.totalorder %s654, %s656
      %p660 = scmp.eq.s32.totalorder %s96, 0
      %p661 = por %p659, %p660
      %p662 = scmp.ne.s32.totalorder %s654, %s656
      %p663 = scmp.eq.s32.totalorder %s101, 1
      %p664 = por %p662, %p663
      %p665 = scmp.ne.s32.totalorder %s656, %s657
      %p666 = scmp.eq.s32.totalorder %s101, 0
      %p667 = por %p665, %p666
      %p668 = scmp.ne.s32.totalorder %s656, %s657
      %p669 = scmp.eq.s32.totalorder %s102, 1
      %p670 = por %p668, %p669
      %p672 = scmp.ne.s32.totalorder %s657, %s671
      %p673 = scmp.eq.s32.totalorder %s102, 0
      %p674 = por %p672, %p673
      %s676 = sadd.s32 %s675, 1
      %p679 = scmp.eq.s32.totalorder %s96, 1
      %p680 = scmp.ne.s32.totalorder %s675, %s677
      %p681 = scmp.eq.s32.totalorder %s96, 0
      %p682 = por %p680, %p681
      %p683 = scmp.ne.s32.totalorder %s675, %s677
      %p684 = scmp.eq.s32.totalorder %s101, 1
      %p685 = por %p683, %p684
      %p686 = scmp.ne.s32.totalorder %s677, %s678
      %p687 = scmp.eq.s32.totalorder %s101, 0
      %p688 = por %p686, %p687
      %p689 = scmp.ne.s32.totalorder %s677, %s678
      %p690 = scmp.eq.s32.totalorder %s102, 1
      %p691 = por %p689, %p690
      %p693 = scmp.ne.s32.totalorder %s678, %s692
      %p694 = scmp.eq.s32.totalorder %s102, 0
      %p695 = por %p693, %p694
      %s697 = sadd.s32 %s696, 1
      %p700 = scmp.eq.s32.totalorder %s96, 1
      %p701 = scmp.ne.s32.totalorder %s696, %s698
      %p702 = scmp.eq.s32.totalorder %s96, 0
      %p703 = por %p701, %p702
      %p704 = scmp.ne.s32.totalorder %s696, %s698
      %p705 = scmp.eq.s32.totalorder %s101, 1
      %p706 = por %p704, %p705
      %p707 = scmp.ne.s32.totalorder %s698, %s699
      %p708 = scmp.eq.s32.totalorder %s101, 0
      %p709 = por %p707, %p708
      %p710 = scmp.ne.s32.totalorder %s698, %s699
      %p711 = scmp.eq.s32.totalorder %s102, 1
      %p712 = por %p710, %p711
      %p714 = scmp.ne.s32.totalorder %s699, %s713
      %p715 = scmp.eq.s32.totalorder %s102, 0
      %p716 = por %p714, %p715
      %s718 = sadd.s32 %s717, 1
      %p721 = scmp.eq.s32.totalorder %s96, 1
      %p722 = scmp.ne.s32.totalorder %s717, %s719
      %p723 = scmp.eq.s32.totalorder %s96, 0
      %p724 = por %p722, %p723
      %p725 = scmp.ne.s32.totalorder %s717, %s719
      %p726 = scmp.eq.s32.totalorder %s101, 1
      %p727 = por %p725, %p726
      %p728 = scmp.ne.s32.totalorder %s719, %s720
      %p729 = scmp.eq.s32.totalorder %s101, 0
      %p730 = por %p728, %p729
      %p731 = scmp.ne.s32.totalorder %s719, %s720
      %p732 = scmp.eq.s32.totalorder %s102, 1
      %p733 = por %p731, %p732
      %p735 = scmp.ne.s32.totalorder %s720, %s734
      %p736 = scmp.eq.s32.totalorder %s102, 0
      %p737 = por %p735, %p736
      %s739 = sadd.s32 %s738, 1
      %p742 = scmp.eq.s32.totalorder %s96, 1
      %p743 = scmp.ne.s32.totalorder %s738, %s740
      %p744 = scmp.eq.s32.totalorder %s96, 0
      %p745 = por %p743, %p744
      %p746 = scmp.ne.s32.totalorder %s738, %s740
      %p747 = scmp.eq.s32.totalorder %s101, 1
      %p748 = por %p746, %p747
      %p749 = scmp.ne.s32.totalorder %s740, %s741
      %p750 = scmp.eq.s32.totalorder %s101, 0
      %p751 = por %p749, %p750
      %p752 = scmp.ne.s32.totalorder %s740, %s741
      %p753 = scmp.eq.s32.totalorder %s102, 1
      %p754 = por %p752, %p753
      %p756 = scmp.ne.s32.totalorder %s741, %s755
      %p757 = scmp.eq.s32.totalorder %s102, 0
      %p758 = por %p756, %p757
      %s760 = sadd.s32 %s759, 1
      %p763 = scmp.eq.s32.totalorder %s96, 1
      %p764 = scmp.ne.s32.totalorder %s759, %s761
      %p765 = scmp.eq.s32.totalorder %s96, 0
      %p766 = por %p764, %p765
      %p767 = scmp.ne.s32.totalorder %s759, %s761
      %p768 = scmp.eq.s32.totalorder %s101, 1
      %p769 = por %p767, %p768
      %p770 = scmp.ne.s32.totalorder %s761, %s762
      %p771 = scmp.eq.s32.totalorder %s101, 0
      %p772 = por %p770, %p771
      %p773 = scmp.ne.s32.totalorder %s761, %s762
      %p774 = scmp.eq.s32.totalorder %s102, 1
      %p775 = por %p773, %p774
      %p777 = scmp.ne.s32.totalorder %s762, %s776
      %p778 = scmp.eq.s32.totalorder %s102, 0
      %p779 = por %p777, %p778
      %s781 = sadd.s32 %s780, 1
      %p784 = scmp.eq.s32.totalorder %s96, 1
      %p785 = scmp.ne.s32.totalorder %s780, %s782
      %p786 = scmp.eq.s32.totalorder %s96, 0
      %p787 = por %p785, %p786
      %p788 = scmp.ne.s32.totalorder %s780, %s782
      %p789 = scmp.eq.s32.totalorder %s101, 1
      %p790 = por %p788, %p789
      %p791 = scmp.ne.s32.totalorder %s782, %s783
      %p792 = scmp.eq.s32.totalorder %s101, 0
      %p793 = por %p791, %p792
      %p794 = scmp.ne.s32.totalorder %s782, %s783
      %p795 = scmp.eq.s32.totalorder %s102, 1
      %p796 = por %p794, %p795
      %p798 = scmp.ne.s32.totalorder %s783, %s797
      %p799 = scmp.eq.s32.totalorder %s102, 0
      %p800 = por %p798, %p799
      %s802 = sadd.s32 %s801, 1
      %p805 = scmp.eq.s32.totalorder %s96, 1
      %p806 = scmp.ne.s32.totalorder %s801, %s803
      %p807 = scmp.eq.s32.totalorder %s96, 0
      %p808 = por %p806, %p807
      %p809 = scmp.ne.s32.totalorder %s801, %s803
      %p810 = scmp.eq.s32.totalorder %s101, 1
      %p811 = por %p809, %p810
      %p812 = scmp.ne.s32.totalorder %s803, %s804
      %p813 = scmp.eq.s32.totalorder %s101, 0
      %p814 = por %p812, %p813
      %p815 = scmp.ne.s32.totalorder %s803, %s804
      %p816 = scmp.eq.s32.totalorder %s102, 1
      %p817 = por %p815, %p816
      %p819 = scmp.ne.s32.totalorder %s804, %s818
      %p820 = scmp.eq.s32.totalorder %s102, 0
      %p821 = por %p819, %p820
      %s823 = sadd.s32 %s822, 1
      %p826 = scmp.eq.s32.totalorder %s96, 1
      %p827 = scmp.ne.s32.totalorder %s822, %s824
      %p828 = scmp.eq.s32.totalorder %s96, 0
      %p829 = por %p827, %p828
      %p830 = scmp.ne.s32.totalorder %s822, %s824
      %p831 = scmp.eq.s32.totalorder %s101, 1
      %p832 = por %p830, %p831
      %p833 = scmp.ne.s32.totalorder %s824, %s825
      %p834 = scmp.eq.s32.totalorder %s101, 0
      %p835 = por %p833, %p834
      %p836 = scmp.ne.s32.totalorder %s824, %s825
      %p837 = scmp.eq.s32.totalorder %s102, 1
      %p838 = por %p836, %p837
      %p840 = scmp.ne.s32.totalorder %s825, %s839
      %p841 = scmp.eq.s32.totalorder %s102, 0
      %p842 = por %p840, %p841
      %s844 = sadd.s32 %s843, 1
      %p847 = scmp.eq.s32.totalorder %s96, 1
      %p848 = scmp.ne.s32.totalorder %s843, %s845
      %p849 = scmp.eq.s32.totalorder %s96, 0
      %p850 = por %p848, %p849
      %p851 = scmp.ne.s32.totalorder %s843, %s845
      %p852 = scmp.eq.s32.totalorder %s101, 1
      %p853 = por %p851, %p852
      %p854 = scmp.ne.s32.totalorder %s845, %s846
      %p855 = scmp.eq.s32.totalorder %s101, 0
      %p856 = por %p854, %p855
      %p857 = scmp.ne.s32.totalorder %s845, %s846
      %p858 = scmp.eq.s32.totalorder %s102, 1
      %p859 = por %p857, %p858
      %p861 = scmp.ne.s32.totalorder %s846, %s860
      %p862 = scmp.eq.s32.totalorder %s102, 0
      %p863 = por %p861, %p862
      %s865 = sadd.s32 %s864, 1
      %p868 = scmp.eq.s32.totalorder %s96, 1
      %p869 = scmp.ne.s32.totalorder %s864, %s866
      %p870 = scmp.eq.s32.totalorder %s96, 0
      %p871 = por %p869, %p870
      %p872 = scmp.ne.s32.totalorder %s864, %s866
      %p873 = scmp.eq.s32.totalorder %s101, 1
      %p874 = por %p872, %p873
      %p875 = scmp.ne.s32.totalorder %s866, %s867
      %p876 = scmp.eq.s32.totalorder %s101, 0
      %p877 = por %p875, %p876
      %p878 = scmp.ne.s32.totalorder %s866, %s867
      %p879 = scmp.eq.s32.totalorder %s102, 1
      %p880 = por %p878, %p879
      %p882 = scmp.ne.s32.totalorder %s867, %s881
      %p883 = scmp.eq.s32.totalorder %s102, 0
      %p884 = por %p882, %p883
      %s886 = sadd.s32 %s885, 1
      %p889 = scmp.eq.s32.totalorder %s96, 1
      %p890 = scmp.ne.s32.totalorder %s885, %s887
      %p891 = scmp.eq.s32.totalorder %s96, 0
      %p892 = por %p890, %p891
      %p893 = scmp.ne.s32.totalorder %s885, %s887
      %p894 = scmp.eq.s32.totalorder %s101, 1
      %p895 = por %p893, %p894
      %p896 = scmp.ne.s32.totalorder %s887, %s888
      %p897 = scmp.eq.s32.totalorder %s101, 0
      %p898 = por %p896, %p897
      %p899 = scmp.ne.s32.totalorder %s887, %s888
      %p900 = scmp.eq.s32.totalorder %s102, 1
      %p901 = por %p899, %p900
      %p903 = scmp.ne.s32.totalorder %s888, %s902
      %p904 = scmp.eq.s32.totalorder %s102, 0
      %p905 = por %p903, %p904
      %s907 = sadd.s32 %s906, 1
      %p910 = scmp.eq.s32.totalorder %s96, 1
      %p911 = scmp.ne.s32.totalorder %s906, %s908
      %p912 = scmp.eq.s32.totalorder %s96, 0
      %p913 = por %p911, %p912
      %p914 = scmp.ne.s32.totalorder %s906, %s908
      %p915 = scmp.eq.s32.totalorder %s101, 1
      %p916 = por %p914, %p915
      %p917 = scmp.ne.s32.totalorder %s908, %s909
      %p918 = scmp.eq.s32.totalorder %s101, 0
      %p919 = por %p917, %p918
      %p920 = scmp.ne.s32.totalorder %s908, %s909
      %p921 = scmp.eq.s32.totalorder %s102, 1
      %p922 = por %p920, %p921
      %p924 = scmp.ne.s32.totalorder %s909, %s923
      %p925 = scmp.eq.s32.totalorder %s102, 0
      %p926 = por %p924, %p925
      %s927 = ssub.s32 %s96, %s103
      %p928 = scmp.eq.s32.totalorder %s927, 0
      %s930 = sadd.s32 %s929, 1
      %s931 = scalar_select %p928, %s929, %s930
      %p934 = pneg %p928
      %p935 = scmp.eq.s32.totalorder %s96, 1
      %p936 = por %p934, %p935
      %p937 = scmp.ne.s32.totalorder %s929, %s932
      %p938 = scmp.eq.s32.totalorder %s96, 0
      %p939 = por %p937, %p938
      %p940 = scmp.ne.s32.totalorder %s929, %s932
      %p941 = scmp.eq.s32.totalorder %s101, 1
      %p942 = por %p940, %p941
      %p943 = scmp.ne.s32.totalorder %s932, %s933
      %p944 = scmp.eq.s32.totalorder %s101, 0
      %p945 = por %p943, %p944
      %p946 = scmp.ne.s32.totalorder %s932, %s933
      %p947 = scmp.eq.s32.totalorder %s102, 1
      %p948 = por %p946, %p947
      %p950 = scmp.ne.s32.totalorder %s933, %s949
      %p951 = scmp.eq.s32.totalorder %s102, 0
      %p952 = por %p950, %p951
      %s953 = ssub.s32 %s96, %s103
      %p954 = scmp.eq.s32.totalorder %s953, 0
      %s956 = sadd.s32 %s955, 1
      %s957 = scalar_select %p954, %s955, %s956
      %p960 = pneg %p954
      %p961 = scmp.eq.s32.totalorder %s96, 1
      %p962 = por %p960, %p961
      %p963 = scmp.ne.s32.totalorder %s955, %s958
      %p964 = scmp.eq.s32.totalorder %s96, 0
      %p965 = por %p963, %p964
      %p966 = scmp.ne.s32.totalorder %s955, %s958
      %p967 = scmp.eq.s32.totalorder %s101, 1
      %p968 = por %p966, %p967
      %p969 = scmp.ne.s32.totalorder %s958, %s959
      %p970 = scmp.eq.s32.totalorder %s101, 0
      %p971 = por %p969, %p970
      %p972 = scmp.ne.s32.totalorder %s958, %s959
      %p973 = scmp.eq.s32.totalorder %s102, 1
      %p974 = por %p972, %p973
      %p976 = scmp.ne.s32.totalorder %s959, %s975
      %p977 = scmp.eq.s32.totalorder %s102, 0
      %p978 = por %p976, %p977
      %s979 = ssub.s32 %s96, %s103
      %p980 = scmp.eq.s32.totalorder %s979, 0
      %s982 = sadd.s32 %s981, 1
      %s983 = scalar_select %p980, %s981, %s982
      %p986 = pneg %p980
      %p987 = scmp.eq.s32.totalorder %s96, 1
      %p988 = por %p986, %p987
      %p989 = scmp.ne.s32.totalorder %s981, %s984
      %p990 = scmp.eq.s32.totalorder %s96, 0
      %p991 = por %p989, %p990
      %p992 = scmp.ne.s32.totalorder %s981, %s984
      %p993 = scmp.eq.s32.totalorder %s101, 1
      %p994 = por %p992, %p993
      %p995 = scmp.ne.s32.totalorder %s984, %s985
      %p996 = scmp.eq.s32.totalorder %s101, 0
      %p997 = por %p995, %p996
      %p998 = scmp.ne.s32.totalorder %s984, %s985
      %p999 = scmp.eq.s32.totalorder %s102, 1
      %p1000 = por %p998, %p999
      %p1002 = scmp.ne.s32.totalorder %s985, %s1001
      %p1003 = scmp.eq.s32.totalorder %s102, 0
      %p1004 = por %p1002, %p1003
      %s1005 = ssub.s32 %s96, %s103
      %p1006 = scmp.eq.s32.totalorder %s1005, 0
      %s1008 = sadd.s32 %s1007, 1
      %s1009 = scalar_select %p1006, %s1007, %s1008
      %p1012 = pneg %p1006
      %p1013 = scmp.eq.s32.totalorder %s96, 1
      %p1014 = por %p1012, %p1013
      %p1015 = scmp.ne.s32.totalorder %s1007, %s1010
      %p1016 = scmp.eq.s32.totalorder %s96, 0
      %p1017 = por %p1015, %p1016
      %p1018 = scmp.ne.s32.totalorder %s1007, %s1010
      %p1019 = scmp.eq.s32.totalorder %s101, 1
      %p1020 = por %p1018, %p1019
      %p1021 = scmp.ne.s32.totalorder %s1010, %s1011
      %p1022 = scmp.eq.s32.totalorder %s101, 0
      %p1023 = por %p1021, %p1022
      %p1024 = scmp.ne.s32.totalorder %s1010, %s1011
      %p1025 = scmp.eq.s32.totalorder %s102, 1
      %p1026 = por %p1024, %p1025
      %p1028 = scmp.ne.s32.totalorder %s1011, %s1027
      %p1029 = scmp.eq.s32.totalorder %s102, 0
      %p1030 = por %p1028, %p1029
      %s1031 = ssub.s32 %s96, %s103
      %p1032 = scmp.eq.s32.totalorder %s1031, 0
      %s1034 = sadd.s32 %s1033, 1
      %s1035 = scalar_select %p1032, %s1033, %s1034
      %p1038 = pneg %p1032
      %p1039 = scmp.eq.s32.totalorder %s96, 1
      %p1040 = por %p1038, %p1039
      %p1041 = scmp.ne.s32.totalorder %s1033, %s1036
      %p1042 = scmp.eq.s32.totalorder %s96, 0
      %p1043 = por %p1041, %p1042
      %p1044 = scmp.ne.s32.totalorder %s1033, %s1036
      %p1045 = scmp.eq.s32.totalorder %s101, 1
      %p1046 = por %p1044, %p1045
      %p1047 = scmp.ne.s32.totalorder %s1036, %s1037
      %p1048 = scmp.eq.s32.totalorder %s101, 0
      %p1049 = por %p1047, %p1048
      %p1050 = scmp.ne.s32.totalorder %s1036, %s1037
      %p1051 = scmp.eq.s32.totalorder %s102, 1
      %p1052 = por %p1050, %p1051
      %p1054 = scmp.ne.s32.totalorder %s1037, %s1053
      %p1055 = scmp.eq.s32.totalorder %s102, 0
      %p1056 = por %p1054, %p1055
      %p1057 = scmp.le.s32.totalorder 1, %s96
      %p1058 = scmp.lt.s32.totalorder %s96, 3
      %p1059 = pnand %p1057, %p1058
      %p1060 = pneg %p1059
      // Predicated region
      $region9: #{openelm_forward.1} parent=5 // pred_check
        _
      $region10: #{openelm_forward.1} parent=5 // pred_check_branch
        %1062 = sbr.rel (%p1059) target = $region12
      $region11: #{openelm_forward.1} parent=5 // pred_region
        %s1063 = ssub.s32 %s96, 1
        // Predicated region
        $region13: #{openelm_forward.1} parent=11 // pred_check
          %p1064 = pneg %p117
        $region14: #{openelm_forward.1} parent=11 // pred_check_branch
          %1066 = sbr.rel (%p1064) target = $region16
        $region15: #{openelm_forward.1} parent=11 // pred_region
          %1068 = vsyncadd [#allocation4], 0
          %s1070 = sshll.u32 %s1, 4
          %s1071 = int_to_ptr.vmem [resolvable:$true] %s1070
          %1073 = dma.vmem_to_smem %s1071, 16, [#allocation2], [#allocation4]
        $region16: #{openelm_forward.1} parent=11 // pred_fallthru
          _
        // Predicated region
        $region17: #{openelm_forward.1} parent=11 // pred_check
          %p1074 = pneg %p164
        $region18: #{openelm_forward.1} parent=11 // pred_check_branch
          %1076 = sbr.rel (%p1074) target = $region20
        $region19: #{openelm_forward.1} parent=11 // pred_region
          _
        $region20: #{openelm_forward.1} parent=11 // pred_fallthru
          _
        // Predicated region
        $region21: #{openelm_forward.1} parent=11 // pred_check
          %p1077 = pneg %p185
        $region22: #{openelm_forward.1} parent=11 // pred_check_branch
          %1079 = sbr.rel (%p1077) target = $region24
        $region23: #{openelm_forward.1} parent=11 // pred_region
          _
        $region24: #{openelm_forward.1} parent=11 // pred_fallthru
          _
        // Predicated region
        $region25: #{openelm_forward.1} parent=11 // pred_check
          %p1080 = pneg %p258
        $region26: #{openelm_forward.1} parent=11 // pred_check_branch
          %1082 = sbr.rel (%p1080) target = $region28
        $region27: #{openelm_forward.1} parent=11 // pred_region
          _
        $region28: #{openelm_forward.1} parent=11 // pred_fallthru
          _
        // Predicated region
        $region29: #{openelm_forward.1} parent=11 // pred_check
          %p1083 = pneg %p279
        $region30: #{openelm_forward.1} parent=11 // pred_check_branch
          %1085 = sbr.rel (%p1083) target = $region32
        $region31: #{openelm_forward.1} parent=11 // pred_region
          _
        $region32: #{openelm_forward.1} parent=11 // pred_fallthru
          _
        // Predicated region
        $region33: #{openelm_forward.1} parent=11 // pred_check
          %p1086 = pneg %p300
        $region34: #{openelm_forward.1} parent=11 // pred_check_branch
          %1088 = sbr.rel (%p1086) target = $region36
        $region35: #{openelm_forward.1} parent=11 // pred_region
          _
        $region36: #{openelm_forward.1} parent=11 // pred_fallthru
          _
        // Predicated region
        $region37: #{openelm_forward.1} parent=11 // pred_check
          %p1089 = pneg %p321
        $region38: #{openelm_forward.1} parent=11 // pred_check_branch
          %1091 = sbr.rel (%p1089) target = $region40
        $region39: #{openelm_forward.1} parent=11 // pred_region
          _
        $region40: #{openelm_forward.1} parent=11 // pred_fallthru
          _
        // Predicated region
        $region41: #{openelm_forward.1} parent=11 // pred_check
          %p1092 = pneg %p342
        $region42: #{openelm_forward.1} parent=11 // pred_check_branch
          %1094 = sbr.rel (%p1092) target = $region44
        $region43: #{openelm_forward.1} parent=11 // pred_region
          _
        $region44: #{openelm_forward.1} parent=11 // pred_fallthru
          _
        // Predicated region
        $region45: #{openelm_forward.1} parent=11 // pred_check
          %p1095 = pneg %p363
        $region46: #{openelm_forward.1} parent=11 // pred_check_branch
          %1097 = sbr.rel (%p1095) target = $region48
        $region47: #{openelm_forward.1} parent=11 // pred_region
          _
        $region48: #{openelm_forward.1} parent=11 // pred_fallthru
          _
        // Predicated region
        $region49: #{openelm_forward.1} parent=11 // pred_check
          %p1098 = pneg %p384
        $region50: #{openelm_forward.1} parent=11 // pred_check_branch
          %1100 = sbr.rel (%p1098) target = $region52
        $region51: #{openelm_forward.1} parent=11 // pred_region
          _
        $region52: #{openelm_forward.1} parent=11 // pred_fallthru
          _
        // Predicated region
        $region53: #{openelm_forward.1} parent=11 // pred_check
          %p1101 = pneg %p405
        $region54: #{openelm_forward.1} parent=11 // pred_check_branch
          %1103 = sbr.rel (%p1101) target = $region56
        $region55: #{openelm_forward.1} parent=11 // pred_region
          _
        $region56: #{openelm_forward.1} parent=11 // pred_fallthru
          _
        // Predicated region
        $region57: #{openelm_forward.1} parent=11 // pred_check
          %p1104 = pneg %p426
        $region58: #{openelm_forward.1} parent=11 // pred_check_branch
          %1106 = sbr.rel (%p1104) target = $region60
        $region59: #{openelm_forward.1} parent=11 // pred_region
          _
        $region60: #{openelm_forward.1} parent=11 // pred_fallthru
          _
        // Predicated region
        $region61: #{openelm_forward.1} parent=11 // pred_check
          %p1107 = pneg %p447
        $region62: #{openelm_forward.1} parent=11 // pred_check_branch
          %1109 = sbr.rel (%p1107) target = $region64
        $region63: #{openelm_forward.1} parent=11 // pred_region
          _
        $region64: #{openelm_forward.1} parent=11 // pred_fallthru
          _
        // Predicated region
        $region65: #{openelm_forward.1} parent=11 // pred_check
          %p1110 = pneg %p468
        $region66: #{openelm_forward.1} parent=11 // pred_check_branch
          %1112 = sbr.rel (%p1110) target = $region68
        $region67: #{openelm_forward.1} parent=11 // pred_region
          _
        $region68: #{openelm_forward.1} parent=11 // pred_fallthru
          _
        // Predicated region
        $region69: #{openelm_forward.1} parent=11 // pred_check
          %p1113 = pneg %p489
        $region70: #{openelm_forward.1} parent=11 // pred_check_branch
          %1115 = sbr.rel (%p1113) target = $region72
        $region71: #{openelm_forward.1} parent=11 // pred_region
          _
        $region72: #{openelm_forward.1} parent=11 // pred_fallthru
          _
        // Predicated region
        $region73: #{openelm_forward.1} parent=11 // pred_check
          %p1116 = pneg %p510
        $region74: #{openelm_forward.1} parent=11 // pred_check_branch
          %1118 = sbr.rel (%p1116) target = $region76
        $region75: #{openelm_forward.1} parent=11 // pred_region
          _
        $region76: #{openelm_forward.1} parent=11 // pred_fallthru
          _
        // Predicated region
        $region77: #{openelm_forward.1} parent=11 // pred_check
          %p1119 = pneg %p531
        $region78: #{openelm_forward.1} parent=11 // pred_check_branch
          %1121 = sbr.rel (%p1119) target = $region80
        $region79: #{openelm_forward.1} parent=11 // pred_region
          _
        $region80: #{openelm_forward.1} parent=11 // pred_fallthru
          _
        // Predicated region
        $region81: #{openelm_forward.1} parent=11 // pred_check
          %p1122 = pneg %p552
        $region82: #{openelm_forward.1} parent=11 // pred_check_branch
          %1124 = sbr.rel (%p1122) target = $region84
        $region83: #{openelm_forward.1} parent=11 // pred_region
          _
        $region84: #{openelm_forward.1} parent=11 // pred_fallthru
          _
        // Predicated region
        $region85: #{openelm_forward.1} parent=11 // pred_check
          %p1125 = pneg %p625
        $region86: #{openelm_forward.1} parent=11 // pred_check_branch
          %1127 = sbr.rel (%p1125) target = $region88
        $region87: #{openelm_forward.1} parent=11 // pred_region
          _
        $region88: #{openelm_forward.1} parent=11 // pred_fallthru
          _
        // Predicated region
        $region89: #{openelm_forward.1} parent=11 // pred_check
          %p1128 = pneg %p646
        $region90: #{openelm_forward.1} parent=11 // pred_check_branch
          %1130 = sbr.rel (%p1128) target = $region92
        $region91: #{openelm_forward.1} parent=11 // pred_region
          _
        $region92: #{openelm_forward.1} parent=11 // pred_fallthru
          _
        // Predicated region
        $region93: #{openelm_forward.1} parent=11 // pred_check
          %p1131 = pneg %p667
        $region94: #{openelm_forward.1} parent=11 // pred_check_branch
          %1133 = sbr.rel (%p1131) target = $region96
        $region95: #{openelm_forward.1} parent=11 // pred_region
          _
        $region96: #{openelm_forward.1} parent=11 // pred_fallthru
          _
        // Predicated region
        $region97: #{openelm_forward.1} parent=11 // pred_check
          %p1134 = pneg %p688
        $region98: #{openelm_forward.1} parent=11 // pred_check_branch
          %1136 = sbr.rel (%p1134) target = $region100
        $region99: #{openelm_forward.1} parent=11 // pred_region
          _
        $region100: #{openelm_forward.1} parent=11 // pred_fallthru
          _
        // Predicated region
        $region101: #{openelm_forward.1} parent=11 // pred_check
          %p1137 = pneg %p709
        $region102: #{openelm_forward.1} parent=11 // pred_check_branch
          %1139 = sbr.rel (%p1137) target = $region104
        $region103: #{openelm_forward.1} parent=11 // pred_region
          _
        $region104: #{openelm_forward.1} parent=11 // pred_fallthru
          _
        // Predicated region
        $region105: #{openelm_forward.1} parent=11 // pred_check
          %p1140 = pneg %p730
        $region106: #{openelm_forward.1} parent=11 // pred_check_branch
          %1142 = sbr.rel (%p1140) target = $region108
        $region107: #{openelm_forward.1} parent=11 // pred_region
          _
        $region108: #{openelm_forward.1} parent=11 // pred_fallthru
          _
        // Predicated region
        $region109: #{openelm_forward.1} parent=11 // pred_check
          %p1143 = pneg %p751
        $region110: #{openelm_forward.1} parent=11 // pred_check_branch
          %1145 = sbr.rel (%p1143) target = $region112
        $region111: #{openelm_forward.1} parent=11 // pred_region
          _
        $region112: #{openelm_forward.1} parent=11 // pred_fallthru
          _
        // Predicated region
        $region113: #{openelm_forward.1} parent=11 // pred_check
          %p1146 = pneg %p772
        $region114: #{openelm_forward.1} parent=11 // pred_check_branch
          %1148 = sbr.rel (%p1146) target = $region116
        $region115: #{openelm_forward.1} parent=11 // pred_region
          _
        $region116: #{openelm_forward.1} parent=11 // pred_fallthru
          _
        // Predicated region
        $region117: #{openelm_forward.1} parent=11 // pred_check
          %p1149 = pneg %p793
        $region118: #{openelm_forward.1} parent=11 // pred_check_branch
          %1151 = sbr.rel (%p1149) target = $region120
        $region119: #{openelm_forward.1} parent=11 // pred_region
          _
        $region120: #{openelm_forward.1} parent=11 // pred_fallthru
          _
        // Predicated region
        $region121: #{openelm_forward.1} parent=11 // pred_check
          %p1152 = pneg %p814
        $region122: #{openelm_forward.1} parent=11 // pred_check_branch
          %1154 = sbr.rel (%p1152) target = $region124
        $region123: #{openelm_forward.1} parent=11 // pred_region
          _
        $region124: #{openelm_forward.1} parent=11 // pred_fallthru
          _
        // Predicated region
        $region125: #{openelm_forward.1} parent=11 // pred_check
          %p1155 = pneg %p835
        $region126: #{openelm_forward.1} parent=11 // pred_check_branch
          %1157 = sbr.rel (%p1155) target = $region128
        $region127: #{openelm_forward.1} parent=11 // pred_region
          _
        $region128: #{openelm_forward.1} parent=11 // pred_fallthru
          _
        // Predicated region
        $region129: #{openelm_forward.1} parent=11 // pred_check
          %p1158 = pneg %p856
        $region130: #{openelm_forward.1} parent=11 // pred_check_branch
          %1160 = sbr.rel (%p1158) target = $region132
        $region131: #{openelm_forward.1} parent=11 // pred_region
          _
        $region132: #{openelm_forward.1} parent=11 // pred_fallthru
          _
        // Predicated region
        $region133: #{openelm_forward.1} parent=11 // pred_check
          %p1161 = pneg %p877
        $region134: #{openelm_forward.1} parent=11 // pred_check_branch
          %1163 = sbr.rel (%p1161) target = $region136
        $region135: #{openelm_forward.1} parent=11 // pred_region
          _
        $region136: #{openelm_forward.1} parent=11 // pred_fallthru
          _
        // Predicated region
        $region137: #{openelm_forward.1} parent=11 // pred_check
          %p1164 = pneg %p898
        $region138: #{openelm_forward.1} parent=11 // pred_check_branch
          %1166 = sbr.rel (%p1164) target = $region140
        $region139: #{openelm_forward.1} parent=11 // pred_region
          _
        $region140: #{openelm_forward.1} parent=11 // pred_fallthru
          _
        // Predicated region
        $region141: #{openelm_forward.1} parent=11 // pred_check
          %p1167 = pneg %p919
        $region142: #{openelm_forward.1} parent=11 // pred_check_branch
          %1169 = sbr.rel (%p1167) target = $region144
        $region143: #{openelm_forward.1} parent=11 // pred_region
          _
        $region144: #{openelm_forward.1} parent=11 // pred_fallthru
          _
      $region12: #{openelm_forward.1} parent=5 // pred_fallthru
        _
      %p1170 = scmp.lt.s32.totalorder %s96, 2
      // Predicated region
      $region145: #{openelm_forward.1} parent=5 // pred_check
        %p1171 = pneg %p1170
      $region146: #{openelm_forward.1} parent=5 // pred_check_branch
        %1173 = sbr.rel (%p1171) target = $region148
      $region147: #{openelm_forward.1} parent=5 // pred_region
        // Predicated region
        $region149: #{openelm_forward.1} parent=147 // pred_check
          %p1174 = pneg %p137
        $region150: #{openelm_forward.1} parent=147 // pred_check_branch
          %1176 = sbr.rel (%p1174) target = $region152
        $region151: #{openelm_forward.1} parent=147 // pred_region
          %p1177 = scmp.lt.s32.totalorder %s96, 1
          %s1178 = scalar_select %p1177, %s96, 1
          %s1179 = smul.addr %s1178, 8
          %s1180 = scalar_lea.vmem %s3, %s1179
        $region152: #{openelm_forward.1} parent=147 // pred_fallthru
          _
        // Predicated region
        $region153: #{openelm_forward.1} parent=147 // pred_check
          %p1181 = pneg %p205
        $region154: #{openelm_forward.1} parent=147 // pred_check_branch
          %1183 = sbr.rel (%p1181) target = $region156
        $region155: #{openelm_forward.1} parent=147 // pred_region
          %p1184 = scmp.lt.s32.totalorder %s96, 1
          %s1185 = scalar_select %p1184, %s96, 1
          %s1186 = smul.addr %s1185, 2
          %s1187 = smul.addr %s1186, 8
          %s1188 = scalar_lea.vmem %s9, %s1187
        $region156: #{openelm_forward.1} parent=147 // pred_fallthru
          _
        // Predicated region
        $region157: #{openelm_forward.1} parent=147 // pred_check
          %p1189 = pneg %p231
        $region158: #{openelm_forward.1} parent=147 // pred_check_branch
          %1191 = sbr.rel (%p1189) target = $region160
        $region159: #{openelm_forward.1} parent=147 // pred_region
          %p1192 = scmp.lt.s32.totalorder %s96, 1
          %s1193 = scalar_select %p1192, %s96, 1
          %s1194 = smul.addr %s1193, 2
          %s1195 = smul.addr %s1194, 8
          %s1196 = scalar_lea.vmem %s11, %s1195
        $region160: #{openelm_forward.1} parent=147 // pred_fallthru
          _
        // Predicated region
        $region161: #{openelm_forward.1} parent=147 // pred_check
          %p1197 = pneg %p572
        $region162: #{openelm_forward.1} parent=147 // pred_check_branch
          %1199 = sbr.rel (%p1197) target = $region164
        $region163: #{openelm_forward.1} parent=147 // pred_region
          %p1200 = scmp.lt.s32.totalorder %s96, 1
          %s1201 = scalar_select %p1200, %s96, 1
          %s1202 = smul.addr %s1201, 2
          %s1203 = smul.addr %s1202, 8
          %s1204 = scalar_lea.vmem %s43, %s1203
        $region164: #{openelm_forward.1} parent=147 // pred_fallthru
          _
        // Predicated region
        $region165: #{openelm_forward.1} parent=147 // pred_check
          %p1205 = pneg %p598
        $region166: #{openelm_forward.1} parent=147 // pred_check_branch
          %1207 = sbr.rel (%p1205) target = $region168
        $region167: #{openelm_forward.1} parent=147 // pred_region
          %p1208 = scmp.lt.s32.totalorder %s96, 1
          %s1209 = scalar_select %p1208, %s96, 1
          %s1210 = smul.addr %s1209, 2
          %s1211 = smul.addr %s1210, 8
          %s1212 = scalar_lea.vmem %s45, %s1211
        $region168: #{openelm_forward.1} parent=147 // pred_fallthru
          _
      $region148: #{openelm_forward.1} parent=5 // pred_fallthru
        _
      %p1213 = scmp.le.s32.totalorder 1, %s96
      %p1214 = scmp.lt.s32.totalorder %s96, 3
      %p1215 = pnand %p1213, %p1214
      %p1216 = pneg %p1215
      // Predicated region
      $region169: #{openelm_forward.1} parent=5 // pred_check
        _
      $region170: #{openelm_forward.1} parent=5 // pred_check_branch
        %1218 = sbr.rel (%p1215) target = $region172
      $region171: #{openelm_forward.1} parent=5 // pred_region
        %s1219 = ssub.s32 %s96, 1
        // Predicated region
        $region173: #{openelm_forward.1} parent=171 // pred_check
          %p1220 = pneg %p117
        $region174: #{openelm_forward.1} parent=171 // pred_check_branch
          %1222 = sbr.rel (%p1220) target = $region176
        $region175: #{openelm_forward.1} parent=171 // pred_region
          %1224 = dma.done [#allocation4], 16
        $region176: #{openelm_forward.1} parent=171 // pred_fallthru
          _
        %1225 = sfence
        %p1226 = pneg %p117
        %p1227 = pneg %p114
        %p1228 = scmp.lt.s32.totalorder %s101, 1
        %s1229 = scalar_select %p1228, %s101, 1
        %s1230 = smul.addr %s1229, 8
        %s1231 = scalar_lea.vmem %s3, %s1230
        %p1232 = pneg %p143
        %p1233 = pneg %p140
        %p1234 = pneg %p164
        %p1235 = pneg %p161
        %p1236 = pneg %p185
        %p1237 = pneg %p182
        %p1238 = scmp.lt.s32.totalorder %s101, 1
        %s1239 = scalar_select %p1238, %s101, 1
        %s1240 = smul.addr %s1239, 2
        %s1241 = smul.addr %s1240, 8
        %s1242 = scalar_lea.vmem %s9, %s1241
        %p1243 = pneg %p211
        %p1244 = pneg %p208
        %p1245 = scmp.lt.s32.totalorder %s101, 1
        %s1246 = scalar_select %p1245, %s101, 1
        %s1247 = smul.addr %s1246, 2
        %s1248 = smul.addr %s1247, 8
        %s1249 = scalar_lea.vmem %s11, %s1248
        %p1250 = pneg %p237
        %p1251 = pneg %p234
        %p1252 = pneg %p258
        %p1253 = pneg %p255
        %p1254 = pneg %p279
        %p1255 = pneg %p276
        %p1256 = pneg %p300
        %p1257 = pneg %p297
        %p1258 = pneg %p321
        %p1259 = pneg %p318
        %p1260 = pneg %p342
        %p1261 = pneg %p339
        %p1262 = pneg %p363
        %p1263 = pneg %p360
        %p1264 = pneg %p384
        %p1265 = pneg %p381
        %p1266 = pneg %p405
        %p1267 = pneg %p402
        %p1268 = pneg %p426
        %p1269 = pneg %p423
        %p1270 = pneg %p447
        %p1271 = pneg %p444
        %p1272 = pneg %p468
        %p1273 = pneg %p465
        %p1274 = pneg %p489
        %p1275 = pneg %p486
        %p1276 = pneg %p510
        %p1277 = pneg %p507
        %p1278 = pneg %p531
        %p1279 = pneg %p528
        %p1280 = pneg %p552
        %p1281 = pneg %p549
        %p1282 = scmp.lt.s32.totalorder %s101, 1
        %s1283 = scalar_select %p1282, %s101, 1
        %s1284 = smul.addr %s1283, 2
        %s1285 = smul.addr %s1284, 8
        %s1286 = scalar_lea.vmem %s43, %s1285
        %p1287 = pneg %p578
        %p1288 = pneg %p575
        %p1289 = scmp.lt.s32.totalorder %s101, 1
        %s1290 = scalar_select %p1289, %s101, 1
        %s1291 = smul.addr %s1290, 2
        %s1292 = smul.addr %s1291, 8
        %s1293 = scalar_lea.vmem %s45, %s1292
        %p1294 = pneg %p604
        %p1295 = pneg %p601
        %p1296 = pneg %p625
        %p1297 = pneg %p622
        %p1298 = pneg %p646
        %p1299 = pneg %p643
        %p1300 = pneg %p667
        %p1301 = pneg %p664
        %p1302 = pneg %p688
        %p1303 = pneg %p685
        %p1304 = pneg %p709
        %p1305 = pneg %p706
        %p1306 = pneg %p730
        %p1307 = pneg %p727
        %p1308 = pneg %p751
        %p1309 = pneg %p748
        %p1310 = pneg %p772
        %p1311 = pneg %p769
        %p1312 = pneg %p793
        %p1313 = pneg %p790
        %p1314 = pneg %p814
        %p1315 = pneg %p811
        %p1316 = pneg %p835
        %p1317 = pneg %p832
        %p1318 = pneg %p856
        %p1319 = pneg %p853
        %p1320 = pneg %p877
        %p1321 = pneg %p874
        %p1322 = pneg %p898
        %p1323 = pneg %p895
        %p1324 = pneg %p919
        %p1325 = pneg %p916
        %p1326 = pneg %p945
        %p1327 = pneg %p942
        %s1328 = sand.u32 %s932, 1
        %s1329 = scalar_lea.sflag [#allocation3], %s1328
        %s1330 = sand.u32 %s932, 1
        %s1331 = smul.addr %s1330, 8
        %s1332 = scalar_lea.vmem [#allocation5], %s1331
        %p1333 = pneg %p971
        %p1334 = pneg %p968
        %p1335 = scmp.lt.s32.totalorder %s101, 1
        %s1336 = scalar_select %p1335, %s101, 1
        %s1337 = smul.addr %s1336, 2
        %s1338 = smul.addr %s1337, 8
        %s1339 = scalar_lea.vmem %s79, %s1338
        %p1340 = pneg %p997
        %p1341 = pneg %p994
        %p1342 = scmp.lt.s32.totalorder %s101, 1
        %s1343 = scalar_select %p1342, %s101, 1
        %s1344 = smul.addr %s1343, 2
        %s1345 = smul.addr %s1344, 8
        %s1346 = scalar_lea.vmem %s81, %s1345
        %p1347 = pneg %p1023
        %p1348 = pneg %p1020
        %p1349 = scmp.lt.s32.totalorder %s101, 1
        %s1350 = scalar_select %p1349, %s101, 1
        %s1351 = smul.addr %s1350, 2
        %s1352 = smul.addr %s1351, 8
        %s1353 = scalar_lea.vmem %s83, %s1352
        %p1354 = pneg %p1049
        %p1355 = pneg %p1046
        %p1356 = scmp.lt.s32.totalorder %s101, 1
        %s1357 = scalar_select %p1356, %s101, 1
        %s1358 = smul.addr %s1357, 2
        %s1359 = smul.addr %s1358, 8
        %s1360 = scalar_lea.vmem %s85, %s1359
        %p1361 = scmp.lt.s32.totalorder %s101, 1
        %s1362 = scalar_select %p1361, %s101, 1
        %s1363 = smul.addr %s1362, 8
        %s1364 = scalar_lea.vmem %s3, %s1363
        %p1365 = scmp.lt.s32.totalorder %s101, 1
        %s1366 = scalar_select %p1365, %s101, 1
        %s1367 = smul.addr %s1366, 2
        %s1368 = smul.addr %s1367, 8
        %s1369 = scalar_lea.vmem %s9, %s1368
        %p1370 = scmp.lt.s32.totalorder %s101, 1
        %s1371 = scalar_select %p1370, %s101, 1
        %s1372 = smul.addr %s1371, 2
        %s1373 = smul.addr %s1372, 8
        %s1374 = scalar_lea.vmem %s11, %s1373
        %p1375 = scmp.lt.s32.totalorder %s101, 1
        %s1376 = scalar_select %p1375, %s101, 1
        %s1377 = smul.addr %s1376, 2
        %s1378 = smul.addr %s1377, 8
        %s1379 = scalar_lea.vmem %s43, %s1378
        %p1380 = scmp.lt.s32.totalorder %s101, 1
        %s1381 = scalar_select %p1380, %s101, 1
        %s1382 = smul.addr %s1381, 2
        %s1383 = smul.addr %s1382, 8
        %s1384 = scalar_lea.vmem %s45, %s1383
        %p1385 = scmp.lt.s32.totalorder %s101, 1
        %s1386 = scalar_select %p1385, %s101, 1
        %s1387 = smul.addr %s1386, 2
        %s1388 = smul.addr %s1387, 8
        %s1389 = scalar_lea.vmem %s79, %s1388
        %p1390 = scmp.lt.s32.totalorder %s101, 1
        %s1391 = scalar_select %p1390, %s101, 1
        %s1392 = smul.addr %s1391, 2
        %s1393 = smul.addr %s1392, 8
        %s1394 = scalar_lea.vmem %s81, %s1393
        %p1395 = scmp.lt.s32.totalorder %s101, 1
        %s1396 = scalar_select %p1395, %s101, 1
        %s1397 = smul.addr %s1396, 2
        %s1398 = smul.addr %s1397, 8
        %s1399 = scalar_lea.vmem %s83, %s1398
        %p1400 = scmp.lt.s32.totalorder %s101, 1
        %s1401 = scalar_select %p1400, %s101, 1
        %s1402 = smul.addr %s1401, 2
        %s1403 = smul.addr %s1402, 8
        %s1404 = scalar_lea.vmem %s85, %s1403
        %s1406 = sld [smem:[#allocation2]]
        %v1407 = vlaneseq
        %v1408 = vand.u32 %v1407, 127
        %v1409 = vld [vmem:[%s1364] sm:$0xff]
        %1410 = vset.pattern.permute.xlu0 0
        %1411 = vperm.xlu0 %1410, %v1409
        %v1412 = vpop.permute.xlu0 %1411
        %vm1413 = vcmp.eq.s32.totalorder %v1408, %v1412
        %v1414 = vsel %vm1413, 1.0, 0.0
        %v1415 = vld [vmem:[%s5] sm:$0xf]
        %v1416 = vld [vmem:[%s5 + $0x4] sm:$0xf]
        %v1417 = vld [vmem:[%s5 + $0x8] sm:$0xf]
        %v1418 = vld [vmem:[%s5 + $0xc] sm:$0xf]
        %v1419 = vld [vmem:[%s5 + $0x10] sm:$0xf]
        %v1420 = vld [vmem:[%s5 + $0x14] sm:$0xf]
        %v1421 = vld [vmem:[%s5 + $0x18] sm:$0xf]
        %v1422 = vld [vmem:[%s5 + $0x1c] sm:$0xf]
        %v1423 = vld [vmem:[%s5 + $0x20] sm:$0xf]
        %v1424 = vld [vmem:[%s5 + $0x24] sm:$0xf]
        %v1425 = vld [vmem:[%s5 + $0x28] sm:$0xf]
        %v1426 = vld [vmem:[%s5 + $0x2c] sm:$0xf]
        %v1427 = vld [vmem:[%s5 + $0x30] sm:$0xf]
        %v1428 = vld [vmem:[%s5 + $0x34] sm:$0xf]
        %v1429 = vld [vmem:[%s5 + $0x38] sm:$0xf]
        %v1430 = vld [vmem:[%s5 + $0x3c] sm:$0xf]
        %v1431 = vpack.c.bf16 %v1414, %v1414
        %v1448 = vunpack.c.l.b16 %v1415
        %v1449 = vunpack.c.l.b16 %v1416
        %v1450 = vunpack.c.l.b16 %v1417
        %v1451 = vunpack.c.l.b16 %v1418
        %v1452 = vunpack.c.l.b16 %v1419
        %v1453 = vunpack.c.l.b16 %v1420
        %v1454 = vunpack.c.l.b16 %v1421
        %v1455 = vunpack.c.l.b16 %v1422
        %v1456 = vunpack.c.l.b16 %v1423
        %v1457 = vunpack.c.l.b16 %v1424
        %v1458 = vunpack.c.l.b16 %v1425
        %v1459 = vunpack.c.l.b16 %v1426
        %v1460 = vunpack.c.l.b16 %v1427
        %v1461 = vunpack.c.l.b16 %v1428
        %v1462 = vunpack.c.l.b16 %v1429
        %v1463 = vunpack.c.l.b16 %v1430
        %v1464 = vpack.c.b16 %v1449, %v1448
        %v1465 = vpack.c.b16 %v1451, %v1450
        %v1466 = vpack.c.b16 %v1453, %v1452
        %v1467 = vpack.c.b16 %v1455, %v1454
        %v1468 = vpack.c.b16 %v1457, %v1456
        %v1469 = vpack.c.b16 %v1459, %v1458
        %v1470 = vpack.c.b16 %v1461, %v1460
        %v1471 = vpack.c.b16 %v1463, %v1462
        %1480 = vmatpush.bf16.msra.mxu0 %v1471
        %1481 = vmatpush.bf16.msra.mxu0 %v1470
        %1482 = vmatpush.bf16.msra.mxu0 %v1469
        %1483 = vmatpush.bf16.msra.mxu0 %v1468
        %1484 = vmatpush.bf16.msra.mxu0 %v1467
        %1485 = vmatpush.bf16.msra.mxu0 %v1466
        %1486 = vmatpush.bf16.msra.mxu0 %v1465
        %1487 = vmatpush.bf16.msra.mxu0 %v1464
        %1488 = vmatmul.bf16.gmra.mxu0 %v1431
        %v1489 = vpop.f32.mrf.mxu0
        %v1490 = vadd.f32 0.0, %v1489
        %v1491 = vpop.f32.mrf.mxu0
        %1492 = vdwg.mxu0
        %v1493 = vmul.f32 %v1490, %v1490
        %vm1494 = vcmask 261120
        %v1495 = vsel %vm1494, %v1493, 0.0
        %1496 = vadd.xlane.f32.xlu0 %v1495
        %v1497 = vpop.xlane.xlu0 %1496
        %v1498 = vrcp.pop 32.0
        %v1499 = vmul.f32 32.0, %v1498
        %v1500 = vsub.f32 1.0, %v1499
        %v1501 = vmul.f32 %v1498, %v1500
        %v1502 = vadd.f32 %v1498, %v1501
        %vm1503 = vweird.f32 %v1498
        %v1504 = vsel %vm1503, %v1498, %v1502
        %v1505 = vmul.f32 %v1497, %v1504
        %v1506 = vadd.f32 %v1505, 1e-06
        %v1507 = vrsqrt.pop %v1506
        %v1508 = vmul.f32 %v1507, %v1506
        %v1509 = vmul.f32 %v1508, %v1507
        %v1510 = vmul.f32 0.5, %v1509
        %v1511 = vsub.f32 1.5, %v1510
        %v1512 = vmul.f32 %v1507, %v1511
        %vm1513 = vweird.f32 %v1506
        %vm1514 = vweird.f32 %v1507
        %vm1515 = vmor %vm1513, %vm1514
        %v1516 = vsel %vm1515, %v1507, %v1512
        %v1517 = vmul.f32 %v1490, %v1516
        %v1518 = vld [vmem:[%s13] sm:$0x1]
        %v1520 = vperm.slane %v1518, 0
        %v1522 = vmul.f32 %v1517, %v1520
        %v1523 = vld [vmem:[%s25] sm:$0xf]
        %v1524 = vld [vmem:[%s25 + $0x4] sm:$0xf]
        %v1525 = vld [vmem:[%s25 + $0x8] sm:$0xf]
        %v1526 = vld [vmem:[%s25 + $0xc] sm:$0xf]
        %v1527 = vpack.c.bf16 %v1522, %v1522
        %v1532 = vunpack.c.l.b16 %v1523
        %v1533 = vunpack.c.l.b16 %v1524
        %v1534 = vunpack.c.l.b16 %v1525
        %v1535 = vunpack.c.l.b16 %v1526
        %v1536 = vpack.c.b16 %v1533, %v1532
        %v1537 = vpack.c.b16 %v1535, %v1534
        %v1541 = vsel %vm1494, %v1527, 0
        %1543 = vmatpush.bf16.msra.mxu0 0
        %1544 = vmatpush.bf16.msra.mxu0 0
        %1545 = vmatpush.bf16.msra.mxu0 0
        %1546 = vmatpush.bf16.msra.mxu0 0
        %1547 = vmatpush.bf16.msra.mxu0 0
        %1548 = vmatpush.bf16.msra.mxu0 0
        %1549 = vmatpush.bf16.msra.mxu0 %v1537
        %1550 = vmatpush.bf16.msra.mxu0 %v1536
        %1551 = vmatmul.bf16.gmra.mxu0 %v1541
        %v1552 = vpop.f32.mrf.mxu0
        %v1553 = vadd.f32 0.0, %v1552
        %v1554 = vpop.f32.mrf.mxu0
        %1555 = vdwg.mxu0
        %v1556 = vmul.f32 %v1553, %v1553
        %v1557 = vld [vmem:[%s27] sm:$0xff]
        %v1558 = vld [vmem:[%s27 + $0x8] sm:$0xff]
        %v1559 = vld [vmem:[%s27 + $0x10] sm:$0xff]
        %v1560 = vld [vmem:[%s27 + $0x18] sm:$0xff]
        %v1561 = vld [vmem:[%s27 + $0x20] sm:$0xff]
        %v1562 = vld [vmem:[%s27 + $0x28] sm:$0xff]
        %vm1563 = vcmask 392192
        %v1565 = vsel %vm1563, %v1556, 0
        %1567 = vmatpush.msra.mxu0 0.0
        %1568 = vmatpush.msra.mxu0 0.0
        %1569 = vmatpush.msra.mxu0 0.0
        %1570 = vmatpush.msra.mxu0 0.0
        %1571 = vmatpush.msra.mxu0 0.0
        %1572 = vmatpush.msra.mxu0 0.0
        %1573 = vmatpush.msra.mxu0 0.0
        %1574 = vmatpush.msra.mxu0 0.0
        %1575 = vmatpush.msra.mxu0 0.0
        %1576 = vmatpush.msra.mxu0 0.0
        %1577 = vmatpush.msra.mxu0 %v1562
        %1578 = vmatpush.msra.mxu0 %v1561
        %1579 = vmatpush.msra.mxu0 %v1560
        %1580 = vmatpush.msra.mxu0 %v1559
        %1581 = vmatpush.msra.mxu0 %v1558
        %1582 = vmatpush.msra.mxu0 %v1557
        %1583 = vmatmul.f32.gmra.mxu0 %v1565
        %v1584 = vpop.f32.mrf.mxu0
        %v1585 = vadd.f32 1e-06, %v1584
        %1586 = vdwg.mxu0
        %v1587 = vrsqrt.pop %v1585
        %v1588 = vmul.f32 %v1587, %v1585
        %v1589 = vmul.f32 %v1588, %v1587
        %v1590 = vmul.f32 0.5, %v1589
        %v1591 = vsub.f32 1.5, %v1590
        %v1592 = vmul.f32 %v1587, %v1591
        %vm1593 = vweird.f32 %v1585
        %vm1594 = vweird.f32 %v1587
        %vm1595 = vmor %vm1593, %vm1594
        %v1596 = vsel %vm1595, %v1587, %v1592
        %v1597 = vmul.f32 %v1553, %v1596
        %v1598 = vld [vmem:[%s15] sm:$0x1]
        %v1600 = vperm.slane %v1598, 0
        %v1602 = vmul.f32 %v1597, %v1600
        %s1603 = scalar_lea.vmem %s19, %s1406
        %v1604 = vld [vmem:[%s1603] sm:$0xff]
        %s1605 = scalar_lea.vmem %s21, %s1406
        %v1606 = vld [vmem:[%s1605] sm:$0xff]
        %v1607 = vmul.f32 %v1602, %v1604
        %v1608 = vld [vmem:[%s29] sm:$0xff]
        %v1609 = vld [vmem:[%s29 + $0x8] sm:$0xff]
        %v1610 = vld [vmem:[%s29 + $0x10] sm:$0xff]
        %v1611 = vld [vmem:[%s29 + $0x18] sm:$0xff]
        %v1612 = vld [vmem:[%s29 + $0x20] sm:$0xff]
        %v1613 = vld [vmem:[%s29 + $0x28] sm:$0xff]
        %v1615 = vsel %vm1563, %v1602, 0
        %1617 = vmatpush.msra.mxu0 0.0
        %1618 = vmatpush.msra.mxu0 0.0
        %1619 = vmatpush.msra.mxu0 0.0
        %1620 = vmatpush.msra.mxu0 0.0
        %1621 = vmatpush.msra.mxu0 0.0
        %1622 = vmatpush.msra.mxu0 0.0
        %1623 = vmatpush.msra.mxu0 0.0
        %1624 = vmatpush.msra.mxu0 0.0
        %1625 = vmatpush.msra.mxu0 0.0
        %1626 = vmatpush.msra.mxu0 0.0
        %1627 = vmatpush.msra.mxu0 %v1613
        %1628 = vmatpush.msra.mxu0 %v1612
        %1629 = vmatpush.msra.mxu0 %v1611
        %1630 = vmatpush.msra.mxu0 %v1610
        %1631 = vmatpush.msra.mxu0 %v1609
        %1632 = vmatpush.msra.mxu0 %v1608
        %1633 = vmatmul.f32.gmra.mxu0 %v1615
        %v1634 = vpop.f32.mrf.mxu0
        %v1635 = vadd.f32 0.0, %v1634
        %1636 = vdwg.mxu0
        %v1637 = vmul.f32 %v1635, %v1606
        %v1638 = vadd.f32 %v1607, %v1637
        %v1639 = vld [vmem:[%s1369] sm:$0xff]
        %v1640 = vld [vmem:[%s1369 + $0x8] sm:$0xff]
        %vm1641 = vcmask 130048
        %1642 = vst.msk [vmem:[%s1389] sm:$0xff] %vm1641, %v1639
        %1643 = vst.msk [vmem:[%s1389 + $0x8] sm:$0xff] %vm1641, %v1640
        %v1644 = vld [vmem:[%s1374] sm:$0xff]
        %v1645 = vld [vmem:[%s1374 + $0x8] sm:$0xff]
        %1646 = vst.msk [vmem:[%s1394] sm:$0xff] %vm1641, %v1644
        %1647 = vst.msk [vmem:[%s1394 + $0x8] sm:$0xff] %vm1641, %v1645
        %1649 = vrot.lane.b32.xlu0 %v1638, 96
        %v1650 = vpop.permute.xlu0 %1649
        %s1652 = scalar_lea.vmem %s1389, %s1406
        %1653 = vst.msk [vmem:[%s1652] sm:$0xff] %vm1641, %v1650
        %1655 = vrot.lane.b32.xlu0 %v1553, 80
        %v1656 = vpop.permute.xlu0 %1655
        %s1658 = scalar_lea.vmem %s1394, %s1406
        %1659 = vst.msk [vmem:[%s1658] sm:$0xff] %vm1641, %v1656
        %v1660 = vld [vmem:[%s1389] sm:$0xff]
        %v1661 = vld [vmem:[%s1389 + $0x8] sm:$0xff]
        %v1662 = vld [vmem:[%s1394] sm:$0xff]
        %v1663 = vld [vmem:[%s1394 + $0x8] sm:$0xff]
        %v1664 = vld [vmem:[%s31] sm:$0xf]
        %v1665 = vld [vmem:[%s31 + $0x4] sm:$0xf]
        %v1666 = vld [vmem:[%s31 + $0x8] sm:$0xf]
        %v1667 = vld [vmem:[%s31 + $0xc] sm:$0xf]
        %v1668 = vld [vmem:[%s31 + $0x10] sm:$0xf]
        %v1669 = vld [vmem:[%s31 + $0x14] sm:$0xf]
        %v1670 = vld [vmem:[%s31 + $0x18] sm:$0xf]
        %v1671 = vld [vmem:[%s31 + $0x1c] sm:$0xf]
        %v1672 = vpack.c.bf16 %v1661, %v1660
        %v1681 = vunpack.c.l.b16 %v1664
        %v1682 = vunpack.c.l.b16 %v1665
        %v1683 = vunpack.c.l.b16 %v1666
        %v1684 = vunpack.c.l.b16 %v1667
        %v1685 = vunpack.c.l.b16 %v1668
        %v1686 = vunpack.c.l.b16 %v1669
        %v1687 = vunpack.c.l.b16 %v1670
        %v1688 = vunpack.c.l.b16 %v1671
        %v1689 = vpack.c.b16 %v1682, %v1681
        %v1690 = vpack.c.b16 %v1684, %v1683
        %v1691 = vpack.c.b16 %v1686, %v1685
        %v1692 = vpack.c.b16 %v1688, %v1687
        %v1694 = vsel %vm1641, %v1689, 0
        %v1697 = vsel %vm1641, %v1690, 0
        %v1700 = vsel %vm1641, %v1691, 0
        %v1703 = vsel %vm1641, %v1692, 0
        %1705 = vmatpush.bf16.msra.mxu0 0
        %1706 = vmatpush.bf16.msra.mxu0 0
        %1707 = vmatpush.bf16.msra.mxu0 0
        %1708 = vmatpush.bf16.msra.mxu0 0
        %1709 = vmatpush.bf16.msra.mxu0 0
        %1710 = vmatpush.bf16.msra.mxu0 0
        %1711 = vmatpush.bf16.msra.mxu0 0
        %1712 = vmatpush.bf16.msra.mxu0 %v1672
        %1713 = vmatmul.bf16.gmra.mxu0 %v1694
        %v1714 = vpop.f32.mrf.mxu0
        %v1715 = vadd.f32 0.0, %v1714
        %v1716 = vpop.f32.mrf.mxu0
        %v1717 = vadd.f32 0.0, %v1716
        %1718 = vmatmul.bf16.gmra.mxu0 %v1697
        %v1719 = vpop.f32.mrf.mxu0
        %v1720 = vadd.f32 0.0, %v1719
        %v1721 = vpop.f32.mrf.mxu0
        %v1722 = vadd.f32 0.0, %v1721
        %1723 = vmatmul.bf16.gmra.mxu0 %v1700
        %v1724 = vpop.f32.mrf.mxu0
        %v1725 = vadd.f32 0.0, %v1724
        %v1726 = vpop.f32.mrf.mxu0
        %v1727 = vadd.f32 0.0, %v1726
        %1728 = vmatmul.bf16.gmra.mxu0 %v1703
        %v1729 = vpop.f32.mrf.mxu0
        %v1730 = vadd.f32 0.0, %v1729
        %v1731 = vpop.f32.mrf.mxu0
        %v1732 = vadd.f32 0.0, %v1731
        %1733 = vdwg.mxu0
        %v1734 = vld [vmem:[%s33] sm:$0xf]
        %v1735 = vld [vmem:[%s33 + $0x4] sm:$0xf]
        %v1736 = vpack.c.bf16 %v1717, %v1715
        %v1737 = vpack.c.bf16 %v1722, %v1720
        %v1738 = vpack.c.bf16 %v1727, %v1725
        %v1739 = vpack.c.bf16 %v1732, %v1730
        %v1742 = vunpack.c.l.b16 %v1734
        %v1743 = vunpack.c.l.b16 %v1735
        %v1744 = vpack.c.b16 %v1743, %v1742
        %v1747 = vsel %vm1641, %v1736, 0
        %v1750 = vsel %vm1641, %v1737, 0
        %v1753 = vsel %vm1641, %v1738, 0
        %v1756 = vsel %vm1641, %v1739, 0
        %1758 = vmatpush.bf16.msra.mxu0 0
        %1759 = vmatpush.bf16.msra.mxu0 0
        %1760 = vmatpush.bf16.msra.mxu0 0
        %1761 = vmatpush.bf16.msra.mxu0 0
        %1762 = vmatpush.bf16.msra.mxu0 0
        %1763 = vmatpush.bf16.msra.mxu0 0
        %1764 = vmatpush.bf16.msra.mxu0 0
        %1765 = vmatpush.bf16.msra.mxu0 %v1744
        %1766 = vmatmul.bf16.gmra.mxu0 %v1747
        %v1767 = vpop.f32.mrf.mxu0
        %v1768 = vadd.f32 0.0, %v1767
        %v1769 = vpop.f32.mrf.mxu0
        %v1770 = vadd.f32 0.0, %v1769
        %1771 = vmatmul.bf16.gmra.mxu0 %v1750
        %v1772 = vpop.f32.mrf.mxu0
        %v1773 = vadd.f32 0.0, %v1772
        %v1774 = vpop.f32.mrf.mxu0
        %v1775 = vadd.f32 0.0, %v1774
        %1776 = vmatmul.bf16.gmra.mxu0 %v1753
        %v1777 = vpop.f32.mrf.mxu0
        %v1778 = vadd.f32 0.0, %v1777
        %v1779 = vpop.f32.mrf.mxu0
        %v1780 = vadd.f32 0.0, %v1779
        %1781 = vmatmul.bf16.gmra.mxu0 %v1756
        %v1782 = vpop.f32.mrf.mxu0
        %v1783 = vadd.f32 0.0, %v1782
        %v1784 = vpop.f32.mrf.mxu0
        %v1785 = vadd.f32 0.0, %v1784
        %1786 = vdwg.mxu0
        %v1787 = vld [vmem:[%s35] sm:$0xff]
        %v1788 = vld [vmem:[%s35 + $0x8] sm:$0xff]
        %v1789 = vld [vmem:[%s35 + $0x10] sm:$0xff]
        %v1790 = vld [vmem:[%s35 + $0x18] sm:$0xff]
        %v1791 = vld [vmem:[%s35 + $0x20] sm:$0xff]
        %v1792 = vld [vmem:[%s35 + $0x28] sm:$0xff]
        %v1793 = vld [vmem:[%s35 + $0x30] sm:$0xff]
        %v1794 = vld [vmem:[%s35 + $0x38] sm:$0xff]
        %v1795 = vmul.f32 %v1768, %v1787
        %v1796 = vmul.f32 %v1770, %v1788
        %v1797 = vmul.f32 %v1773, %v1789
        %v1798 = vmul.f32 %v1775, %v1790
        %v1799 = vmul.f32 %v1778, %v1791
        %v1800 = vmul.f32 %v1780, %v1792
        %v1801 = vmul.f32 %v1783, %v1793
        %v1802 = vmul.f32 %v1785, %v1794
        %v1803 = vpack.c.bf16 %v1663, %v1662
        %1804 = vmatpush.bf16.msra.mxu0 0
        %1805 = vmatpush.bf16.msra.mxu0 0
        %1806 = vmatpush.bf16.msra.mxu0 0
        %1807 = vmatpush.bf16.msra.mxu0 0
        %1808 = vmatpush.bf16.msra.mxu0 0
        %1809 = vmatpush.bf16.msra.mxu0 0
        %1810 = vmatpush.bf16.msra.mxu0 0
        %1811 = vmatpush.bf16.msra.mxu0 %v1803
        %1812 = vmatmul.bf16.gmra.mxu0 %v1694
        %v1813 = vpop.f32.mrf.mxu0
        %v1814 = vadd.f32 0.0, %v1813
        %v1815 = vpop.f32.mrf.mxu0
        %v1816 = vadd.f32 0.0, %v1815
        %1817 = vmatmul.bf16.gmra.mxu0 %v1697
        %v1818 = vpop.f32.mrf.mxu0
        %v1819 = vadd.f32 0.0, %v1818
        %v1820 = vpop.f32.mrf.mxu0
        %v1821 = vadd.f32 0.0, %v1820
        %1822 = vmatmul.bf16.gmra.mxu0 %v1700
        %v1823 = vpop.f32.mrf.mxu0
        %v1824 = vadd.f32 0.0, %v1823
        %v1825 = vpop.f32.mrf.mxu0
        %v1826 = vadd.f32 0.0, %v1825
        %1827 = vmatmul.bf16.gmra.mxu0 %v1703
        %v1828 = vpop.f32.mrf.mxu0
        %v1829 = vadd.f32 0.0, %v1828
        %v1830 = vpop.f32.mrf.mxu0
        %v1831 = vadd.f32 0.0, %v1830
        %1832 = vdwg.mxu0
        %v1833 = vpack.c.bf16 %v1816, %v1814
        %v1834 = vpack.c.bf16 %v1821, %v1819
        %v1835 = vpack.c.bf16 %v1826, %v1824
        %v1836 = vpack.c.bf16 %v1831, %v1829
        %v1838 = vsel %vm1641, %v1833, 0
        %v1841 = vsel %vm1641, %v1834, 0
        %v1844 = vsel %vm1641, %v1835, 0
        %v1847 = vsel %vm1641, %v1836, 0
        %1849 = vmatpush.bf16.msra.mxu0 0
        %1850 = vmatpush.bf16.msra.mxu0 0
        %1851 = vmatpush.bf16.msra.mxu0 0
        %1852 = vmatpush.bf16.msra.mxu0 0
        %1853 = vmatpush.bf16.msra.mxu0 0
        %1854 = vmatpush.bf16.msra.mxu0 0
        %1855 = vmatpush.bf16.msra.mxu0 0
        %1856 = vmatpush.bf16.msra.mxu0 %v1744
        %1857 = vmatmul.bf16.gmra.mxu0 %v1838
        %v1858 = vpop.f32.mrf.mxu0
        %v1859 = vadd.f32 0.0, %v1858
        %v1860 = vpop.f32.mrf.mxu0
        %v1861 = vadd.f32 0.0, %v1860
        %1862 = vmatmul.bf16.gmra.mxu0 %v1841
        %v1863 = vpop.f32.mrf.mxu0
        %v1864 = vadd.f32 0.0, %v1863
        %v1865 = vpop.f32.mrf.mxu0
        %v1866 = vadd.f32 0.0, %v1865
        %1867 = vmatmul.bf16.gmra.mxu0 %v1844
        %v1868 = vpop.f32.mrf.mxu0
        %v1869 = vadd.f32 0.0, %v1868
        %v1870 = vpop.f32.mrf.mxu0
        %v1871 = vadd.f32 0.0, %v1870
        %1872 = vmatmul.bf16.gmra.mxu0 %v1847
        %v1873 = vpop.f32.mrf.mxu0
        %v1874 = vadd.f32 0.0, %v1873
        %v1875 = vpop.f32.mrf.mxu0
        %v1876 = vadd.f32 0.0, %v1875
        %1877 = vdwg.mxu0
        %v1878 = vmul.f32 %v1859, %v1787
        %v1879 = vmul.f32 %v1861, %v1788
        %v1880 = vmul.f32 %v1864, %v1789
        %v1881 = vmul.f32 %v1866, %v1790
        %v1882 = vmul.f32 %v1869, %v1791
        %v1883 = vmul.f32 %v1871, %v1792
        %v1884 = vmul.f32 %v1874, %v1793
        %v1885 = vmul.f32 %v1876, %v1794
        %v1886 = vpack.c.bf16 %v1638, %v1638
        %v1887 = vpack.c.bf16 %v1796, %v1795
        %v1888 = vpack.c.bf16 %v1798, %v1797
        %v1889 = vpack.c.bf16 %v1800, %v1799
        %v1890 = vpack.c.bf16 %v1802, %v1801
        %s1891 = scalar_lea.vmem %s23, %s1406
        %v1892 = vld [vmem:[%s1891] sm:$0xff]
        %v1894 = vsel %vm1494, %v1886, 0
        %v1897 = vsel %vm1494, %v1887, 0
        %v1900 = vsel %vm1494, %v1888, 0
        %v1903 = vsel %vm1494, %v1889, 0
        %v1906 = vsel %vm1494, %v1890, 0
        %1908 = vmatpush.bf16.xpose.msra.mxu0 0
        %1909 = vmatpush.bf16.xpose.msra.mxu0 0
        %1910 = vmatpush.bf16.xpose.msra.mxu0 0
        %1911 = vmatpush.bf16.xpose.msra.mxu0 0
        %1912 = vmatpush.bf16.xpose.msra.mxu0 %v1906
        %1913 = vmatpush.bf16.xpose.msra.mxu0 %v1903
        %1914 = vmatpush.bf16.xpose.msra.mxu0 %v1900
        %1915 = vmatpush.bf16.xpose.msra.mxu0 %v1897
        %1916 = vmatmul.bf16.gmra.mxu0 %v1894
        %v1917 = vpop.f32.mrf.mxu0
        %v1918 = vadd.f32 %v1892, %v1917
        %v1919 = vpop.f32.mrf.mxu0
        %1920 = vdwg.mxu0
        %vm1921 = vcmask 523264
        %v1922 = vsel %vm1921, %v1918, -inf
        %1923 = vmax.xlane.f32.xlu0 %v1922
        %v1924 = vpop.xlane.xlu0 %1923
        %v1925 = vsub.f32 %v1918, %v1924
        %v1926 = vmul.f32 %v1925, 1.442695
        %v1927 = vpow.pop %v1926
        %v1929 = vsel %vm1921, %v1927, 0
        %1931 = vmatpush.msra.mxu0 0.0
        %1932 = vmatpush.msra.mxu0 0.0
        %1933 = vmatpush.msra.mxu0 0.0
        %1934 = vmatpush.msra.mxu0 0.0
        %1935 = vmatpush.msra.mxu0 0.0
        %1936 = vmatpush.msra.mxu0 0.0
        %1937 = vmatpush.msra.mxu0 0.0
        %1938 = vmatpush.msra.mxu0 0.0
        %1939 = vmatpush.msra.mxu0 %v1794
        %1940 = vmatpush.msra.mxu0 %v1793
        %1941 = vmatpush.msra.mxu0 %v1792
        %1942 = vmatpush.msra.mxu0 %v1791
        %1943 = vmatpush.msra.mxu0 %v1790
        %1944 = vmatpush.msra.mxu0 %v1789
        %1945 = vmatpush.msra.mxu0 %v1788
        %1946 = vmatpush.msra.mxu0 %v1787
        %1947 = vmatmul.f32.gmra.mxu0 %v1929
        %v1948 = vpop.f32.mrf.mxu0
        %v1949 = vadd.f32 0.0, %v1948
        %1950 = vdwg.mxu0
        %v1951 = vpack.c.bf16 %v1927, %v1927
        %v1952 = vpack.c.bf16 %v1879, %v1878
        %v1953 = vpack.c.bf16 %v1881, %v1880
        %v1954 = vpack.c.bf16 %v1883, %v1882
        %v1955 = vpack.c.bf16 %v1885, %v1884
        %v1957 = vsel %vm1921, %v1951, 0
        %1959 = vmatpush.bf16.msra.mxu0 0
        %1960 = vmatpush.bf16.msra.mxu0 0
        %1961 = vmatpush.bf16.msra.mxu0 0
        %1962 = vmatpush.bf16.msra.mxu0 0
        %1963 = vmatpush.bf16.msra.mxu0 %v1955
        %1964 = vmatpush.bf16.msra.mxu0 %v1954
        %1965 = vmatpush.bf16.msra.mxu0 %v1953
        %1966 = vmatpush.bf16.msra.mxu0 %v1952
        %1967 = vmatmul.bf16.gmra.mxu0 %v1957
        %v1968 = vpop.f32.mrf.mxu0
        %v1969 = vadd.f32 0.0, %v1968
        %v1970 = vpop.f32.mrf.mxu0
        %1971 = vdwg.mxu0
        %v1972 = vrcp.pop %v1949
        %v1973 = vmul.f32 %v1969, %v1972
        %v1974 = vld [vmem:[%s37] sm:$0xf]
        %v1975 = vld [vmem:[%s37 + $0x4] sm:$0xf]
        %v1976 = vld [vmem:[%s37 + $0x8] sm:$0xf]
        %v1977 = vld [vmem:[%s37 + $0xc] sm:$0xf]
        %v1978 = vpack.c.bf16 %v1973, %v1973
        %v1983 = vunpack.c.l.b16 %v1974
        %v1984 = vunpack.c.l.b16 %v1975
        %v1985 = vunpack.c.l.b16 %v1976
        %v1986 = vunpack.c.l.b16 %v1977
        %v1987 = vpack.c.b16 %v1984, %v1983
        %v1988 = vpack.c.b16 %v1986, %v1985
        %v1992 = vsel %vm1494, %v1978, 0
        %1994 = vmatpush.bf16.msra.mxu0 0
        %1995 = vmatpush.bf16.msra.mxu0 0
        %1996 = vmatpush.bf16.msra.mxu0 0
        %1997 = vmatpush.bf16.msra.mxu0 0
        %1998 = vmatpush.bf16.msra.mxu0 0
        %1999 = vmatpush.bf16.msra.mxu0 0
        %2000 = vmatpush.bf16.msra.mxu0 %v1988
        %2001 = vmatpush.bf16.msra.mxu0 %v1987
        %2002 = vmatmul.bf16.gmra.mxu0 %v1992
        %v2003 = vpop.f32.mrf.mxu0
        %v2004 = vadd.f32 0.0, %v2003
        %v2005 = vpop.f32.mrf.mxu0
        %2006 = vdwg.mxu0
        %v2007 = vadd.f32 %v1490, %v2004
        %v2008 = vmul.f32 %v2007, %v2007
        %v2009 = vsel %vm1494, %v2008, 0.0
        %2010 = vadd.xlane.f32.xlu0 %v2009
        %v2011 = vpop.xlane.xlu0 %2010
        %v2012 = vmul.f32 %v2011, %v1504
        %v2013 = vadd.f32 %v2012, 1e-06
        %v2014 = vrsqrt.pop %v2013
        %v2015 = vmul.f32 %v2014, %v2013
        %v2016 = vmul.f32 %v2015, %v2014
        %v2017 = vmul.f32 0.5, %v2016
        %v2018 = vsub.f32 1.5, %v2017
        %v2019 = vmul.f32 %v2014, %v2018
        %vm2020 = vweird.f32 %v2013
        %vm2021 = vweird.f32 %v2014
        %vm2022 = vmor %vm2020, %vm2021
        %v2023 = vsel %vm2022, %v2014, %v2019
        %v2024 = vmul.f32 %v2007, %v2023
        %v2025 = vld [vmem:[%s17] sm:$0x1]
        %v2027 = vperm.slane %v2025, 0
        %v2029 = vmul.f32 %v2024, %v2027
        %v2030 = vld [vmem:[%s39] sm:$0xf]
        %v2031 = vld [vmem:[%s39 + $0x4] sm:$0xf]
        %v2032 = vld [vmem:[%s39 + $0x8] sm:$0xf]
        %v2033 = vld [vmem:[%s39 + $0xc] sm:$0xf]
        %v2034 = vpack.c.bf16 %v2029, %v2029
        %v2039 = vunpack.c.l.b16 %v2030
        %v2040 = vunpack.c.l.b16 %v2031
        %v2041 = vunpack.c.l.b16 %v2032
        %v2042 = vunpack.c.l.b16 %v2033
        %v2043 = vpack.c.b16 %v2040, %v2039
        %v2044 = vpack.c.b16 %v2042, %v2041
        %v2048 = vsel %vm1494, %v2034, 0
        %2050 = vmatpush.bf16.msra.mxu0 0
        %2051 = vmatpush.bf16.msra.mxu0 0
        %2052 = vmatpush.bf16.msra.mxu0 0
        %2053 = vmatpush.bf16.msra.mxu0 0
        %2054 = vmatpush.bf16.msra.mxu0 0
        %2055 = vmatpush.bf16.msra.mxu0 0
        %2056 = vmatpush.bf16.msra.mxu0 %v2044
        %2057 = vmatpush.bf16.msra.mxu0 %v2043
        %2058 = vmatmul.bf16.gmra.mxu0 %v2048
        %v2059 = vpop.f32.mrf.mxu0
        %v2060 = vadd.f32 0.0, %v2059
        %v2061 = vpop.f32.mrf.mxu0
        %2062 = vdwg.mxu0
        %v2063 = vxor.u32 %v2060, 2147483648
        %v2064 = vmul.f32 %v2063, 1.442695
        %v2065 = vpow.pop %v2064
        %v2066 = vadd.f32 %v2065, 1.0
        %v2067 = vrcp.pop %v2066
        %v2068 = vmul.f32 %v2066, %v2067
        %v2069 = vsub.f32 1.0, %v2068
        %v2070 = vmul.f32 %v2067, %v2069
        %v2071 = vadd.f32 %v2067, %v2070
        %vm2072 = vweird.f32 %v2066
        %vm2073 = vweird.f32 %v2067
        %vm2074 = vmor %vm2072, %vm2073
        %v2075 = vsel %vm2074, %v2067, %v2071
        %v2076 = vand.u32 2147483647, %v2066
        %vm2077 = vcmp.eq.f32.partialorder %v2076, 8.507059e+37
        %v2078 = vand.u32 %v2066, 2147483648
        %v2079 = vor.u32 1.1754944e-38, %v2078
        %v2080 = vsel %vm2077, %v2079, %v2075
        %v2081 = vmul.f32 1.0, %v2080
        %v2082 = vmul.f32 %v2060, %v2081
        %2084 = vrot.lane.b32.xlu0 %v2060, 96
        %v2085 = vpop.permute.xlu0 %2084
        %v2087 = vmul.f32 %v2082, %v2085
        %v2088 = vld [vmem:[%s41] sm:$0xf]
        %v2089 = vld [vmem:[%s41 + $0x4] sm:$0xf]
        %v2090 = vld [vmem:[%s41 + $0x8] sm:$0xf]
        %v2091 = vld [vmem:[%s41 + $0xc] sm:$0xf]
        %v2092 = vpack.c.bf16 %v2087, %v2087
        %v2097 = vunpack.c.l.b16 %v2088
        %v2098 = vunpack.c.l.b16 %v2089
        %v2099 = vunpack.c.l.b16 %v2090
        %v2100 = vunpack.c.l.b16 %v2091
        %v2101 = vpack.c.b16 %v2098, %v2097
        %v2102 = vpack.c.b16 %v2100, %v2099
        %v2106 = vsel %vm1494, %v2092, 0
        %2108 = vmatpush.bf16.msra.mxu0 0
        %2109 = vmatpush.bf16.msra.mxu0 0
        %2110 = vmatpush.bf16.msra.mxu0 0
        %2111 = vmatpush.bf16.msra.mxu0 0
        %2112 = vmatpush.bf16.msra.mxu0 0
        %2113 = vmatpush.bf16.msra.mxu0 0
        %2114 = vmatpush.bf16.msra.mxu0 %v2102
        %2115 = vmatpush.bf16.msra.mxu0 %v2101
        %2116 = vmatmul.bf16.gmra.mxu0 %v2106
        %v2117 = vpop.f32.mrf.mxu0
        %v2118 = vadd.f32 0.0, %v2117
        %v2119 = vpop.f32.mrf.mxu0
        %2120 = vdwg.mxu0
        %v2121 = vadd.f32 %v2007, %v2118
        %v2122 = vmul.f32 %v2121, %v2121
        %v2123 = vsel %vm1494, %v2122, 0.0
        %2124 = vadd.xlane.f32.xlu0 %v2123
        %v2125 = vpop.xlane.xlu0 %2124
        %v2126 = vmul.f32 %v2125, %v1504
        %v2127 = vadd.f32 %v2126, 1e-06
        %v2128 = vrsqrt.pop %v2127
        %v2129 = vmul.f32 %v2128, %v2127
        %v2130 = vmul.f32 %v2129, %v2128
        %v2131 = vmul.f32 0.5, %v2130
        %v2132 = vsub.f32 1.5, %v2131
        %v2133 = vmul.f32 %v2128, %v2132
        %vm2134 = vweird.f32 %v2127
        %vm2135 = vweird.f32 %v2128
        %vm2136 = vmor %vm2134, %vm2135
        %v2137 = vsel %vm2136, %v2128, %v2133
        %v2138 = vmul.f32 %v2121, %v2137
        %v2139 = vld [vmem:[%s47] sm:$0x1]
        %v2141 = vperm.slane %v2139, 0
        %v2143 = vmul.f32 %v2138, %v2141
        %v2144 = vld [vmem:[%s59] sm:$0xf]
        %v2145 = vld [vmem:[%s59 + $0x4] sm:$0xf]
        %v2146 = vld [vmem:[%s59 + $0x8] sm:$0xf]
        %v2147 = vld [vmem:[%s59 + $0xc] sm:$0xf]
        %v2148 = vpack.c.bf16 %v2143, %v2143
        %v2153 = vunpack.c.l.b16 %v2144
        %v2154 = vunpack.c.l.b16 %v2145
        %v2155 = vunpack.c.l.b16 %v2146
        %v2156 = vunpack.c.l.b16 %v2147
        %v2157 = vpack.c.b16 %v2154, %v2153
        %v2158 = vpack.c.b16 %v2156, %v2155
        %v2162 = vsel %vm1494, %v2148, 0
        %2164 = vmatpush.bf16.msra.mxu0 0
        %2165 = vmatpush.bf16.msra.mxu0 0
        %2166 = vmatpush.bf16.msra.mxu0 0
        %2167 = vmatpush.bf16.msra.mxu0 0
        %2168 = vmatpush.bf16.msra.mxu0 0
        %2169 = vmatpush.bf16.msra.mxu0 0
        %2170 = vmatpush.bf16.msra.mxu0 %v2158
        %2171 = vmatpush.bf16.msra.mxu0 %v2157
        %2172 = vmatmul.bf16.gmra.mxu0 %v2162
        %v2173 = vpop.f32.mrf.mxu0
        %v2174 = vadd.f32 0.0, %v2173
        %v2175 = vpop.f32.mrf.mxu0
        %2176 = vdwg.mxu0
        %v2177 = vmul.f32 %v2174, %v2174
        %v2178 = vld [vmem:[%s61] sm:$0xff]
        %v2179 = vld [vmem:[%s61 + $0x8] sm:$0xff]
        %v2180 = vld [vmem:[%s61 + $0x10] sm:$0xff]
        %v2181 = vld [vmem:[%s61 + $0x18] sm:$0xff]
        %v2182 = vld [vmem:[%s61 + $0x20] sm:$0xff]
        %v2183 = vld [vmem:[%s61 + $0x28] sm:$0xff]
        %v2184 = vld [vmem:[%s61 + $0x30] sm:$0xff]
        %v2185 = vld [vmem:[%s61 + $0x38] sm:$0xff]
        %v2186 = vld [vmem:[%s61 + $0x40] sm:$0xff]
        %v2187 = vld [vmem:[%s61 + $0x48] sm:$0xff]
        %v2188 = vld [vmem:[%s61 + $0x50] sm:$0xff]
        %v2189 = vld [vmem:[%s61 + $0x58] sm:$0xff]
        %vm2190 = vcmask 785408
        %v2192 = vsel %vm2190, %v2177, 0
        %2194 = vmatpush.msra.mxu0 0.0
        %2195 = vmatpush.msra.mxu0 0.0
        %2196 = vmatpush.msra.mxu0 0.0
        %2197 = vmatpush.msra.mxu0 0.0
        %2198 = vmatpush.msra.mxu0 %v2189
        %2199 = vmatpush.msra.mxu0 %v2188
        %2200 = vmatpush.msra.mxu0 %v2187
        %2201 = vmatpush.msra.mxu0 %v2186
        %2202 = vmatpush.msra.mxu0 %v2185
        %2203 = vmatpush.msra.mxu0 %v2184
        %2204 = vmatpush.msra.mxu0 %v2183
        %2205 = vmatpush.msra.mxu0 %v2182
        %2206 = vmatpush.msra.mxu0 %v2181
        %2207 = vmatpush.msra.mxu0 %v2180
        %2208 = vmatpush.msra.mxu0 %v2179
        %2209 = vmatpush.msra.mxu0 %v2178
        %2210 = vmatmul.f32.gmra.mxu0 %v2192
        %v2211 = vpop.f32.mrf.mxu0
        %v2212 = vadd.f32 1e-06, %v2211
        %2213 = vdwg.mxu0
        %v2214 = vrsqrt.pop %v2212
        %v2215 = vmul.f32 %v2214, %v2212
        %v2216 = vmul.f32 %v2215, %v2214
        %v2217 = vmul.f32 0.5, %v2216
        %v2218 = vsub.f32 1.5, %v2217
        %v2219 = vmul.f32 %v2214, %v2218
        %vm2220 = vweird.f32 %v2212
        %vm2221 = vweird.f32 %v2214
        %vm2222 = vmor %vm2220, %vm2221
        %v2223 = vsel %vm2222, %v2214, %v2219
        %v2224 = vmul.f32 %v2174, %v2223
        %v2225 = vld [vmem:[%s49] sm:$0x1]
        %v2227 = vperm.slane %v2225, 0
        %v2229 = vmul.f32 %v2224, %v2227
        %s2230 = scalar_lea.vmem %s53, %s1406
        %v2231 = vld [vmem:[%s2230] sm:$0xff]
        %s2232 = scalar_lea.vmem %s55, %s1406
        %v2233 = vld [vmem:[%s2232] sm:$0xff]
        %v2234 = vmul.f32 %v2229, %v2231
        %v2235 = vld [vmem:[%s63] sm:$0xff]
        %v2236 = vld [vmem:[%s63 + $0x8] sm:$0xff]
        %v2237 = vld [vmem:[%s63 + $0x10] sm:$0xff]
        %v2238 = vld [vmem:[%s63 + $0x18] sm:$0xff]
        %v2239 = vld [vmem:[%s63 + $0x20] sm:$0xff]
        %v2240 = vld [vmem:[%s63 + $0x28] sm:$0xff]
        %v2241 = vld [vmem:[%s63 + $0x30] sm:$0xff]
        %v2242 = vld [vmem:[%s63 + $0x38] sm:$0xff]
        %v2243 = vld [vmem:[%s63 + $0x40] sm:$0xff]
        %v2244 = vld [vmem:[%s63 + $0x48] sm:$0xff]
        %v2245 = vld [vmem:[%s63 + $0x50] sm:$0xff]
        %v2246 = vld [vmem:[%s63 + $0x58] sm:$0xff]
        %v2248 = vsel %vm2190, %v2229, 0
        %2250 = vmatpush.msra.mxu0 0.0
        %2251 = vmatpush.msra.mxu0 0.0
        %2252 = vmatpush.msra.mxu0 0.0
        %2253 = vmatpush.msra.mxu0 0.0
        %2254 = vmatpush.msra.mxu0 %v2246
        %2255 = vmatpush.msra.mxu0 %v2245
        %2256 = vmatpush.msra.mxu0 %v2244
        %2257 = vmatpush.msra.mxu0 %v2243
        %2258 = vmatpush.msra.mxu0 %v2242
        %2259 = vmatpush.msra.mxu0 %v2241
        %2260 = vmatpush.msra.mxu0 %v2240
        %2261 = vmatpush.msra.mxu0 %v2239
        %2262 = vmatpush.msra.mxu0 %v2238
        %2263 = vmatpush.msra.mxu0 %v2237
        %2264 = vmatpush.msra.mxu0 %v2236
        %2265 = vmatpush.msra.mxu0 %v2235
        %2266 = vmatmul.f32.gmra.mxu0 %v2248
        %v2267 = vpop.f32.mrf.mxu0
        %v2268 = vadd.f32 0.0, %v2267
        %2269 = vdwg.mxu0
        %v2270 = vmul.f32 %v2268, %v2233
        %v2271 = vadd.f32 %v2234, %v2270
        %v2272 = vld [vmem:[%s1379] sm:$0xff]
        %v2273 = vld [vmem:[%s1379 + $0x8] sm:$0xff]
        %2274 = vst.msk [vmem:[%s1399] sm:$0xff] %vm1494, %v2272
        %2275 = vst.msk [vmem:[%s1399 + $0x8] sm:$0xff] %vm1494, %v2273
        %v2276 = vld [vmem:[%s1384] sm:$0xff]
        %v2277 = vld [vmem:[%s1384 + $0x8] sm:$0xff]
        %2278 = vst.msk [vmem:[%s1404] sm:$0xff] %vm1494, %v2276
        %2279 = vst.msk [vmem:[%s1404 + $0x8] sm:$0xff] %vm1494, %v2277
        %2281 = vrot.lane.b32.xlu0 %v2271, 64
        %v2282 = vpop.permute.xlu0 %2281
        %s2284 = scalar_lea.vmem %s1399, %s1406
        %2285 = vst.msk [vmem:[%s2284] sm:$0xff] %vm1494, %v2282
        %2287 = vrot.lane.b32.xlu0 %v2174, 32
        %v2288 = vpop.permute.xlu0 %2287
        %s2290 = scalar_lea.vmem %s1404, %s1406
        %2291 = vst.msk [vmem:[%s2290] sm:$0xff] %vm1494, %v2288
        %v2292 = vld [vmem:[%s1399] sm:$0xff]
        %v2293 = vld [vmem:[%s1399 + $0x8] sm:$0xff]
        %v2294 = vld [vmem:[%s1404] sm:$0xff]
        %v2295 = vld [vmem:[%s1404 + $0x8] sm:$0xff]
        %v2296 = vld [vmem:[%s65] sm:$0xf]
        %v2297 = vld [vmem:[%s65 + $0x4] sm:$0xf]
        %v2298 = vld [vmem:[%s65 + $0x8] sm:$0xf]
        %v2299 = vld [vmem:[%s65 + $0xc] sm:$0xf]
        %v2300 = vld [vmem:[%s65 + $0x10] sm:$0xf]
        %v2301 = vld [vmem:[%s65 + $0x14] sm:$0xf]
        %v2302 = vld [vmem:[%s65 + $0x18] sm:$0xf]
        %v2303 = vld [vmem:[%s65 + $0x1c] sm:$0xf]
        %v2304 = vld [vmem:[%s65 + $0x20] sm:$0xf]
        %v2305 = vld [vmem:[%s65 + $0x24] sm:$0xf]
        %v2306 = vld [vmem:[%s65 + $0x28] sm:$0xf]
        %v2307 = vld [vmem:[%s65 + $0x2c] sm:$0xf]
        %v2308 = vld [vmem:[%s65 + $0x30] sm:$0xf]
        %v2309 = vld [vmem:[%s65 + $0x34] sm:$0xf]
        %v2310 = vld [vmem:[%s65 + $0x38] sm:$0xf]
        %v2311 = vld [vmem:[%s65 + $0x3c] sm:$0xf]
        %v2312 = vpack.c.bf16 %v2293, %v2292
        %v2329 = vunpack.c.l.b16 %v2296
        %v2330 = vunpack.c.l.b16 %v2297
        %v2331 = vunpack.c.l.b16 %v2298
        %v2332 = vunpack.c.l.b16 %v2299
        %v2333 = vunpack.c.l.b16 %v2300
        %v2334 = vunpack.c.l.b16 %v2301
        %v2335 = vunpack.c.l.b16 %v2302
        %v2336 = vunpack.c.l.b16 %v2303
        %v2337 = vunpack.c.l.b16 %v2304
        %v2338 = vunpack.c.l.b16 %v2305
        %v2339 = vunpack.c.l.b16 %v2306
        %v2340 = vunpack.c.l.b16 %v2307
        %v2341 = vunpack.c.l.b16 %v2308
        %v2342 = vunpack.c.l.b16 %v2309
        %v2343 = vunpack.c.l.b16 %v2310
        %v2344 = vunpack.c.l.b16 %v2311
        %v2345 = vpack.c.b16 %v2330, %v2329
        %v2346 = vpack.c.b16 %v2332, %v2331
        %v2347 = vpack.c.b16 %v2334, %v2333
        %v2348 = vpack.c.b16 %v2336, %v2335
        %v2349 = vpack.c.b16 %v2338, %v2337
        %v2350 = vpack.c.b16 %v2340, %v2339
        %v2351 = vpack.c.b16 %v2342, %v2341
        %v2352 = vpack.c.b16 %v2344, %v2343
        %v2354 = vsel %vm1641, %v2345, 0
        %v2357 = vsel %vm1641, %v2346, 0
        %v2360 = vsel %vm1641, %v2347, 0
        %v2363 = vsel %vm1641, %v2348, 0
        %v2366 = vsel %vm1641, %v2349, 0
        %v2369 = vsel %vm1641, %v2350, 0
        %v2372 = vsel %vm1641, %v2351, 0
        %v2375 = vsel %vm1641, %v2352, 0
        %2377 = vmatpush.bf16.msra.mxu0 0
        %2378 = vmatpush.bf16.msra.mxu0 0
        %2379 = vmatpush.bf16.msra.mxu0 0
        %2380 = vmatpush.bf16.msra.mxu0 0
        %2381 = vmatpush.bf16.msra.mxu0 0
        %2382 = vmatpush.bf16.msra.mxu0 0
        %2383 = vmatpush.bf16.msra.mxu0 0
        %2384 = vmatpush.bf16.msra.mxu0 %v2312
        %2385 = vmatmul.bf16.gmra.mxu0 %v2354
        %v2386 = vpop.f32.mrf.mxu0
        %v2387 = vadd.f32 0.0, %v2386
        %v2388 = vpop.f32.mrf.mxu0
        %v2389 = vadd.f32 0.0, %v2388
        %2390 = vmatmul.bf16.gmra.mxu0 %v2357
        %v2391 = vpop.f32.mrf.mxu0
        %v2392 = vadd.f32 0.0, %v2391
        %v2393 = vpop.f32.mrf.mxu0
        %v2394 = vadd.f32 0.0, %v2393
        %2395 = vmatmul.bf16.gmra.mxu0 %v2360
        %v2396 = vpop.f32.mrf.mxu0
        %v2397 = vadd.f32 0.0, %v2396
        %v2398 = vpop.f32.mrf.mxu0
        %v2399 = vadd.f32 0.0, %v2398
        %2400 = vmatmul.bf16.gmra.mxu0 %v2363
        %v2401 = vpop.f32.mrf.mxu0
        %v2402 = vadd.f32 0.0, %v2401
        %v2403 = vpop.f32.mrf.mxu0
        %v2404 = vadd.f32 0.0, %v2403
        %2405 = vmatmul.bf16.gmra.mxu0 %v2366
        %v2406 = vpop.f32.mrf.mxu0
        %v2407 = vadd.f32 0.0, %v2406
        %v2408 = vpop.f32.mrf.mxu0
        %v2409 = vadd.f32 0.0, %v2408
        %2410 = vmatmul.bf16.gmra.mxu0 %v2369
        %v2411 = vpop.f32.mrf.mxu0
        %v2412 = vadd.f32 0.0, %v2411
        %v2413 = vpop.f32.mrf.mxu0
        %v2414 = vadd.f32 0.0, %v2413
        %2415 = vmatmul.bf16.gmra.mxu0 %v2372
        %v2416 = vpop.f32.mrf.mxu0
        %v2417 = vadd.f32 0.0, %v2416
        %v2418 = vpop.f32.mrf.mxu0
        %v2419 = vadd.f32 0.0, %v2418
        %2420 = vmatmul.bf16.gmra.mxu0 %v2375
        %v2421 = vpop.f32.mrf.mxu0
        %v2422 = vadd.f32 0.0, %v2421
        %v2423 = vpop.f32.mrf.mxu0
        %v2424 = vadd.f32 0.0, %v2423
        %2425 = vdwg.mxu0
        %v2426 = vld [vmem:[%s67] sm:$0xf]
        %v2427 = vld [vmem:[%s67 + $0x4] sm:$0xf]
        %v2428 = vld [vmem:[%s67 + $0x8] sm:$0xf]
        %v2429 = vld [vmem:[%s67 + $0xc] sm:$0xf]
        %v2430 = vpack.c.bf16 %v2389, %v2387
        %v2431 = vpack.c.bf16 %v2394, %v2392
        %v2432 = vpack.c.bf16 %v2399, %v2397
        %v2433 = vpack.c.bf16 %v2404, %v2402
        %v2434 = vpack.c.bf16 %v2409, %v2407
        %v2435 = vpack.c.bf16 %v2414, %v2412
        %v2436 = vpack.c.bf16 %v2419, %v2417
        %v2437 = vpack.c.bf16 %v2424, %v2422
        %v2442 = vunpack.c.l.b16 %v2426
        %v2443 = vunpack.c.l.b16 %v2427
        %v2444 = vunpack.c.l.b16 %v2428
        %v2445 = vunpack.c.l.b16 %v2429
        %v2446 = vpack.c.b16 %v2443, %v2442
        %v2447 = vpack.c.b16 %v2445, %v2444
        %v2451 = vsel %vm1494, %v2430, 0
        %v2454 = vsel %vm1494, %v2431, 0
        %v2457 = vsel %vm1494, %v2432, 0
        %v2460 = vsel %vm1494, %v2433, 0
        %v2463 = vsel %vm1494, %v2434, 0
        %v2466 = vsel %vm1494, %v2435, 0
        %v2469 = vsel %vm1494, %v2436, 0
        %v2472 = vsel %vm1494, %v2437, 0
        %2474 = vmatpush.bf16.msra.mxu0 0
        %2475 = vmatpush.bf16.msra.mxu0 0
        %2476 = vmatpush.bf16.msra.mxu0 0
        %2477 = vmatpush.bf16.msra.mxu0 0
        %2478 = vmatpush.bf16.msra.mxu0 0
        %2479 = vmatpush.bf16.msra.mxu0 0
        %2480 = vmatpush.bf16.msra.mxu0 %v2447
        %2481 = vmatpush.bf16.msra.mxu0 %v2446
        %2482 = vmatmul.bf16.gmra.mxu0 %v2451
        %v2483 = vpop.f32.mrf.mxu0
        %v2484 = vadd.f32 0.0, %v2483
        %v2485 = vpop.f32.mrf.mxu0
        %v2486 = vadd.f32 0.0, %v2485
        %2487 = vmatmul.bf16.gmra.mxu0 %v2454
        %v2488 = vpop.f32.mrf.mxu0
        %v2489 = vadd.f32 0.0, %v2488
        %v2490 = vpop.f32.mrf.mxu0
        %v2491 = vadd.f32 0.0, %v2490
        %2492 = vmatmul.bf16.gmra.mxu0 %v2457
        %v2493 = vpop.f32.mrf.mxu0
        %v2494 = vadd.f32 0.0, %v2493
        %v2495 = vpop.f32.mrf.mxu0
        %v2496 = vadd.f32 0.0, %v2495
        %2497 = vmatmul.bf16.gmra.mxu0 %v2460
        %v2498 = vpop.f32.mrf.mxu0
        %v2499 = vadd.f32 0.0, %v2498
        %v2500 = vpop.f32.mrf.mxu0
        %v2501 = vadd.f32 0.0, %v2500
        %2502 = vmatmul.bf16.gmra.mxu0 %v2463
        %v2503 = vpop.f32.mrf.mxu0
        %v2504 = vadd.f32 0.0, %v2503
        %v2505 = vpop.f32.mrf.mxu0
        %v2506 = vadd.f32 0.0, %v2505
        %2507 = vmatmul.bf16.gmra.mxu0 %v2466
        %v2508 = vpop.f32.mrf.mxu0
        %v2509 = vadd.f32 0.0, %v2508
        %v2510 = vpop.f32.mrf.mxu0
        %v2511 = vadd.f32 0.0, %v2510
        %2512 = vmatmul.bf16.gmra.mxu0 %v2469
        %v2513 = vpop.f32.mrf.mxu0
        %v2514 = vadd.f32 0.0, %v2513
        %v2515 = vpop.f32.mrf.mxu0
        %v2516 = vadd.f32 0.0, %v2515
        %2517 = vmatmul.bf16.gmra.mxu0 %v2472
        %v2518 = vpop.f32.mrf.mxu0
        %v2519 = vadd.f32 0.0, %v2518
        %v2520 = vpop.f32.mrf.mxu0
        %v2521 = vadd.f32 0.0, %v2520
        %2522 = vdwg.mxu0
        %v2523 = vld [vmem:[%s69] sm:$0xff]
        %v2524 = vld [vmem:[%s69 + $0x8] sm:$0xff]
        %v2525 = vld [vmem:[%s69 + $0x10] sm:$0xff]
        %v2526 = vld [vmem:[%s69 + $0x18] sm:$0xff]
        %v2527 = vld [vmem:[%s69 + $0x20] sm:$0xff]
        %v2528 = vld [vmem:[%s69 + $0x28] sm:$0xff]
        %v2529 = vld [vmem:[%s69 + $0x30] sm:$0xff]
        %v2530 = vld [vmem:[%s69 + $0x38] sm:$0xff]
        %v2531 = vld [vmem:[%s69 + $0x40] sm:$0xff]
        %v2532 = vld [vmem:[%s69 + $0x48] sm:$0xff]
        %v2533 = vld [vmem:[%s69 + $0x50] sm:$0xff]
        %v2534 = vld [vmem:[%s69 + $0x58] sm:$0xff]
        %v2535 = vld [vmem:[%s69 + $0x60] sm:$0xff]
        %v2536 = vld [vmem:[%s69 + $0x68] sm:$0xff]
        %v2537 = vld [vmem:[%s69 + $0x70] sm:$0xff]
        %v2538 = vld [vmem:[%s69 + $0x78] sm:$0xff]
        %v2539 = vmul.f32 %v2484, %v2523
        %v2540 = vmul.f32 %v2486, %v2524
        %v2541 = vmul.f32 %v2489, %v2525
        %v2542 = vmul.f32 %v2491, %v2526
        %v2543 = vmul.f32 %v2494, %v2527
        %v2544 = vmul.f32 %v2496, %v2528
        %v2545 = vmul.f32 %v2499, %v2529
        %v2546 = vmul.f32 %v2501, %v2530
        %v2547 = vmul.f32 %v2504, %v2531
        %v2548 = vmul.f32 %v2506, %v2532
        %v2549 = vmul.f32 %v2509, %v2533
        %v2550 = vmul.f32 %v2511, %v2534
        %v2551 = vmul.f32 %v2514, %v2535
        %v2552 = vmul.f32 %v2516, %v2536
        %v2553 = vmul.f32 %v2519, %v2537
        %v2554 = vmul.f32 %v2521, %v2538
        %v2555 = vpack.c.bf16 %v2295, %v2294
        %2556 = vmatpush.bf16.msra.mxu0 0
        %2557 = vmatpush.bf16.msra.mxu0 0
        %2558 = vmatpush.bf16.msra.mxu0 0
        %2559 = vmatpush.bf16.msra.mxu0 0
        %2560 = vmatpush.bf16.msra.mxu0 0
        %2561 = vmatpush.bf16.msra.mxu0 0
        %2562 = vmatpush.bf16.msra.mxu0 0
        %2563 = vmatpush.bf16.msra.mxu0 %v2555
        %2564 = vmatmul.bf16.gmra.mxu0 %v2354
        %v2565 = vpop.f32.mrf.mxu0
        %v2566 = vadd.f32 0.0, %v2565
        %v2567 = vpop.f32.mrf.mxu0
        %v2568 = vadd.f32 0.0, %v2567
        %2569 = vmatmul.bf16.gmra.mxu0 %v2357
        %v2570 = vpop.f32.mrf.mxu0
        %v2571 = vadd.f32 0.0, %v2570
        %v2572 = vpop.f32.mrf.mxu0
        %v2573 = vadd.f32 0.0, %v2572
        %2574 = vmatmul.bf16.gmra.mxu0 %v2360
        %v2575 = vpop.f32.mrf.mxu0
        %v2576 = vadd.f32 0.0, %v2575
        %v2577 = vpop.f32.mrf.mxu0
        %v2578 = vadd.f32 0.0, %v2577
        %2579 = vmatmul.bf16.gmra.mxu0 %v2363
        %v2580 = vpop.f32.mrf.mxu0
        %v2581 = vadd.f32 0.0, %v2580
        %v2582 = vpop.f32.mrf.mxu0
        %v2583 = vadd.f32 0.0, %v2582
        %2584 = vmatmul.bf16.gmra.mxu0 %v2366
        %v2585 = vpop.f32.mrf.mxu0
        %v2586 = vadd.f32 0.0, %v2585
        %v2587 = vpop.f32.mrf.mxu0
        %v2588 = vadd.f32 0.0, %v2587
        %2589 = vmatmul.bf16.gmra.mxu0 %v2369
        %v2590 = vpop.f32.mrf.mxu0
        %v2591 = vadd.f32 0.0, %v2590
        %v2592 = vpop.f32.mrf.mxu0
        %v2593 = vadd.f32 0.0, %v2592
        %2594 = vmatmul.bf16.gmra.mxu0 %v2372
        %v2595 = vpop.f32.mrf.mxu0
        %v2596 = vadd.f32 0.0, %v2595
        %v2597 = vpop.f32.mrf.mxu0
        %v2598 = vadd.f32 0.0, %v2597
        %2599 = vmatmul.bf16.gmra.mxu0 %v2375
        %v2600 = vpop.f32.mrf.mxu0
        %v2601 = vadd.f32 0.0, %v2600
        %v2602 = vpop.f32.mrf.mxu0
        %v2603 = vadd.f32 0.0, %v2602
        %2604 = vdwg.mxu0
        %v2605 = vpack.c.bf16 %v2568, %v2566
        %v2606 = vpack.c.bf16 %v2573, %v2571
        %v2607 = vpack.c.bf16 %v2578, %v2576
        %v2608 = vpack.c.bf16 %v2583, %v2581
        %v2609 = vpack.c.bf16 %v2588, %v2586
        %v2610 = vpack.c.bf16 %v2593, %v2591
        %v2611 = vpack.c.bf16 %v2598, %v2596
        %v2612 = vpack.c.bf16 %v2603, %v2601
        %v2614 = vsel %vm1494, %v2605, 0
        %v2617 = vsel %vm1494, %v2606, 0
        %v2620 = vsel %vm1494, %v2607, 0
        %v2623 = vsel %vm1494, %v2608, 0
        %v2626 = vsel %vm1494, %v2609, 0
        %v2629 = vsel %vm1494, %v2610, 0
        %v2632 = vsel %vm1494, %v2611, 0
        %v2635 = vsel %vm1494, %v2612, 0
        %2637 = vmatpush.bf16.msra.mxu0 0
        %2638 = vmatpush.bf16.msra.mxu0 0
        %2639 = vmatpush.bf16.msra.mxu0 0
        %2640 = vmatpush.bf16.msra.mxu0 0
        %2641 = vmatpush.bf16.msra.mxu0 0
        %2642 = vmatpush.bf16.msra.mxu0 0
        %2643 = vmatpush.bf16.msra.mxu0 %v2447
        %2644 = vmatpush.bf16.msra.mxu0 %v2446
        %2645 = vmatmul.bf16.gmra.mxu0 %v2614
        %v2646 = vpop.f32.mrf.mxu0
        %v2647 = vadd.f32 0.0, %v2646
        %v2648 = vpop.f32.mrf.mxu0
        %v2649 = vadd.f32 0.0, %v2648
        %2650 = vmatmul.bf16.gmra.mxu0 %v2617
        %v2651 = vpop.f32.mrf.mxu0
        %v2652 = vadd.f32 0.0, %v2651
        %v2653 = vpop.f32.mrf.mxu0
        %v2654 = vadd.f32 0.0, %v2653
        %2655 = vmatmul.bf16.gmra.mxu0 %v2620
        %v2656 = vpop.f32.mrf.mxu0
        %v2657 = vadd.f32 0.0, %v2656
        %v2658 = vpop.f32.mrf.mxu0
        %v2659 = vadd.f32 0.0, %v2658
        %2660 = vmatmul.bf16.gmra.mxu0 %v2623
        %v2661 = vpop.f32.mrf.mxu0
        %v2662 = vadd.f32 0.0, %v2661
        %v2663 = vpop.f32.mrf.mxu0
        %v2664 = vadd.f32 0.0, %v2663
        %2665 = vmatmul.bf16.gmra.mxu0 %v2626
        %v2666 = vpop.f32.mrf.mxu0
        %v2667 = vadd.f32 0.0, %v2666
        %v2668 = vpop.f32.mrf.mxu0
        %v2669 = vadd.f32 0.0, %v2668
        %2670 = vmatmul.bf16.gmra.mxu0 %v2629
        %v2671 = vpop.f32.mrf.mxu0
        %v2672 = vadd.f32 0.0, %v2671
        %v2673 = vpop.f32.mrf.mxu0
        %v2674 = vadd.f32 0.0, %v2673
        %2675 = vmatmul.bf16.gmra.mxu0 %v2632
        %v2676 = vpop.f32.mrf.mxu0
        %v2677 = vadd.f32 0.0, %v2676
        %v2678 = vpop.f32.mrf.mxu0
        %v2679 = vadd.f32 0.0, %v2678
        %2680 = vmatmul.bf16.gmra.mxu0 %v2635
        %v2681 = vpop.f32.mrf.mxu0
        %v2682 = vadd.f32 0.0, %v2681
        %v2683 = vpop.f32.mrf.mxu0
        %v2684 = vadd.f32 0.0, %v2683
        %2685 = vdwg.mxu0
        %v2686 = vmul.f32 %v2647, %v2523
        %v2687 = vmul.f32 %v2649, %v2524
        %v2688 = vmul.f32 %v2652, %v2525
        %v2689 = vmul.f32 %v2654, %v2526
        %v2690 = vmul.f32 %v2657, %v2527
        %v2691 = vmul.f32 %v2659, %v2528
        %v2692 = vmul.f32 %v2662, %v2529
        %v2693 = vmul.f32 %v2664, %v2530
        %v2694 = vmul.f32 %v2667, %v2531
        %v2695 = vmul.f32 %v2669, %v2532
        %v2696 = vmul.f32 %v2672, %v2533
        %v2697 = vmul.f32 %v2674, %v2534
        %v2698 = vmul.f32 %v2677, %v2535
        %v2699 = vmul.f32 %v2679, %v2536
        %v2700 = vmul.f32 %v2682, %v2537
        %v2701 = vmul.f32 %v2684, %v2538
        %v2702 = vpack.c.bf16 %v2271, %v2271
        %v2703 = vpack.c.bf16 %v2540, %v2539
        %v2704 = vpack.c.bf16 %v2542, %v2541
        %v2705 = vpack.c.bf16 %v2544, %v2543
        %v2706 = vpack.c.bf16 %v2546, %v2545
        %v2707 = vpack.c.bf16 %v2548, %v2547
        %v2708 = vpack.c.bf16 %v2550, %v2549
        %v2709 = vpack.c.bf16 %v2552, %v2551
        %v2710 = vpack.c.bf16 %v2554, %v2553
        %s2711 = scalar_lea.vmem %s57, %s1406
        %v2712 = vld [vmem:[%s2711] sm:$0xff]
        %v2714 = vsel %vm1921, %v2702, 0
        %v2717 = vsel %vm1921, %v2703, 0
        %v2720 = vsel %vm1921, %v2704, 0
        %v2723 = vsel %vm1921, %v2705, 0
        %v2726 = vsel %vm1921, %v2706, 0
        %v2729 = vsel %vm1921, %v2707, 0
        %v2732 = vsel %vm1921, %v2708, 0
        %v2735 = vsel %vm1921, %v2709, 0
        %v2738 = vsel %vm1921, %v2710, 0
        %2740 = vmatpush.bf16.xpose.msra.mxu0 %v2738
        %2741 = vmatpush.bf16.xpose.msra.mxu0 %v2735
        %2742 = vmatpush.bf16.xpose.msra.mxu0 %v2732
        %2743 = vmatpush.bf16.xpose.msra.mxu0 %v2729
        %2744 = vmatpush.bf16.xpose.msra.mxu0 %v2726
        %2745 = vmatpush.bf16.xpose.msra.mxu0 %v2723
        %2746 = vmatpush.bf16.xpose.msra.mxu0 %v2720
        %2747 = vmatpush.bf16.xpose.msra.mxu0 %v2717
        %2748 = vmatmul.bf16.gmra.mxu0 %v2714
        %v2749 = vpop.f32.mrf.mxu0
        %v2750 = vadd.f32 %v2712, %v2749
        %v2751 = vpop.f32.mrf.mxu0
        %2752 = vdwg.mxu0
        %2753 = vmax.xlane.f32.xlu0 %v2750
        %v2754 = vpop.xlane.xlu0 %2753
        %v2755 = vsub.f32 %v2750, %v2754
        %v2756 = vmul.f32 %v2755, 1.442695
        %v2757 = vpow.pop %v2756
        %2758 = vmatpush.msra.mxu0 %v2538
        %2759 = vmatpush.msra.mxu0 %v2537
        %2760 = vmatpush.msra.mxu0 %v2536
        %2761 = vmatpush.msra.mxu0 %v2535
        %2762 = vmatpush.msra.mxu0 %v2534
        %2763 = vmatpush.msra.mxu0 %v2533
        %2764 = vmatpush.msra.mxu0 %v2532
        %2765 = vmatpush.msra.mxu0 %v2531
        %2766 = vmatpush.msra.mxu0 %v2530
        %2767 = vmatpush.msra.mxu0 %v2529
        %2768 = vmatpush.msra.mxu0 %v2528
        %2769 = vmatpush.msra.mxu0 %v2527
        %2770 = vmatpush.msra.mxu0 %v2526
        %2771 = vmatpush.msra.mxu0 %v2525
        %2772 = vmatpush.msra.mxu0 %v2524
        %2773 = vmatpush.msra.mxu0 %v2523
        %2774 = vmatmul.f32.gmra.mxu0 %v2757
        %v2775 = vpop.f32.mrf.mxu0
        %v2776 = vadd.f32 0.0, %v2775
        %2777 = vdwg.mxu0
        %v2778 = vpack.c.bf16 %v2757, %v2757
        %v2779 = vpack.c.bf16 %v2687, %v2686
        %v2780 = vpack.c.bf16 %v2689, %v2688
        %v2781 = vpack.c.bf16 %v2691, %v2690
        %v2782 = vpack.c.bf16 %v2693, %v2692
        %v2783 = vpack.c.bf16 %v2695, %v2694
        %v2784 = vpack.c.bf16 %v2697, %v2696
        %v2785 = vpack.c.bf16 %v2699, %v2698
        %v2786 = vpack.c.bf16 %v2701, %v2700
        %2787 = vmatpush.bf16.msra.mxu0 %v2786
        %2788 = vmatpush.bf16.msra.mxu0 %v2785
        %2789 = vmatpush.bf16.msra.mxu0 %v2784
        %2790 = vmatpush.bf16.msra.mxu0 %v2783
        %2791 = vmatpush.bf16.msra.mxu0 %v2782
        %2792 = vmatpush.bf16.msra.mxu0 %v2781
        %2793 = vmatpush.bf16.msra.mxu0 %v2780
        %2794 = vmatpush.bf16.msra.mxu0 %v2779
        %2795 = vmatmul.bf16.gmra.mxu0 %v2778
        %v2796 = vpop.f32.mrf.mxu0
        %v2797 = vadd.f32 0.0, %v2796
        %v2798 = vpop.f32.mrf.mxu0
        %2799 = vdwg.mxu0
        %v2800 = vrcp.pop %v2776
        %v2801 = vmul.f32 %v2797, %v2800
        %v2802 = vld [vmem:[%s71] sm:$0xf]
        %v2803 = vld [vmem:[%s71 + $0x4] sm:$0xf]
        %v2804 = vld [vmem:[%s71 + $0x8] sm:$0xf]
        %v2805 = vld [vmem:[%s71 + $0xc] sm:$0xf]
        %v2806 = vld [vmem:[%s71 + $0x10] sm:$0xf]
        %v2807 = vld [vmem:[%s71 + $0x14] sm:$0xf]
        %v2808 = vld [vmem:[%s71 + $0x18] sm:$0xf]
        %v2809 = vld [vmem:[%s71 + $0x1c] sm:$0xf]
        %v2810 = vpack.c.bf16 %v2801, %v2801
        %v2819 = vunpack.c.l.b16 %v2802
        %v2820 = vunpack.c.l.b16 %v2803
        %v2821 = vunpack.c.l.b16 %v2804
        %v2822 = vunpack.c.l.b16 %v2805
        %v2823 = vunpack.c.l.b16 %v2806
        %v2824 = vunpack.c.l.b16 %v2807
        %v2825 = vunpack.c.l.b16 %v2808
        %v2826 = vunpack.c.l.b16 %v2809
        %v2827 = vpack.c.b16 %v2820, %v2819
        %v2828 = vpack.c.b16 %v2822, %v2821
        %v2829 = vpack.c.b16 %v2824, %v2823
        %v2830 = vpack.c.b16 %v2826, %v2825
        %v2836 = vsel %vm1921, %v2810, 0
        %2838 = vmatpush.bf16.msra.mxu0 0
        %2839 = vmatpush.bf16.msra.mxu0 0
        %2840 = vmatpush.bf16.msra.mxu0 0
        %2841 = vmatpush.bf16.msra.mxu0 0
        %2842 = vmatpush.bf16.msra.mxu0 %v2830
        %2843 = vmatpush.bf16.msra.mxu0 %v2829
        %2844 = vmatpush.bf16.msra.mxu0 %v2828
        %2845 = vmatpush.bf16.msra.mxu0 %v2827
        %2846 = vmatmul.bf16.gmra.mxu0 %v2836
        %v2847 = vpop.f32.mrf.mxu0
        %v2848 = vadd.f32 0.0, %v2847
        %v2849 = vpop.f32.mrf.mxu0
        %2850 = vdwg.mxu0
        %v2851 = vadd.f32 %v2121, %v2848
        %v2852 = vmul.f32 %v2851, %v2851
        %v2853 = vsel %vm1494, %v2852, 0.0
        %2854 = vadd.xlane.f32.xlu0 %v2853
        %v2855 = vpop.xlane.xlu0 %2854
        %v2856 = vmul.f32 %v2855, %v1504
        %v2857 = vadd.f32 %v2856, 1e-06
        %v2858 = vrsqrt.pop %v2857
        %v2859 = vmul.f32 %v2858, %v2857
        %v2860 = vmul.f32 %v2859, %v2858
        %v2861 = vmul.f32 0.5, %v2860
        %v2862 = vsub.f32 1.5, %v2861
        %v2863 = vmul.f32 %v2858, %v2862
        %vm2864 = vweird.f32 %v2857
        %vm2865 = vweird.f32 %v2858
        %vm2866 = vmor %vm2864, %vm2865
        %v2867 = vsel %vm2866, %v2858, %v2863
        %v2868 = vmul.f32 %v2851, %v2867
        %v2869 = vld [vmem:[%s51] sm:$0x1]
        %v2871 = vperm.slane %v2869, 0
        %v2873 = vmul.f32 %v2868, %v2871
        %v2874 = vld [vmem:[%s73] sm:$0xf]
        %v2875 = vld [vmem:[%s73 + $0x4] sm:$0xf]
        %v2876 = vld [vmem:[%s73 + $0x8] sm:$0xf]
        %v2877 = vld [vmem:[%s73 + $0xc] sm:$0xf]
        %v2878 = vpack.c.bf16 %v2873, %v2873
        %v2883 = vunpack.c.l.b16 %v2874
        %v2884 = vunpack.c.l.b16 %v2875
        %v2885 = vunpack.c.l.b16 %v2876
        %v2886 = vunpack.c.l.b16 %v2877
        %v2887 = vpack.c.b16 %v2884, %v2883
        %v2888 = vpack.c.b16 %v2886, %v2885
        %v2892 = vsel %vm1494, %v2878, 0
        %2894 = vmatpush.bf16.msra.mxu0 0
        %2895 = vmatpush.bf16.msra.mxu0 0
        %2896 = vmatpush.bf16.msra.mxu0 0
        %2897 = vmatpush.bf16.msra.mxu0 0
        %2898 = vmatpush.bf16.msra.mxu0 0
        %2899 = vmatpush.bf16.msra.mxu0 0
        %2900 = vmatpush.bf16.msra.mxu0 %v2888
        %2901 = vmatpush.bf16.msra.mxu0 %v2887
        %2902 = vmatmul.bf16.gmra.mxu0 %v2892
        %v2903 = vpop.f32.mrf.mxu0
        %v2904 = vadd.f32 0.0, %v2903
        %v2905 = vpop.f32.mrf.mxu0
        %2906 = vdwg.mxu0
        %v2907 = vxor.u32 %v2904, 2147483648
        %v2908 = vmul.f32 %v2907, 1.442695
        %v2909 = vpow.pop %v2908
        %v2910 = vadd.f32 %v2909, 1.0
        %v2911 = vrcp.pop %v2910
        %v2912 = vmul.f32 %v2910, %v2911
        %v2913 = vsub.f32 1.0, %v2912
        %v2914 = vmul.f32 %v2911, %v2913
        %v2915 = vadd.f32 %v2911, %v2914
        %vm2916 = vweird.f32 %v2910
        %vm2917 = vweird.f32 %v2911
        %vm2918 = vmor %vm2916, %vm2917
        %v2919 = vsel %vm2918, %v2911, %v2915
        %v2920 = vand.u32 2147483647, %v2910
        %vm2921 = vcmp.eq.f32.partialorder %v2920, 8.507059e+37
        %v2922 = vand.u32 %v2910, 2147483648
        %v2923 = vor.u32 1.1754944e-38, %v2922
        %v2924 = vsel %vm2921, %v2923, %v2919
        %v2925 = vmul.f32 1.0, %v2924
        %v2926 = vmul.f32 %v2904, %v2925
        %2928 = vrot.lane.b32.xlu0 %v2904, 80
        %v2929 = vpop.permute.xlu0 %2928
        %v2931 = vmul.f32 %v2926, %v2929
        %v2932 = vld [vmem:[%s75] sm:$0xf]
        %v2933 = vld [vmem:[%s75 + $0x4] sm:$0xf]
        %v2934 = vld [vmem:[%s75 + $0x8] sm:$0xf]
        %v2935 = vld [vmem:[%s75 + $0xc] sm:$0xf]
        %v2936 = vld [vmem:[%s75 + $0x10] sm:$0xf]
        %v2937 = vld [vmem:[%s75 + $0x14] sm:$0xf]
        %v2938 = vpack.c.bf16 %v2931, %v2931
        %v2945 = vunpack.c.l.b16 %v2932
        %v2946 = vunpack.c.l.b16 %v2933
        %v2947 = vunpack.c.l.b16 %v2934
        %v2948 = vunpack.c.l.b16 %v2935
        %v2949 = vunpack.c.l.b16 %v2936
        %v2950 = vunpack.c.l.b16 %v2937
        %v2951 = vpack.c.b16 %v2946, %v2945
        %v2952 = vpack.c.b16 %v2948, %v2947
        %v2953 = vpack.c.b16 %v2950, %v2949
        %v2958 = vsel %vm1563, %v2938, 0
        %2960 = vmatpush.bf16.msra.mxu0 0
        %2961 = vmatpush.bf16.msra.mxu0 0
        %2962 = vmatpush.bf16.msra.mxu0 0
        %2963 = vmatpush.bf16.msra.mxu0 0
        %2964 = vmatpush.bf16.msra.mxu0 0
        %2965 = vmatpush.bf16.msra.mxu0 %v2953
        %2966 = vmatpush.bf16.msra.mxu0 %v2952
        %2967 = vmatpush.bf16.msra.mxu0 %v2951
        %2968 = vmatmul.bf16.gmra.mxu0 %v2958
        %v2969 = vpop.f32.mrf.mxu0
        %v2970 = vadd.f32 0.0, %v2969
        %v2971 = vpop.f32.mrf.mxu0
        %2972 = vdwg.mxu0
        %v2973 = vadd.f32 %v2851, %v2970
        %v2974 = vmul.f32 %v2973, %v2973
        %v2975 = vsel %vm1494, %v2974, 0.0
        %2976 = vadd.xlane.f32.xlu0 %v2975
        %v2977 = vpop.xlane.xlu0 %2976
        %v2978 = vmul.f32 %v2977, %v1504
        %v2979 = vadd.f32 %v2978, 1e-06
        %v2980 = vrsqrt.pop %v2979
        %v2981 = vmul.f32 %v2980, %v2979
        %v2982 = vmul.f32 %v2981, %v2980
        %v2983 = vmul.f32 0.5, %v2982
        %v2984 = vsub.f32 1.5, %v2983
        %v2985 = vmul.f32 %v2980, %v2984
        %vm2986 = vweird.f32 %v2979
        %vm2987 = vweird.f32 %v2980
        %vm2988 = vmor %vm2986, %vm2987
        %v2989 = vsel %vm2988, %v2980, %v2985
        %v2990 = vmul.f32 %v2973, %v2989
        %v2991 = vld [vmem:[%s7] sm:$0x1]
        %v2993 = vperm.slane %v2991, 0
        %v2995 = vmul.f32 %v2990, %v2993
        %v2996 = vld [vmem:[%s5] sm:$0xf]
        %v2997 = vld [vmem:[%s5 + $0x4] sm:$0xf]
        %v2998 = vld [vmem:[%s5 + $0x8] sm:$0xf]
        %v2999 = vld [vmem:[%s5 + $0xc] sm:$0xf]
        %v3000 = vld [vmem:[%s5 + $0x10] sm:$0xf]
        %v3001 = vld [vmem:[%s5 + $0x14] sm:$0xf]
        %v3002 = vld [vmem:[%s5 + $0x18] sm:$0xf]
        %v3003 = vld [vmem:[%s5 + $0x1c] sm:$0xf]
        %v3004 = vld [vmem:[%s5 + $0x20] sm:$0xf]
        %v3005 = vld [vmem:[%s5 + $0x24] sm:$0xf]
        %v3006 = vld [vmem:[%s5 + $0x28] sm:$0xf]
        %v3007 = vld [vmem:[%s5 + $0x2c] sm:$0xf]
        %v3008 = vld [vmem:[%s5 + $0x30] sm:$0xf]
        %v3009 = vld [vmem:[%s5 + $0x34] sm:$0xf]
        %v3010 = vld [vmem:[%s5 + $0x38] sm:$0xf]
        %v3011 = vld [vmem:[%s5 + $0x3c] sm:$0xf]
        %v3012 = vpack.c.bf16 %v2995, %v2995
        %v3029 = vunpack.c.l.b16 %v2996
        %v3030 = vunpack.c.l.b16 %v2997
        %v3031 = vunpack.c.l.b16 %v2998
        %v3032 = vunpack.c.l.b16 %v2999
        %v3033 = vunpack.c.l.b16 %v3000
        %v3034 = vunpack.c.l.b16 %v3001
        %v3035 = vunpack.c.l.b16 %v3002
        %v3036 = vunpack.c.l.b16 %v3003
        %v3037 = vunpack.c.l.b16 %v3004
        %v3038 = vunpack.c.l.b16 %v3005
        %v3039 = vunpack.c.l.b16 %v3006
        %v3040 = vunpack.c.l.b16 %v3007
        %v3041 = vunpack.c.l.b16 %v3008
        %v3042 = vunpack.c.l.b16 %v3009
        %v3043 = vunpack.c.l.b16 %v3010
        %v3044 = vunpack.c.l.b16 %v3011
        %v3045 = vpack.c.b16 %v3030, %v3029
        %v3046 = vpack.c.b16 %v3032, %v3031
        %v3047 = vpack.c.b16 %v3034, %v3033
        %v3048 = vpack.c.b16 %v3036, %v3035
        %v3049 = vpack.c.b16 %v3038, %v3037
        %v3050 = vpack.c.b16 %v3040, %v3039
        %v3051 = vpack.c.b16 %v3042, %v3041
        %v3052 = vpack.c.b16 %v3044, %v3043
        %v3054 = vsel %vm1494, %v3012, 0
        %v3057 = vsel %vm1494, %v3045, 0
        %v3060 = vsel %vm1494, %v3046, 0
        %v3063 = vsel %vm1494, %v3047, 0
        %v3066 = vsel %vm1494, %v3048, 0
        %v3069 = vsel %vm1494, %v3049, 0
        %v3072 = vsel %vm1494, %v3050, 0
        %v3075 = vsel %vm1494, %v3051, 0
        %v3078 = vsel %vm1494, %v3052, 0
        %3080 = vmatpush.bf16.xpose.msra.mxu0 %v3078
        %3081 = vmatpush.bf16.xpose.msra.mxu0 %v3075
        %3082 = vmatpush.bf16.xpose.msra.mxu0 %v3072
        %3083 = vmatpush.bf16.xpose.msra.mxu0 %v3069
        %3084 = vmatpush.bf16.xpose.msra.mxu0 %v3066
        %3085 = vmatpush.bf16.xpose.msra.mxu0 %v3063
        %3086 = vmatpush.bf16.xpose.msra.mxu0 %v3060
        %3087 = vmatpush.bf16.xpose.msra.mxu0 %v3057
        %3088 = vmatmul.bf16.gmra.mxu0 %v3054
        %v3089 = vpop.f32.mrf.mxu0
        %v3090 = vadd.f32 0.0, %v3089
        %v3091 = vpop.f32.mrf.mxu0
        %3092 = vdwg.mxu0
        %3093 = vst [vmem:[%s1332] sm:$0xff] %v3090
        %s3094 = sand.u32 %s932, 1
        %s3095 = scalar_lea.sflag [#allocation3], %s3094
        %s3096 = sand.u32 %s932, 1
        %s3097 = smul.addr %s3096, 8
        %s3098 = scalar_lea.vmem [#allocation5], %s3097
        %p3099 = scmp.lt.s32.totalorder %s101, 1
        %s3100 = scalar_select %p3099, %s101, 1
        %s3101 = smul.addr %s3100, 2
        %s3102 = smul.addr %s3101, 8
        %s3103 = scalar_lea.vmem %s79, %s3102
        %p3104 = scmp.lt.s32.totalorder %s101, 1
        %s3105 = scalar_select %p3104, %s101, 1
        %s3106 = smul.addr %s3105, 2
        %s3107 = smul.addr %s3106, 8
        %s3108 = scalar_lea.vmem %s81, %s3107
        %p3109 = scmp.lt.s32.totalorder %s101, 1
        %s3110 = scalar_select %p3109, %s101, 1
        %s3111 = smul.addr %s3110, 2
        %s3112 = smul.addr %s3111, 8
        %s3113 = scalar_lea.vmem %s83, %s3112
        %p3114 = scmp.lt.s32.totalorder %s101, 1
        %s3115 = scalar_select %p3114, %s101, 1
        %s3116 = smul.addr %s3115, 2
        %s3117 = smul.addr %s3116, 8
        %s3118 = scalar_lea.vmem %s85, %s3117
        // Predicated region
        $region177: #{openelm_forward.1} parent=171 // pred_check
          %p3119 = pneg %p942
        $region178: #{openelm_forward.1} parent=171 // pred_check_branch
          %3121 = sbr.rel (%p3119) target = $region180
        $region179: #{openelm_forward.1} parent=171 // pred_region
          %3123 = vsyncadd %s3095, 0
          %s3124 = smul.addr %s101, 8
          %s3125 = scalar_lea.hbm %s77, %s3124
          %s3127 = sshll.u32 %s3098, 4
          %s3128 = int_to_ptr.vmem [resolvable:$true] %s3127
          %s3129 = sshll.u32 %s3125, 4
          %s3130 = int_to_ptr.hbm [resolvable:$true] %s3129
          %3132 = dma.vmem_to_hbm [thread:$0]  %s3128, 128, %s3130, %s3095
        $region180: #{openelm_forward.1} parent=171 // pred_fallthru
          _
        // Predicated region
        $region181: #{openelm_forward.1} parent=171 // pred_check
          %p3133 = pneg %p968
        $region182: #{openelm_forward.1} parent=171 // pred_check_branch
          %3135 = sbr.rel (%p3133) target = $region184
        $region183: #{openelm_forward.1} parent=171 // pred_region
          _
        $region184: #{openelm_forward.1} parent=171 // pred_fallthru
          _
        // Predicated region
        $region185: #{openelm_forward.1} parent=171 // pred_check
          %p3136 = pneg %p994
        $region186: #{openelm_forward.1} parent=171 // pred_check_branch
          %3138 = sbr.rel (%p3136) target = $region188
        $region187: #{openelm_forward.1} parent=171 // pred_region
          _
        $region188: #{openelm_forward.1} parent=171 // pred_fallthru
          _
        // Predicated region
        $region189: #{openelm_forward.1} parent=171 // pred_check
          %p3139 = pneg %p1020
        $region190: #{openelm_forward.1} parent=171 // pred_check_branch
          %3141 = sbr.rel (%p3139) target = $region192
        $region191: #{openelm_forward.1} parent=171 // pred_region
          _
        $region192: #{openelm_forward.1} parent=171 // pred_fallthru
          _
        // Predicated region
        $region193: #{openelm_forward.1} parent=171 // pred_check
          %p3142 = pneg %p1046
        $region194: #{openelm_forward.1} parent=171 // pred_check_branch
          %3144 = sbr.rel (%p3142) target = $region196
        $region195: #{openelm_forward.1} parent=171 // pred_region
          _
        $region196: #{openelm_forward.1} parent=171 // pred_fallthru
          _
      $region172: #{openelm_forward.1} parent=5 // pred_fallthru
        _
      %p3145 = scmp.le.s32.totalorder 2, %s96
      // Predicated region
      $region197: #{openelm_forward.1} parent=5 // pred_check
        %p3146 = pneg %p3145
      $region198: #{openelm_forward.1} parent=5 // pred_check_branch
        %3148 = sbr.rel (%p3146) target = $region200
      $region199: #{openelm_forward.1} parent=5 // pred_region
        %s3149 = ssub.s32 %s96, 2
        // Predicated region
        $region201: #{openelm_forward.1} parent=199 // pred_check
          %p3150 = pneg %p948
        $region202: #{openelm_forward.1} parent=199 // pred_check_branch
          %3152 = sbr.rel (%p3150) target = $region204
        $region203: #{openelm_forward.1} parent=199 // pred_region
          %s3153 = sand.u32 %s933, 1
          %s3154 = scalar_lea.sflag [#allocation3], %s3153
          %s3155 = sand.u32 %s933, 1
          %s3156 = smul.addr %s3155, 8
          %s3157 = scalar_lea.vmem [#allocation5], %s3156
          %3159 = dma.done %s3154, 128
        $region204: #{openelm_forward.1} parent=199 // pred_fallthru
          _
        // Predicated region
        $region205: #{openelm_forward.1} parent=199 // pred_check
          %p3160 = pneg %p974
        $region206: #{openelm_forward.1} parent=199 // pred_check_branch
          %3162 = sbr.rel (%p3160) target = $region208
        $region207: #{openelm_forward.1} parent=199 // pred_region
          %p3163 = scmp.lt.s32.totalorder %s102, 1
          %s3164 = scalar_select %p3163, %s102, 1
          %s3165 = smul.addr %s3164, 2
          %s3166 = smul.addr %s3165, 8
          %s3167 = scalar_lea.vmem %s79, %s3166
        $region208: #{openelm_forward.1} parent=199 // pred_fallthru
          _
        // Predicated region
        $region209: #{openelm_forward.1} parent=199 // pred_check
          %p3168 = pneg %p1000
        $region210: #{openelm_forward.1} parent=199 // pred_check_branch
          %3170 = sbr.rel (%p3168) target = $region212
        $region211: #{openelm_forward.1} parent=199 // pred_region
          %p3171 = scmp.lt.s32.totalorder %s102, 1
          %s3172 = scalar_select %p3171, %s102, 1
          %s3173 = smul.addr %s3172, 2
          %s3174 = smul.addr %s3173, 8
          %s3175 = scalar_lea.vmem %s81, %s3174
        $region212: #{openelm_forward.1} parent=199 // pred_fallthru
          _
        // Predicated region
        $region213: #{openelm_forward.1} parent=199 // pred_check
          %p3176 = pneg %p1026
        $region214: #{openelm_forward.1} parent=199 // pred_check_branch
          %3178 = sbr.rel (%p3176) target = $region216
        $region215: #{openelm_forward.1} parent=199 // pred_region
          %p3179 = scmp.lt.s32.totalorder %s102, 1
          %s3180 = scalar_select %p3179, %s102, 1
          %s3181 = smul.addr %s3180, 2
          %s3182 = smul.addr %s3181, 8
          %s3183 = scalar_lea.vmem %s83, %s3182
        $region216: #{openelm_forward.1} parent=199 // pred_fallthru
          _
        // Predicated region
        $region217: #{openelm_forward.1} parent=199 // pred_check
          %p3184 = pneg %p1052
        $region218: #{openelm_forward.1} parent=199 // pred_check_branch
          %3186 = sbr.rel (%p3184) target = $region220
        $region219: #{openelm_forward.1} parent=199 // pred_region
          %p3187 = scmp.lt.s32.totalorder %s102, 1
          %s3188 = scalar_select %p3187, %s102, 1
          %s3189 = smul.addr %s3188, 2
          %s3190 = smul.addr %s3189, 8
          %s3191 = scalar_lea.vmem %s85, %s3190
        $region220: #{openelm_forward.1} parent=199 // pred_fallthru
          _
      $region200: #{openelm_forward.1} parent=5 // pred_fallthru
        _
    $region6: #{openelm_forward.1} parent=1 // loop_footer
      %s100 = sadd.s32 1, %s96
    $region7: #{openelm_forward.1} parent=1 // loop_footer_branch
      %95 = sbr.rel target = $region3
    $region8: #{openelm_forward.1} parent=1 // loop_exit
      _
    %3192 = vsyncpa [#allocation3], 1
    %s3193 = scalar_lea.sflag [#allocation3], 1
    %3194 = vsyncpa %s3193, 1
    %3195 = vsyncpa [#allocation4], 1
    %s3196 = scalar_lea.sflag [#allocation4], 1
    %3197 = vsyncpa %s3196, 1

</llo_original>
